<compile_context>
chip_gen: v7x
topology: tpu7x:2x2x1
jax: 0.10.0
libtpu: 0.0.40
codegen_flags: <defaults>
</compile_context>

<pallas_src>
import functools

import jax
import jax.numpy as jnp
import numpy as np
from jax.experimental import pallas as pl
from jax.experimental.pallas import tpu as pltpu

LANE = 128


def _round_up(x, m):
    return ((x + m - 1) // m) * m


# ------------------------------ fused kernel ------------------------------ #
def _tcn_fused_kernel(*refs, meta, TL, Hpad, multi):
    """Whole TCN stack on one (batch, time-tile) grid point.

    refs = ([x_halo], x_tile, per-layer {w1,b1,w2,b2[,wd,bd]}..., out, win)
      x_halo : (1, Hpad, Cin_p) bf16   last Hpad input rows before the tile
      x_tile : (1, TL,  Cin_p) bf16    current tile of input rows
      w1/w2  : (K, Ci_p, Co_p) bf16    conv taps (per-tap matmul weights)
      wd, bd : 1x1 downsample conv (only when Cin != Cout)
      out    : (1, TL, Cout_p) bf16
      win    : (Hpad + TL, Cin_p) bf16 VMEM scratch: contiguous causal window
    """
    it = iter(refs)
    xh_ref = next(it) if multi else None
    xc_ref = next(it)
    layer_refs = []
    for m in meta:
        w1 = next(it); b1 = next(it); w2 = next(it); b2 = next(it)
        wd = next(it) if m["has_down"] else None
        bd = next(it) if m["has_down"] else None
        layer_refs.append((w1, b1, w2, b2, wd, bd))
    o_ref = next(it)
    win = next(it)

    t = pl.program_id(1)
    T0 = t * TL                       # global start time of this tile
    cin0 = win.shape[1]

    # --- assemble the contiguous causal window in VMEM (no concat, no mask
    #     multiply; halo rows are zeroed only on the first tile via pl.when).
    if multi:
        @pl.when(t == 0)
        def _():
            win[pl.ds(0, Hpad), :] = jnp.zeros((Hpad, cin0), win.dtype)

        @pl.when(t > 0)
        def _():
            win[pl.ds(0, Hpad), :] = xh_ref[0]
    else:
        win[pl.ds(0, Hpad), :] = jnp.zeros((Hpad, cin0), win.dtype)
    win[pl.ds(Hpad, TL), :] = xc_ref[0]

    def mask_front(v, nrows):
        """Zero rows whose GLOBAL time is negative (only affects the first
        tile; PyTorch zero-pads each conv input at t < 0)."""
        if nrows <= 0:
            return v
        thr = nrows - T0                       # <= 0 for every tile but t == 0
        rows = jax.lax.broadcasted_iota(jnp.int32, (v.shape[0], 1), 0)
        return jnp.where(rows < thr, jnp.zeros_like(v), v)

    base0 = Hpad - meta[0]["Hin"]              # window row of layer-0's range
    a_val = None                               # layers >= 1 operate on values
    P = len(meta)

    for l, m in enumerate(meta):
        K, d = m["K"], m["dilation"]
        E = (K - 1) * d
        Hin_next = m["Hin_next"]               # history still needed downstream
        w1, b1, w2, b2, wd, bd = layer_refs[l]
        n_out = Hin_next + TL                  # rows this layer must produce
        m1 = n_out + E                         # conv1 extended row count

        def read_in(start, size, _l=l):
            if _l == 0:
                return win[pl.ds(base0 + start, size), :]
            return a_val[start:start + size]

        # conv1 (causal, dilated, chomped) + ReLU: K per-tap MXU matmuls.
        acc = jnp.broadcast_to(b1[...], (m1, b1.shape[-1])).astype(jnp.float32)
        for j in range(K):
            acc = acc + jnp.dot(read_in(j * d, m1), w1[j],
                                preferred_element_type=jnp.float32)
        h1 = jnp.maximum(acc, 0.0)
        # TODO(synk): dropout1 is stochastic; eval-mode identity here.
        # conv2's PyTorch input is zero-padded at global t < 0:
        h1 = mask_front(h1, Hin_next + E)
        h1 = h1.astype(jnp.bfloat16)

        # conv2 (causal, dilated, chomped) + ReLU.
        acc = jnp.broadcast_to(b2[...], (n_out, b2.shape[-1])).astype(jnp.float32)
        for j in range(K):
            acc = acc + jnp.dot(h1[j * d:j * d + n_out], w2[j],
                                preferred_element_type=jnp.float32)
        h2 = jnp.maximum(acc, 0.0)
        # TODO(synk): dropout2 is stochastic; eval-mode identity here.

        # Residual: identity when Cin == Cout, else 1x1 conv.
        xres = read_in(2 * E, n_out)
        if m["has_down"]:
            res = jnp.dot(xres, wd[...], preferred_element_type=jnp.float32)
            res = res + bd[...]
        else:
            res = xres.astype(jnp.float32)

        out = jnp.maximum(h2 + res, 0.0)
        if l + 1 < P:
            # Rows at negative global time feed the next layer's zero padding.
            out = mask_front(out, Hin_next)
            a_val = out.astype(jnp.bfloat16)
        else:
            o_ref[0] = out.astype(o_ref.dtype)


# --------------------------------- wrapper -------------------------------- #
def temporal_conv_net(x_ncl, params, *, tl_max=1024, target_grid_steps=8):
    """x_ncl: (N, C_in, L) like PyTorch. Returns (N, C_out, L) float32."""
    x = jnp.transpose(x_ncl, (0, 2, 1)).astype(jnp.float32)      # NCL -> NLC
    N, L, cin = x.shape
    cin_p0 = params[0]["cin_p"]
    cout_last, cout_p_last = params[-1]["cout"], params[-1]["cout_p"]
    P = len(params)

    # Receptive-field bookkeeping: layer l needs Hin[l] rows of its input
    # history to emit Hin[l+1] + TL rows of output (2*E per layer, chained).
    E = [(p["K"] - 1) * p["dilation"] for p in params]
    Hin = [sum(2 * e for e in E[l:]) for l in range(P)] + [0]
    Hpad = _round_up(max(Hin[0], 16), 16)      # halo: multiple of 16 (bf16 tile)

    # --- time tile selection: multiple of Hpad, >= ~256 rows, and enough
    #     grid steps (N * n_t >= target) to keep both v7x TensorCores busy.
    tiles_wanted = max(1, -(-target_grid_steps // max(N, 1)))
    tl_cap = max(Hpad, (max(tl_max, Hpad) // Hpad) * Hpad)
    tl_for_tiles = _round_up(-(-L // tiles_wanted), Hpad)
    cand = max(tl_for_tiles, min(_round_up(256, Hpad), tl_cap))
    TL = min(tl_cap, cand)
    if TL >= _round_up(L, Hpad):               # tiling not useful: single tile
        TL = _round_up(L, 16)
        n_t, multi = 1, False
    else:
        n_t, multi = -(-L // TL), True
    L_pad = n_t * TL

    xb = jnp.pad(x, ((0, 0), (0, L_pad - L), (0, cin_p0 - cin)))
    xb = xb.astype(jnp.bfloat16)               # causal: tail zeros never leak back

    ins, in_specs, meta = [], [], []
    if multi:
        stride = TL // Hpad
        in_specs.append(pl.BlockSpec(
            (1, Hpad, cin_p0),
            lambda n, t, _s=stride: (n, jnp.maximum(t * _s - 1, 0), 0)))
        ins.append(xb)                                   # halo rows (same array)
    in_specs.append(pl.BlockSpec((1, TL, cin_p0), lambda n, t: (n, t, 0)))
    ins.append(xb)

    flops, wbytes = 0, 0
    for l, p in enumerate(params):
        K, ci, co = p["K"], p["cin_p"], p["cout_p"]
        in_specs += [pl.BlockSpec((K, ci, co), lambda n, t: (0, 0, 0)),
                     pl.BlockSpec((1, co), lambda n, t: (0, 0)),
                     pl.BlockSpec((K, co, co), lambda n, t: (0, 0, 0)),
                     pl.BlockSpec((1, co), lambda n, t: (0, 0))]
        ins += [p["w1"], p["b1"], p["w2"], p["b2"]]
        if p["has_down"]:
            in_specs += [pl.BlockSpec((ci, co), lambda n, t: (0, 0)),
                         pl.BlockSpec((1, co), lambda n, t: (0, 0))]
            ins += [p["wd"], p["bd"]]
        meta.append(dict(K=K, dilation=p["dilation"], has_down=p["has_down"],
                         Hin=Hin[l], Hin_next=Hin[l + 1]))
        lw = K * ci * co + K * co * co + (ci * co if p["has_down"] else 0)
        flops += 2 * N * L_pad * lw
        wbytes += 2 * lw + 8 * co

    # VMEM budget derived from the working set (weights are double-buffered by
    # the pipeline even though their index is constant -> counted twice).
    cmax = max(max(p["cin_p"], p["cout_p"]) for p in params)
    act_rows = Hpad + TL
    est = (act_rows * cin_p0 * 2                         # window scratch
           + 2 * 2 * (TL + Hpad) * cin_p0                # x blocks (2 buffers)
           + 2 * 2 * TL * cout_p_last                    # out block (2 buffers)
           + 2 * wbytes                                  # resident weights
           + 8 * act_rows * cmax * 4)                    # live f32 intermediates
    vmem_limit = int(min(112 * 2 ** 20, max(32 * 2 ** 20, 2 * est)))

    out = pl.pallas_call(
        functools.partial(_tcn_fused_kernel, meta=tuple(meta), TL=TL,
                          Hpad=Hpad, multi=multi),
        out_shape=jax.ShapeDtypeStruct((N, L_pad, cout_p_last), jnp.bfloat16),
        grid=(N, n_t),
        in_specs=in_specs,
        out_specs=pl.BlockSpec((1, TL, cout_p_last), lambda n, t: (n, t, 0)),
        scratch_shapes=[pltpu.VMEM((Hpad + TL, cin_p0), jnp.bfloat16)],
        compiler_params=pltpu.CompilerParams(
            dimension_semantics=("parallel", "parallel"),
            vmem_limit_bytes=vmem_limit),
        cost_estimate=pl.CostEstimate(
            flops=flops, transcendentals=0,
            bytes_accessed=2 * N * L_pad * (cin_p0 + cout_p_last) + wbytes),
    )(*ins)

    out = out[:, :L, :cout_last].astype(jnp.float32)
    return jnp.transpose(out, (0, 2, 1))                 # NLC -> NCL


# ------------------------------- parameters -------------------------------- #
def _weight_norm(v):
    """PyTorch weight_norm over dims != 0; g initialized to ||v|| so w == v."""
    norm = jnp.sqrt(jnp.sum(v ** 2, axis=(1, 2), keepdims=True))
    return norm * v / jnp.maximum(norm, 1e-12)


def init_tcn_params(key, num_inputs, num_channels, kernel_size):
    """Matches TemporalConvNet.__init__/init_weights at initialization.

    Conv weights are stored MXU-ready as (K, Cin_p, Cout_p) bf16 (channels
    zero-padded to multiples of 128); biases are (1, Cout_p) f32.
    """
    params = []
    in_ch = num_inputs
    for i, out_ch in enumerate(num_channels):
        key, k1, k2, k3, kb1, kb2, kb3 = jax.random.split(key, 7)
        K = kernel_size
        cin_p, cout_p = _round_up(in_ch, LANE), _round_up(out_ch, LANE)

        v1 = 0.01 * jax.random.normal(k1, (out_ch, in_ch, K), jnp.float32)
        v2 = 0.01 * jax.random.normal(k2, (out_ch, out_ch, K), jnp.float32)
        w1, w2 = _weight_norm(v1), _weight_norm(v2)
        b1 = jax.random.uniform(kb1, (out_ch,), jnp.float32,
                                -1.0 / np.sqrt(in_ch * K), 1.0 / np.sqrt(in_ch * K))
        b2 = jax.random.uniform(kb2, (out_ch,), jnp.float32,
                                -1.0 / np.sqrt(out_ch * K), 1.0 / np.sqrt(out_ch * K))

        def pack(w, ci, ci_p, co, co_p):      # (co, ci, K) -> (K, ci_p, co_p) bf16
            wp = jnp.zeros((K, ci_p, co_p), jnp.float32)
            wp = wp.at[:, :ci, :co].set(jnp.transpose(w, (2, 1, 0)))
            return wp.astype(jnp.bfloat16)

        def pad_bias(b, co, co_p):
            return jnp.zeros((1, co_p), jnp.float32).at[0, :co].set(b)

        has_down = in_ch != out_ch
        if has_down:
            wd = 0.01 * jax.random.normal(k3, (out_ch, in_ch, 1), jnp.float32)
            bd = jax.random.uniform(kb3, (out_ch,), jnp.float32,
                                    -1.0 / np.sqrt(in_ch), 1.0 / np.sqrt(in_ch))
            wdp = (jnp.zeros((cin_p, cout_p), jnp.float32)
                   .at[:in_ch, :out_ch].set(jnp.transpose(wd[:, :, 0]))
                   .astype(jnp.bfloat16))
            bdp = pad_bias(bd, out_ch, cout_p)
        else:
            wdp, bdp = None, None

        params.append(dict(
            w1=pack(w1, in_ch, cin_p, out_ch, cout_p),
            b1=pad_bias(b1, out_ch, cout_p),
            w2=pack(w2, out_ch, cout_p, out_ch, cout_p),
            b2=pad_bias(b2, out_ch, cout_p),
            wd=wdp, bd=bdp, dilation=2 ** i, K=K, has_down=has_down,
            cin=in_ch, cout=out_ch, cin_p=cin_p, cout_p=cout_p))
        in_ch = out_ch
    return params


# --------------- pure-JAX reference (same bf16 rounding points) ------------ #
def _ref_causal_conv(x, w, b, K, dilation):
    N, L, _ = x.shape
    wf = w.astype(jnp.float32)                 # (K, Ci_p, Co_p)
    out = jnp.broadcast_to(b, (N, L, w.shape[-1])).astype(jnp.float32)
    for j in range(K):
        s = (K - 1 - j) * dilation
        xs = jnp.pad(x, ((0, 0), (s, 0), (0, 0)))[:, :L, :]
        out = out + jnp.einsum("nlc,cd->nld", xs, wf[j])
    return out


def tcn_ref(x_ncl, params):
    x = jnp.transpose(x_ncl, (0, 2, 1)).astype(jnp.float32)
    cin_p = params[0]["cin_p"]
    x = jnp.pad(x, ((0, 0), (0, 0), (0, cin_p - x.shape[-1]))).astype(jnp.bfloat16)
    for p in params:
        xf = x.astype(jnp.float32)
        h1 = jax.nn.relu(_ref_causal_conv(xf, p["w1"], p["b1"], p["K"], p["dilation"]))
        h1 = h1.astype(jnp.bfloat16).astype(jnp.float32)
        h2 = jax.nn.relu(_ref_causal_conv(h1, p["w2"], p["b2"], p["K"], p["dilation"]))
        if p["has_down"]:
            res = jnp.einsum("nlc,cd->nld", xf, p["wd"].astype(jnp.float32)) + p["bd"]
        else:
            res = xf
        x = jax.nn.relu(h2 + res).astype(jnp.bfloat16)
    out = x[:, :, :params[-1]["cout"]].astype(jnp.float32)
    return jnp.transpose(out, (0, 2, 1))


if __name__ == "__main__":
    key = jax.random.PRNGKey(0)
    kx1, kp1, kx2, kp2 = jax.random.split(key, 4)

    # Small test: batch=2, num_inputs=4, L=16, num_channels=[8, 8, 16], K=3.
    # Single time tile; exercises downsample + identity residuals and the
    # zero-padded-history masking at the start of the sequence.
    N, C_in, L = 2, 4, 16
    num_channels = [8, 8, 16]
    x = jax.random.normal(kx1, (N, C_in, L), jnp.float32)
    params = init_tcn_params(kp1, C_in, num_channels, kernel_size=3)
    out = jax.block_until_ready(temporal_conv_net(x, params))
    assert out.shape == (N, num_channels[-1], L), out.shape
    ref = jax.block_until_ready(tcn_ref(x, params))
    np.testing.assert_allclose(np.asarray(out), np.asarray(ref), rtol=2e-2, atol=2e-3)

    # Larger test: exercises the multi-tile causal-halo path (several time
    # tiles per batch element), time padding (L not a tile multiple) and both
    # residual kinds, with the whole 3-layer stack fused in one kernel.
    N2, C2, L2 = 2, 32, 1000
    ch2 = [48, 48, 64]
    x2 = jax.random.normal(kx2, (N2, C2, L2), jnp.float32)
    params2 = init_tcn_params(kp2, C2, ch2, kernel_size=3)
    out2 = jax.block_until_ready(temporal_conv_net(x2, params2))
    assert out2.shape == (N2, ch2[-1], L2), out2.shape
    ref2 = jax.block_until_ready(tcn_ref(x2, params2))
    np.testing.assert_allclose(np.asarray(out2), np.asarray(ref2), rtol=2e-2, atol=2e-3)

    print("KERNEL_OK")
</pallas_src>

<mosaic_0001>
module attributes {stable_mosaic.version = 11 : i64} {
  func.func @_tcn_fused_kernel(%arg0: i32, %arg1: i32, %arg2: memref<1x16x128xbf16, #tpu.memory_space<vmem>>, %arg3: memref<3x128x128xbf16, #tpu.memory_space<vmem>>, %arg4: memref<1x128xf32, #tpu.memory_space<vmem>>, %arg5: memref<3x128x128xbf16, #tpu.memory_space<vmem>>, %arg6: memref<1x128xf32, #tpu.memory_space<vmem>>, %arg7: memref<128x128xbf16, #tpu.memory_space<vmem>>, %arg8: memref<1x128xf32, #tpu.memory_space<vmem>>, %arg9: memref<3x128x128xbf16, #tpu.memory_space<vmem>>, %arg10: memref<1x128xf32, #tpu.memory_space<vmem>>, %arg11: memref<3x128x128xbf16, #tpu.memory_space<vmem>>, %arg12: memref<1x128xf32, #tpu.memory_space<vmem>>, %arg13: memref<3x128x128xbf16, #tpu.memory_space<vmem>>, %arg14: memref<1x128xf32, #tpu.memory_space<vmem>>, %arg15: memref<3x128x128xbf16, #tpu.memory_space<vmem>>, %arg16: memref<1x128xf32, #tpu.memory_space<vmem>>, %arg17: memref<128x128xbf16, #tpu.memory_space<vmem>>, %arg18: memref<1x128xf32, #tpu.memory_space<vmem>>, %arg19: memref<1x16x128xbf16, #tpu.memory_space<vmem>>, %arg20: memref<48x128xbf16, #tpu.memory_space<vmem>>) attributes {dimension_semantics = [#tpu.dimension_semantics<parallel>, #tpu.dimension_semantics<parallel>], iteration_bounds = array<i64: 2, 1>, scalar_prefetch = 0 : i64, scratch_operands = 1 : i64, tpu.core_type = #tpu.core_type<tc>, window_params = [{transform_indices = @transform_0, window_bounds = array<i64: 1, 16, 128>}, {pipeline_mode = #tpu.pipeline_mode<synchronous>, transform_indices = @transform_1, window_bounds = array<i64: 3, 128, 128>}, {pipeline_mode = #tpu.pipeline_mode<synchronous>, transform_indices = @transform_2, window_bounds = array<i64: 1, 128>}, {pipeline_mode = #tpu.pipeline_mode<synchronous>, transform_indices = @transform_3, window_bounds = array<i64: 3, 128, 128>}, {pipeline_mode = #tpu.pipeline_mode<synchronous>, transform_indices = @transform_4, window_bounds = array<i64: 1, 128>}, {pipeline_mode = #tpu.pipeline_mode<synchronous>, transform_indices = @transform_5, window_bounds = array<i64: 128, 128>}, {pipeline_mode = #tpu.pipeline_mode<synchronous>, transform_indices = @transform_6, window_bounds = array<i64: 1, 128>}, {pipeline_mode = #tpu.pipeline_mode<synchronous>, transform_indices = @transform_7, window_bounds = array<i64: 3, 128, 128>}, {pipeline_mode = #tpu.pipeline_mode<synchronous>, transform_indices = @transform_8, window_bounds = array<i64: 1, 128>}, {pipeline_mode = #tpu.pipeline_mode<synchronous>, transform_indices = @transform_9, window_bounds = array<i64: 3, 128, 128>}, {pipeline_mode = #tpu.pipeline_mode<synchronous>, transform_indices = @transform_10, window_bounds = array<i64: 1, 128>}, {pipeline_mode = #tpu.pipeline_mode<synchronous>, transform_indices = @transform_11, window_bounds = array<i64: 3, 128, 128>}, {pipeline_mode = #tpu.pipeline_mode<synchronous>, transform_indices = @transform_12, window_bounds = array<i64: 1, 128>}, {pipeline_mode = #tpu.pipeline_mode<synchronous>, transform_indices = @transform_13, window_bounds = array<i64: 3, 128, 128>}, {pipeline_mode = #tpu.pipeline_mode<synchronous>, transform_indices = @transform_14, window_bounds = array<i64: 1, 128>}, {pipeline_mode = #tpu.pipeline_mode<synchronous>, transform_indices = @transform_15, window_bounds = array<i64: 128, 128>}, {pipeline_mode = #tpu.pipeline_mode<synchronous>, transform_indices = @transform_16, window_bounds = array<i64: 1, 128>}, {transform_indices = @transform_17, window_bounds = array<i64: 1, 16, 128>}]} {
    %c16_i32 = arith.constant 16 : i32
    %0 = arith.muli %arg1, %c16_i32 : i32
    %cst = arith.constant 0.000000e+00 : bf16
    %1 = vector.broadcast %cst : bf16 to vector<32x128xbf16>
    %c0 = arith.constant 0 : index
    %c0_0 = arith.constant 0 : index
    %2 = vector.load %arg20[%c0, %c0_0] : memref<48x128xbf16, #tpu.memory_space<vmem>>, vector<32x128xbf16>
    tpu.vector_store %arg20[%c0, %c0_0], %1 {strides = array<i32>} : memref<48x128xbf16, #tpu.memory_space<vmem>>, vector<32x128xbf16>,
    %c0_1 = arith.constant 0 : index
    %c0_2 = arith.constant 0 : index
    %c0_3 = arith.constant 0 : index
    %3 = vector.load %arg2[%c0_1, %c0_2, %c0_3] : memref<1x16x128xbf16, #tpu.memory_space<vmem>>, vector<1x16x128xbf16>
    %4 = vector.shape_cast %3 : vector<1x16x128xbf16> to vector<16x128xbf16>
    %c32 = arith.constant 32 : index
    %c0_4 = arith.constant 0 : index
    %5 = vector.load %arg20[%c32, %c0_4] : memref<48x128xbf16, #tpu.memory_space<vmem>>, vector<16x128xbf16>
    tpu.vector_store %arg20[%c32, %c0_4], %4 {strides = array<i32>} : memref<48x128xbf16, #tpu.memory_space<vmem>>, vector<16x128xbf16>,
    %c0_5 = arith.constant 0 : index
    %c0_6 = arith.constant 0 : index
    %6 = vector.load %arg4[%c0_5, %c0_6] : memref<1x128xf32, #tpu.memory_space<vmem>>, vector<1x128xf32>
    %7 = vector.shape_cast %6 : vector<1x128xf32> to vector<1x128xf32>
    %8 = vector.broadcast %7 : vector<1x128xf32> to vector<42x128xf32>
    %c4 = arith.constant 4 : index
    %c0_7 = arith.constant 0 : index
    %9 = vector.load %arg20[%c4, %c0_7] : memref<48x128xbf16, #tpu.memory_space<vmem>>, vector<42x128xbf16>
    %c0_8 = arith.constant 0 : index
    %c0_9 = arith.constant 0 : index
    %c0_10 = arith.constant 0 : index
    %10 = vector.load %arg3[%c0_8, %c0_9, %c0_10] : memref<3x128x128xbf16, #tpu.memory_space<vmem>>, vector<1x128x128xbf16>
    %11 = vector.shape_cast %10 : vector<1x128x128xbf16> to vector<128x128xbf16>
    %cst_11 = arith.constant dense<0.000000e+00> : vector<42x128xf32>
    %12 = tpu.matmul %9, %11, %cst_11 {dimension_numbers = #tpu.dot_dimension_numbers<[1], [0], [0], [1], [0, 0, 1, 1], [], []>} : vector<42x128xbf16>, vector<128x128xbf16>, vector<42x128xf32> -> vector<42x128xf32>
    %13 = arith.addf %8, %12 : vector<42x128xf32>
    %c5 = arith.constant 5 : index
    %c0_12 = arith.constant 0 : index
    %14 = vector.load %arg20[%c5, %c0_12] : memref<48x128xbf16, #tpu.memory_space<vmem>>, vector<42x128xbf16>
    %c1 = arith.constant 1 : index
    %c0_13 = arith.constant 0 : index
    %c0_14 = arith.constant 0 : index
    %15 = vector.load %arg3[%c1, %c0_13, %c0_14] : memref<3x128x128xbf16, #tpu.memory_space<vmem>>, vector<1x128x128xbf16>
    %16 = vector.shape_cast %15 : vector<1x128x128xbf16> to vector<128x128xbf16>
    %cst_15 = arith.constant dense<0.000000e+00> : vector<42x128xf32>
    %17 = tpu.matmul %14, %16, %cst_15 {dimension_numbers = #tpu.dot_dimension_numbers<[1], [0], [0], [1], [0, 0, 1, 1], [], []>} : vector<42x128xbf16>, vector<128x128xbf16>, vector<42x128xf32> -> vector<42x128xf32>
    %18 = arith.addf %13, %17 : vector<42x128xf32>
    %c6 = arith.constant 6 : index
    %c0_16 = arith.constant 0 : index
    %19 = vector.load %arg20[%c6, %c0_16] : memref<48x128xbf16, #tpu.memory_space<vmem>>, vector<42x128xbf16>
    %c2 = arith.constant 2 : index
    %c0_17 = arith.constant 0 : index
    %c0_18 = arith.constant 0 : index
    %20 = vector.load %arg3[%c2, %c0_17, %c0_18] : memref<3x128x128xbf16, #tpu.memory_space<vmem>>, vector<1x128x128xbf16>
    %21 = vector.shape_cast %20 : vector<1x128x128xbf16> to vector<128x128xbf16>
    %cst_19 = arith.constant dense<0.000000e+00> : vector<42x128xf32>
    %22 = tpu.matmul %19, %21, %cst_19 {dimension_numbers = #tpu.dot_dimension_numbers<[1], [0], [0], [1], [0, 0, 1, 1], [], []>} : vector<42x128xbf16>, vector<128x128xbf16>, vector<42x128xf32> -> vector<42x128xf32>
    %23 = arith.addf %18, %22 : vector<42x128xf32>
    %cst_20 = arith.constant 0.000000e+00 : f32
    %24 = vector.broadcast %cst_20 : f32 to vector<42x128xf32>
    %25 = arith.maximumf %23, %24 : vector<42x128xf32>
    %c26_i32 = arith.constant 26 : i32
    %26 = arith.subi %c26_i32, %0 : i32
    %27 = tpu.iota {dimensions = array<i32: 0>} : vector<42x1xi32>
    %28 = vector.broadcast %26 : i32 to vector<42x1xi32>
    %29 = arith.cmpi slt, %27, %28 : vector<42x1xi32>
    %cst_21 = arith.constant 0.000000e+00 : f32
    %30 = vector.broadcast %cst_21 : f32 to vector<42x128xf32>
    %31 = vector.shape_cast %29 : vector<42x1xi1> to vector<42x1xi1>
    %32 = vector.broadcast %31 : vector<42x1xi1> to vector<42x128xi1>
    %33 = arith.select %32, %30, %25 : vector<42x128xi1>, vector<42x128xf32>
    %34 = arith.truncf %33 : vector<42x128xf32> to vector<42x128xbf16>
    %c0_22 = arith.constant 0 : index
    %c0_23 = arith.constant 0 : index
    %35 = vector.load %arg6[%c0_22, %c0_23] : memref<1x128xf32, #tpu.memory_space<vmem>>, vector<1x128xf32>
    %36 = vector.shape_cast %35 : vector<1x128xf32> to vector<1x128xf32>
    %37 = vector.broadcast %36 : vector<1x128xf32> to vector<40x128xf32>
    %38 = vector.extract_strided_slice %34 {offsets = [0, 0], sizes = [40, 128], strides = [1, 1]} : vector<42x128xbf16> to vector<40x128xbf16>
    %c0_24 = arith.constant 0 : index
    %c0_25 = arith.constant 0 : index
    %c0_26 = arith.constant 0 : index
    %39 = vector.load %arg5[%c0_24, %c0_25, %c0_26] : memref<3x128x128xbf16, #tpu.memory_space<vmem>>, vector<1x128x128xbf16>
    %40 = vector.shape_cast %39 : vector<1x128x128xbf16> to vector<128x128xbf16>
    %cst_27 = arith.constant dense<0.000000e+00> : vector<40x128xf32>
    %41 = tpu.matmul %38, %40, %cst_27 {dimension_numbers = #tpu.dot_dimension_numbers<[1], [0], [0], [1], [0, 0, 1, 1], [], []>} : vector<40x128xbf16>, vector<128x128xbf16>, vector<40x128xf32> -> vector<40x128xf32>
    %42 = arith.addf %37, %41 : vector<40x128xf32>
    %43 = vector.extract_strided_slice %34 {offsets = [1, 0], sizes = [40, 128], strides = [1, 1]} : vector<42x128xbf16> to vector<40x128xbf16>
    %c1_28 = arith.constant 1 : index
    %c0_29 = arith.constant 0 : index
    %c0_30 = arith.constant 0 : index
    %44 = vector.load %arg5[%c1_28, %c0_29, %c0_30] : memref<3x128x128xbf16, #tpu.memory_space<vmem>>, vector<1x128x128xbf16>
    %45 = vector.shape_cast %44 : vector<1x128x128xbf16> to vector<128x128xbf16>
    %cst_31 = arith.constant dense<0.000000e+00> : vector<40x128xf32>
    %46 = tpu.matmul %43, %45, %cst_31 {dimension_numbers = #tpu.dot_dimension_numbers<[1], [0], [0], [1], [0, 0, 1, 1], [], []>} : vector<40x128xbf16>, vector<128x128xbf16>, vector<40x128xf32> -> vector<40x128xf32>
    %47 = arith.addf %42, %46 : vector<40x128xf32>
    %48 = vector.extract_strided_slice %34 {offsets = [2, 0], sizes = [40, 128], strides = [1, 1]} : vector<42x128xbf16> to vector<40x128xbf16>
    %c2_32 = arith.constant 2 : index
    %c0_33 = arith.constant 0 : index
    %c0_34 = arith.constant 0 : index
    %49 = vector.load %arg5[%c2_32, %c0_33, %c0_34] : memref<3x128x128xbf16, #tpu.memory_space<vmem>>, vector<1x128x128xbf16>
    %50 = vector.shape_cast %49 : vector<1x128x128xbf16> to vector<128x128xbf16>
    %cst_35 = arith.constant dense<0.000000e+00> : vector<40x128xf32>
    %51 = tpu.matmul %48, %50, %cst_35 {dimension_numbers = #tpu.dot_dimension_numbers<[1], [0], [0], [1], [0, 0, 1, 1], [], []>} : vector<40x128xbf16>, vector<128x128xbf16>, vector<40x128xf32> -> vector<40x128xf32>
    %52 = arith.addf %47, %51 : vector<40x128xf32>
    %cst_36 = arith.constant 0.000000e+00 : f32
    %53 = vector.broadcast %cst_36 : f32 to vector<40x128xf32>
    %54 = arith.maximumf %52, %53 : vector<40x128xf32>
    %c8 = arith.constant 8 : index
    %c0_37 = arith.constant 0 : index
    %55 = vector.load %arg20[%c8, %c0_37] : memref<48x128xbf16, #tpu.memory_space<vmem>>, vector<40x128xbf16>
    %c0_38 = arith.constant 0 : index
    %c0_39 = arith.constant 0 : index
    %56 = vector.load %arg7[%c0_38, %c0_39] : memref<128x128xbf16, #tpu.memory_space<vmem>>, vector<128x128xbf16>
    %cst_40 = arith.constant dense<0.000000e+00> : vector<40x128xf32>
    %57 = tpu.matmul %55, %56, %cst_40 {dimension_numbers = #tpu.dot_dimension_numbers<[1], [0], [0], [1], [0, 0, 1, 1], [], []>} : vector<40x128xbf16>, vector<128x128xbf16>, vector<40x128xf32> -> vector<40x128xf32>
    %c0_41 = arith.constant 0 : index
    %c0_42 = arith.constant 0 : index
    %58 = vector.load %arg8[%c0_41, %c0_42] : memref<1x128xf32, #tpu.memory_space<vmem>>, vector<1x128xf32>
    %59 = vector.broadcast %58 : vector<1x128xf32> to vector<40x128xf32>
    %60 = arith.addf %57, %59 : vector<40x128xf32>
    %61 = arith.addf %54, %60 : vector<40x128xf32>
    %cst_43 = arith.constant 0.000000e+00 : f32
    %62 = vector.broadcast %cst_43 : f32 to vector<40x128xf32>
    %63 = arith.maximumf %61, %62 : vector<40x128xf32>
    %c24_i32 = arith.constant 24 : i32
    %64 = arith.subi %c24_i32, %0 : i32
    %65 = tpu.iota {dimensions = array<i32: 0>} : vector<40x1xi32>
    %66 = vector.broadcast %64 : i32 to vector<40x1xi32>
    %67 = arith.cmpi slt, %65, %66 : vector<40x1xi32>
    %cst_44 = arith.constant 0.000000e+00 : f32
    %68 = vector.broadcast %cst_44 : f32 to vector<40x128xf32>
    %69 = vector.shape_cast %67 : vector<40x1xi1> to vector<40x1xi1>
    %70 = vector.broadcast %69 : vector<40x1xi1> to vector<40x128xi1>
    %71 = arith.select %70, %68, %63 : vector<40x128xi1>, vector<40x128xf32>
    %72 = arith.truncf %71 : vector<40x128xf32> to vector<40x128xbf16>
    %c0_45 = arith.constant 0 : index
    %c0_46 = arith.constant 0 : index
    %73 = vector.load %arg10[%c0_45, %c0_46] : memref<1x128xf32, #tpu.memory_space<vmem>>, vector<1x128xf32>
    %74 = vector.shape_cast %73 : vector<1x128xf32> to vector<1x128xf32>
    %75 = vector.broadcast %74 : vector<1x128xf32> to vector<36x128xf32>
    %76 = vector.extract_strided_slice %72 {offsets = [0, 0], sizes = [36, 128], strides = [1, 1]} : vector<40x128xbf16> to vector<36x128xbf16>
    %c0_47 = arith.constant 0 : index
    %c0_48 = arith.constant 0 : index
    %c0_49 = arith.constant 0 : index
    %77 = vector.load %arg9[%c0_47, %c0_48, %c0_49] : memref<3x128x128xbf16, #tpu.memory_space<vmem>>, vector<1x128x128xbf16>
    %78 = vector.shape_cast %77 : vector<1x128x128xbf16> to vector<128x128xbf16>
    %cst_50 = arith.constant dense<0.000000e+00> : vector<36x128xf32>
    %79 = tpu.matmul %76, %78, %cst_50 {dimension_numbers = #tpu.dot_dimension_numbers<[1], [0], [0], [1], [0, 0, 1, 1], [], []>} : vector<36x128xbf16>, vector<128x128xbf16>, vector<36x128xf32> -> vector<36x128xf32>
    %80 = arith.addf %75, %79 : vector<36x128xf32>
    %81 = vector.extract_strided_slice %72 {offsets = [2, 0], sizes = [36, 128], strides = [1, 1]} : vector<40x128xbf16> to vector<36x128xbf16>
    %c1_51 = arith.constant 1 : index
    %c0_52 = arith.constant 0 : index
    %c0_53 = arith.constant 0 : index
    %82 = vector.load %arg9[%c1_51, %c0_52, %c0_53] : memref<3x128x128xbf16, #tpu.memory_space<vmem>>, vector<1x128x128xbf16>
    %83 = vector.shape_cast %82 : vector<1x128x128xbf16> to vector<128x128xbf16>
    %cst_54 = arith.constant dense<0.000000e+00> : vector<36x128xf32>
    %84 = tpu.matmul %81, %83, %cst_54 {dimension_numbers = #tpu.dot_dimension_numbers<[1], [0], [0], [1], [0, 0, 1, 1], [], []>} : vector<36x128xbf16>, vector<128x128xbf16>, vector<36x128xf32> -> vector<36x128xf32>
    %85 = arith.addf %80, %84 : vector<36x128xf32>
    %86 = vector.extract_strided_slice %72 {offsets = [4, 0], sizes = [36, 128], strides = [1, 1]} : vector<40x128xbf16> to vector<36x128xbf16>
    %c2_55 = arith.constant 2 : index
    %c0_56 = arith.constant 0 : index
    %c0_57 = arith.constant 0 : index
    %87 = vector.load %arg9[%c2_55, %c0_56, %c0_57] : memref<3x128x128xbf16, #tpu.memory_space<vmem>>, vector<1x128x128xbf16>
    %88 = vector.shape_cast %87 : vector<1x128x128xbf16> to vector<128x128xbf16>
    %cst_58 = arith.constant dense<0.000000e+00> : vector<36x128xf32>
    %89 = tpu.matmul %86, %88, %cst_58 {dimension_numbers = #tpu.dot_dimension_numbers<[1], [0], [0], [1], [0, 0, 1, 1], [], []>} : vector<36x128xbf16>, vector<128x128xbf16>, vector<36x128xf32> -> vector<36x128xf32>
    %90 = arith.addf %85, %89 : vector<36x128xf32>
    %cst_59 = arith.constant 0.000000e+00 : f32
    %91 = vector.broadcast %cst_59 : f32 to vector<36x128xf32>
    %92 = arith.maximumf %90, %91 : vector<36x128xf32>
    %c20_i32 = arith.constant 20 : i32
    %93 = arith.subi %c20_i32, %0 : i32
    %94 = tpu.iota {dimensions = array<i32: 0>} : vector<36x1xi32>
    %95 = vector.broadcast %93 : i32 to vector<36x1xi32>
    %96 = arith.cmpi slt, %94, %95 : vector<36x1xi32>
    %cst_60 = arith.constant 0.000000e+00 : f32
    %97 = vector.broadcast %cst_60 : f32 to vector<36x128xf32>
    %98 = vector.shape_cast %96 : vector<36x1xi1> to vector<36x1xi1>
    %99 = vector.broadcast %98 : vector<36x1xi1> to vector<36x128xi1>
    %100 = arith.select %99, %97, %92 : vector<36x128xi1>, vector<36x128xf32>
    %101 = arith.truncf %100 : vector<36x128xf32> to vector<36x128xbf16>
    %c0_61 = arith.constant 0 : index
    %c0_62 = arith.constant 0 : index
    %102 = vector.load %arg12[%c0_61, %c0_62] : memref<1x128xf32, #tpu.memory_space<vmem>>, vector<1x128xf32>
    %103 = vector.shape_cast %102 : vector<1x128xf32> to vector<1x128xf32>
    %104 = vector.broadcast %103 : vector<1x128xf32> to vector<32x128xf32>
    %105 = vector.extract_strided_slice %101 {offsets = [0, 0], sizes = [32, 128], strides = [1, 1]} : vector<36x128xbf16> to vector<32x128xbf16>
    %c0_63 = arith.constant 0 : index
    %c0_64 = arith.constant 0 : index
    %c0_65 = arith.constant 0 : index
    %106 = vector.load %arg11[%c0_63, %c0_64, %c0_65] : memref<3x128x128xbf16, #tpu.memory_space<vmem>>, vector<1x128x128xbf16>
    %107 = vector.shape_cast %106 : vector<1x128x128xbf16> to vector<128x128xbf16>
    %cst_66 = arith.constant dense<0.000000e+00> : vector<32x128xf32>
    %108 = tpu.matmul %105, %107, %cst_66 {dimension_numbers = #tpu.dot_dimension_numbers<[1], [0], [0], [1], [0, 0, 1, 1], [], []>} : vector<32x128xbf16>, vector<128x128xbf16>, vector<32x128xf32> -> vector<32x128xf32>
    %109 = arith.addf %104, %108 : vector<32x128xf32>
    %110 = vector.extract_strided_slice %101 {offsets = [2, 0], sizes = [32, 128], strides = [1, 1]} : vector<36x128xbf16> to vector<32x128xbf16>
    %c1_67 = arith.constant 1 : index
    %c0_68 = arith.constant 0 : index
    %c0_69 = arith.constant 0 : index
    %111 = vector.load %arg11[%c1_67, %c0_68, %c0_69] : memref<3x128x128xbf16, #tpu.memory_space<vmem>>, vector<1x128x128xbf16>
    %112 = vector.shape_cast %111 : vector<1x128x128xbf16> to vector<128x128xbf16>
    %cst_70 = arith.constant dense<0.000000e+00> : vector<32x128xf32>
    %113 = tpu.matmul %110, %112, %cst_70 {dimension_numbers = #tpu.dot_dimension_numbers<[1], [0], [0], [1], [0, 0, 1, 1], [], []>} : vector<32x128xbf16>, vector<128x128xbf16>, vector<32x128xf32> -> vector<32x128xf32>
    %114 = arith.addf %109, %113 : vector<32x128xf32>
    %115 = vector.extract_strided_slice %101 {offsets = [4, 0], sizes = [32, 128], strides = [1, 1]} : vector<36x128xbf16> to vector<32x128xbf16>
    %c2_71 = arith.constant 2 : index
    %c0_72 = arith.constant 0 : index
    %c0_73 = arith.constant 0 : index
    %116 = vector.load %arg11[%c2_71, %c0_72, %c0_73] : memref<3x128x128xbf16, #tpu.memory_space<vmem>>, vector<1x128x128xbf16>
    %117 = vector.shape_cast %116 : vector<1x128x128xbf16> to vector<128x128xbf16>
    %cst_74 = arith.constant dense<0.000000e+00> : vector<32x128xf32>
    %118 = tpu.matmul %115, %117, %cst_74 {dimension_numbers = #tpu.dot_dimension_numbers<[1], [0], [0], [1], [0, 0, 1, 1], [], []>} : vector<32x128xbf16>, vector<128x128xbf16>, vector<32x128xf32> -> vector<32x128xf32>
    %119 = arith.addf %114, %118 : vector<32x128xf32>
    %cst_75 = arith.constant 0.000000e+00 : f32
    %120 = vector.broadcast %cst_75 : f32 to vector<32x128xf32>
    %121 = arith.maximumf %119, %120 : vector<32x128xf32>
    %122 = vector.extract_strided_slice %72 {offsets = [8, 0], sizes = [32, 128], strides = [1, 1]} : vector<40x128xbf16> to vector<32x128xbf16>
    %123 = arith.extf %122 : vector<32x128xbf16> to vector<32x128xf32>
    %124 = arith.addf %121, %123 : vector<32x128xf32>
    %cst_76 = arith.constant 0.000000e+00 : f32
    %125 = vector.broadcast %cst_76 : f32 to vector<32x128xf32>
    %126 = arith.maximumf %124, %125 : vector<32x128xf32>
    %c16_i32_77 = arith.constant 16 : i32
    %127 = arith.subi %c16_i32_77, %0 : i32
    %128 = tpu.iota {dimensions = array<i32: 0>} : vector<32x1xi32>
    %129 = vector.broadcast %127 : i32 to vector<32x1xi32>
    %130 = arith.cmpi slt, %128, %129 : vector<32x1xi32>
    %cst_78 = arith.constant 0.000000e+00 : f32
    %131 = vector.broadcast %cst_78 : f32 to vector<32x128xf32>
    %132 = vector.shape_cast %130 : vector<32x1xi1> to vector<32x1xi1>
    %133 = vector.broadcast %132 : vector<32x1xi1> to vector<32x128xi1>
    %134 = arith.select %133, %131, %126 : vector<32x128xi1>, vector<32x128xf32>
    %135 = arith.truncf %134 : vector<32x128xf32> to vector<32x128xbf16>
    %c0_79 = arith.constant 0 : index
    %c0_80 = arith.constant 0 : index
    %136 = vector.load %arg14[%c0_79, %c0_80] : memref<1x128xf32, #tpu.memory_space<vmem>>, vector<1x128xf32>
    %137 = vector.shape_cast %136 : vector<1x128xf32> to vector<1x128xf32>
    %138 = vector.broadcast %137 : vector<1x128xf32> to vector<24x128xf32>
    %139 = vector.extract_strided_slice %135 {offsets = [0, 0], sizes = [24, 128], strides = [1, 1]} : vector<32x128xbf16> to vector<24x128xbf16>
    %c0_81 = arith.constant 0 : index
    %c0_82 = arith.constant 0 : index
    %c0_83 = arith.constant 0 : index
    %140 = vector.load %arg13[%c0_81, %c0_82, %c0_83] : memref<3x128x128xbf16, #tpu.memory_space<vmem>>, vector<1x128x128xbf16>
    %141 = vector.shape_cast %140 : vector<1x128x128xbf16> to vector<128x128xbf16>
    %cst_84 = arith.constant dense<0.000000e+00> : vector<24x128xf32>
    %142 = tpu.matmul %139, %141, %cst_84 {dimension_numbers = #tpu.dot_dimension_numbers<[1], [0], [0], [1], [0, 0, 1, 1], [], []>} : vector<24x128xbf16>, vector<128x128xbf16>, vector<24x128xf32> -> vector<24x128xf32>
    %143 = arith.addf %138, %142 : vector<24x128xf32>
    %144 = vector.extract_strided_slice %135 {offsets = [4, 0], sizes = [24, 128], strides = [1, 1]} : vector<32x128xbf16> to vector<24x128xbf16>
    %c1_85 = arith.constant 1 : index
    %c0_86 = arith.constant 0 : index
    %c0_87 = arith.constant 0 : index
    %145 = vector.load %arg13[%c1_85, %c0_86, %c0_87] : memref<3x128x128xbf16, #tpu.memory_space<vmem>>, vector<1x128x128xbf16>
    %146 = vector.shape_cast %145 : vector<1x128x128xbf16> to vector<128x128xbf16>
    %cst_88 = arith.constant dense<0.000000e+00> : vector<24x128xf32>
    %147 = tpu.matmul %144, %146, %cst_88 {dimension_numbers = #tpu.dot_dimension_numbers<[1], [0], [0], [1], [0, 0, 1, 1], [], []>} : vector<24x128xbf16>, vector<128x128xbf16>, vector<24x128xf32> -> vector<24x128xf32>
    %148 = arith.addf %143, %147 : vector<24x128xf32>
    %149 = vector.extract_strided_slice %135 {offsets = [8, 0], sizes = [24, 128], strides = [1, 1]} : vector<32x128xbf16> to vector<24x128xbf16>
    %c2_89 = arith.constant 2 : index
    %c0_90 = arith.constant 0 : index
    %c0_91 = arith.constant 0 : index
    %150 = vector.load %arg13[%c2_89, %c0_90, %c0_91] : memref<3x128x128xbf16, #tpu.memory_space<vmem>>, vector<1x128x128xbf16>
    %151 = vector.shape_cast %150 : vector<1x128x128xbf16> to vector<128x128xbf16>
    %cst_92 = arith.constant dense<0.000000e+00> : vector<24x128xf32>
    %152 = tpu.matmul %149, %151, %cst_92 {dimension_numbers = #tpu.dot_dimension_numbers<[1], [0], [0], [1], [0, 0, 1, 1], [], []>} : vector<24x128xbf16>, vector<128x128xbf16>, vector<24x128xf32> -> vector<24x128xf32>
    %153 = arith.addf %148, %152 : vector<24x128xf32>
    %cst_93 = arith.constant 0.000000e+00 : f32
    %154 = vector.broadcast %cst_93 : f32 to vector<24x128xf32>
    %155 = arith.maximumf %153, %154 : vector<24x128xf32>
    %c8_i32 = arith.constant 8 : i32
    %156 = arith.subi %c8_i32, %0 : i32
    %157 = tpu.iota {dimensions = array<i32: 0>} : vector<24x1xi32>
    %158 = vector.broadcast %156 : i32 to vector<24x1xi32>
    %159 = arith.cmpi slt, %157, %158 : vector<24x1xi32>
    %cst_94 = arith.constant 0.000000e+00 : f32
    %160 = vector.broadcast %cst_94 : f32 to vector<24x128xf32>
    %161 = vector.shape_cast %159 : vector<24x1xi1> to vector<24x1xi1>
    %162 = vector.broadcast %161 : vector<24x1xi1> to vector<24x128xi1>
    %163 = arith.select %162, %160, %155 : vector<24x128xi1>, vector<24x128xf32>
    %164 = arith.truncf %163 : vector<24x128xf32> to vector<24x128xbf16>
    %c0_95 = arith.constant 0 : index
    %c0_96 = arith.constant 0 : index
    %165 = vector.load %arg16[%c0_95, %c0_96] : memref<1x128xf32, #tpu.memory_space<vmem>>, vector<1x128xf32>
    %166 = vector.shape_cast %165 : vector<1x128xf32> to vector<1x128xf32>
    %167 = vector.broadcast %166 : vector<1x128xf32> to vector<16x128xf32>
    %168 = vector.extract_strided_slice %164 {offsets = [0, 0], sizes = [16, 128], strides = [1, 1]} : vector<24x128xbf16> to vector<16x128xbf16>
    %c0_97 = arith.constant 0 : index
    %c0_98 = arith.constant 0 : index
    %c0_99 = arith.constant 0 : index
    %169 = vector.load %arg15[%c0_97, %c0_98, %c0_99] : memref<3x128x128xbf16, #tpu.memory_space<vmem>>, vector<1x128x128xbf16>
    %170 = vector.shape_cast %169 : vector<1x128x128xbf16> to vector<128x128xbf16>
    %cst_100 = arith.constant dense<0.000000e+00> : vector<16x128xf32>
    %171 = tpu.matmul %168, %170, %cst_100 {dimension_numbers = #tpu.dot_dimension_numbers<[1], [0], [0], [1], [0, 0, 1, 1], [], []>} : vector<16x128xbf16>, vector<128x128xbf16>, vector<16x128xf32> -> vector<16x128xf32>
    %172 = arith.addf %167, %171 : vector<16x128xf32>
    %173 = vector.extract_strided_slice %164 {offsets = [4, 0], sizes = [16, 128], strides = [1, 1]} : vector<24x128xbf16> to vector<16x128xbf16>
    %c1_101 = arith.constant 1 : index
    %c0_102 = arith.constant 0 : index
    %c0_103 = arith.constant 0 : index
    %174 = vector.load %arg15[%c1_101, %c0_102, %c0_103] : memref<3x128x128xbf16, #tpu.memory_space<vmem>>, vector<1x128x128xbf16>
    %175 = vector.shape_cast %174 : vector<1x128x128xbf16> to vector<128x128xbf16>
    %cst_104 = arith.constant dense<0.000000e+00> : vector<16x128xf32>
    %176 = tpu.matmul %173, %175, %cst_104 {dimension_numbers = #tpu.dot_dimension_numbers<[1], [0], [0], [1], [0, 0, 1, 1], [], []>} : vector<16x128xbf16>, vector<128x128xbf16>, vector<16x128xf32> -> vector<16x128xf32>
    %177 = arith.addf %172, %176 : vector<16x128xf32>
    %178 = vector.extract_strided_slice %164 {offsets = [8, 0], sizes = [16, 128], strides = [1, 1]} : vector<24x128xbf16> to vector<16x128xbf16>
    %c2_105 = arith.constant 2 : index
    %c0_106 = arith.constant 0 : index
    %c0_107 = arith.constant 0 : index
    %179 = vector.load %arg15[%c2_105, %c0_106, %c0_107] : memref<3x128x128xbf16, #tpu.memory_space<vmem>>, vector<1x128x128xbf16>
    %180 = vector.shape_cast %179 : vector<1x128x128xbf16> to vector<128x128xbf16>
    %cst_108 = arith.constant dense<0.000000e+00> : vector<16x128xf32>
    %181 = tpu.matmul %178, %180, %cst_108 {dimension_numbers = #tpu.dot_dimension_numbers<[1], [0], [0], [1], [0, 0, 1, 1], [], []>} : vector<16x128xbf16>, vector<128x128xbf16>, vector<16x128xf32> -> vector<16x128xf32>
    %182 = arith.addf %177, %181 : vector<16x128xf32>
    %cst_109 = arith.constant 0.000000e+00 : f32
    %183 = vector.broadcast %cst_109 : f32 to vector<16x128xf32>
    %184 = arith.maximumf %182, %183 : vector<16x128xf32>
    %185 = vector.extract_strided_slice %135 {offsets = [16, 0], sizes = [16, 128], strides = [1, 1]} : vector<32x128xbf16> to vector<16x128xbf16>
    %c0_110 = arith.constant 0 : index
    %c0_111 = arith.constant 0 : index
    %186 = vector.load %arg17[%c0_110, %c0_111] : memref<128x128xbf16, #tpu.memory_space<vmem>>, vector<128x128xbf16>
    %cst_112 = arith.constant dense<0.000000e+00> : vector<16x128xf32>
    %187 = tpu.matmul %185, %186, %cst_112 {dimension_numbers = #tpu.dot_dimension_numbers<[1], [0], [0], [1], [0, 0, 1, 1], [], []>} : vector<16x128xbf16>, vector<128x128xbf16>, vector<16x128xf32> -> vector<16x128xf32>
    %c0_113 = arith.constant 0 : index
    %c0_114 = arith.constant 0 : index
    %188 = vector.load %arg18[%c0_113, %c0_114] : memref<1x128xf32, #tpu.memory_space<vmem>>, vector<1x128xf32>
    %189 = vector.broadcast %188 : vector<1x128xf32> to vector<16x128xf32>
    %190 = arith.addf %187, %189 : vector<16x128xf32>
    %191 = arith.addf %184, %190 : vector<16x128xf32>
    %cst_115 = arith.constant 0.000000e+00 : f32
    %192 = vector.broadcast %cst_115 : f32 to vector<16x128xf32>
    %193 = arith.maximumf %191, %192 : vector<16x128xf32>
    %194 = arith.truncf %193 : vector<16x128xf32> to vector<16x128xbf16>
    %c0_116 = arith.constant 0 : index
    %c0_117 = arith.constant 0 : index
    %c0_118 = arith.constant 0 : index
    %195 = vector.load %arg19[%c0_116, %c0_117, %c0_118] : memref<1x16x128xbf16, #tpu.memory_space<vmem>>, vector<1x16x128xbf16>
    %196 = vector.shape_cast %195 : vector<1x16x128xbf16> to vector<16x128xbf16>
    %197 = vector.shape_cast %194 : vector<16x128xbf16> to vector<1x16x128xbf16>
    tpu.vector_store %arg19[%c0_116, %c0_117, %c0_118], %197 {strides = array<i32>} : memref<1x16x128xbf16, #tpu.memory_space<vmem>>, vector<1x16x128xbf16>,
    return
  }
  func.func @transform_0(%arg0: i32, %arg1: i32) -> (i32, i32, i32) {
    %c0_i32 = arith.constant 0 : i32
    %c0_i32_0 = arith.constant 0 : i32
    return %arg0, %arg1, %c0_i32 : i32, i32, i32
  }
  func.func @transform_1(%arg0: i32, %arg1: i32) -> (i32, i32, i32) {
    %c0_i32 = arith.constant 0 : i32
    %c0_i32_0 = arith.constant 0 : i32
    %c0_i32_1 = arith.constant 0 : i32
    %c0_i32_2 = arith.constant 0 : i32
    return %c0_i32, %c0_i32_0, %c0_i32_1 : i32, i32, i32
  }
  func.func @transform_2(%arg0: i32, %arg1: i32) -> (i32, i32) {
    %c0_i32 = arith.constant 0 : i32
    %c0_i32_0 = arith.constant 0 : i32
    %c0_i32_1 = arith.constant 0 : i32
    return %c0_i32, %c0_i32_0 : i32, i32
  }
  func.func @transform_3(%arg0: i32, %arg1: i32) -> (i32, i32, i32) {
    %c0_i32 = arith.constant 0 : i32
    %c0_i32_0 = arith.constant 0 : i32
    %c0_i32_1 = arith.constant 0 : i32
    %c0_i32_2 = arith.constant 0 : i32
    return %c0_i32, %c0_i32_0, %c0_i32_1 : i32, i32, i32
  }
  func.func @transform_4(%arg0: i32, %arg1: i32) -> (i32, i32) {
    %c0_i32 = arith.constant 0 : i32
    %c0_i32_0 = arith.constant 0 : i32
    %c0_i32_1 = arith.constant 0 : i32
    return %c0_i32, %c0_i32_0 : i32, i32
  }
  func.func @transform_5(%arg0: i32, %arg1: i32) -> (i32, i32) {
    %c0_i32 = arith.constant 0 : i32
    %c0_i32_0 = arith.constant 0 : i32
    %c0_i32_1 = arith.constant 0 : i32
    return %c0_i32, %c0_i32_0 : i32, i32
  }
  func.func @transform_6(%arg0: i32, %arg1: i32) -> (i32, i32) {
    %c0_i32 = arith.constant 0 : i32
    %c0_i32_0 = arith.constant 0 : i32
    %c0_i32_1 = arith.constant 0 : i32
    return %c0_i32, %c0_i32_0 : i32, i32
  }
  func.func @transform_7(%arg0: i32, %arg1: i32) -> (i32, i32, i32) {
    %c0_i32 = arith.constant 0 : i32
    %c0_i32_0 = arith.constant 0 : i32
    %c0_i32_1 = arith.constant 0 : i32
    %c0_i32_2 = arith.constant 0 : i32
    return %c0_i32, %c0_i32_0, %c0_i32_1 : i32, i32, i32
  }
  func.func @transform_8(%arg0: i32, %arg1: i32) -> (i32, i32) {
    %c0_i32 = arith.constant 0 : i32
    %c0_i32_0 = arith.constant 0 : i32
    %c0_i32_1 = arith.constant 0 : i32
    return %c0_i32, %c0_i32_0 : i32, i32
  }
  func.func @transform_9(%arg0: i32, %arg1: i32) -> (i32, i32, i32) {
    %c0_i32 = arith.constant 0 : i32
    %c0_i32_0 = arith.constant 0 : i32
    %c0_i32_1 = arith.constant 0 : i32
    %c0_i32_2 = arith.constant 0 : i32
    return %c0_i32, %c0_i32_0, %c0_i32_1 : i32, i32, i32
  }
  func.func @transform_10(%arg0: i32, %arg1: i32) -> (i32, i32) {
    %c0_i32 = arith.constant 0 : i32
    %c0_i32_0 = arith.constant 0 : i32
    %c0_i32_1 = arith.constant 0 : i32
    return %c0_i32, %c0_i32_0 : i32, i32
  }
  func.func @transform_11(%arg0: i32, %arg1: i32) -> (i32, i32, i32) {
    %c0_i32 = arith.constant 0 : i32
    %c0_i32_0 = arith.constant 0 : i32
    %c0_i32_1 = arith.constant 0 : i32
    %c0_i32_2 = arith.constant 0 : i32
    return %c0_i32, %c0_i32_0, %c0_i32_1 : i32, i32, i32
  }
  func.func @transform_12(%arg0: i32, %arg1: i32) -> (i32, i32) {
    %c0_i32 = arith.constant 0 : i32
    %c0_i32_0 = arith.constant 0 : i32
    %c0_i32_1 = arith.constant 0 : i32
    return %c0_i32, %c0_i32_0 : i32, i32
  }
  func.func @transform_13(%arg0: i32, %arg1: i32) -> (i32, i32, i32) {
    %c0_i32 = arith.constant 0 : i32
    %c0_i32_0 = arith.constant 0 : i32
    %c0_i32_1 = arith.constant 0 : i32
    %c0_i32_2 = arith.constant 0 : i32
    return %c0_i32, %c0_i32_0, %c0_i32_1 : i32, i32, i32
  }
  func.func @transform_14(%arg0: i32, %arg1: i32) -> (i32, i32) {
    %c0_i32 = arith.constant 0 : i32
    %c0_i32_0 = arith.constant 0 : i32
    %c0_i32_1 = arith.constant 0 : i32
    return %c0_i32, %c0_i32_0 : i32, i32
  }
  func.func @transform_15(%arg0: i32, %arg1: i32) -> (i32, i32) {
    %c0_i32 = arith.constant 0 : i32
    %c0_i32_0 = arith.constant 0 : i32
    %c0_i32_1 = arith.constant 0 : i32
    return %c0_i32, %c0_i32_0 : i32, i32
  }
  func.func @transform_16(%arg0: i32, %arg1: i32) -> (i32, i32) {
    %c0_i32 = arith.constant 0 : i32
    %c0_i32_0 = arith.constant 0 : i32
    %c0_i32_1 = arith.constant 0 : i32
    return %c0_i32, %c0_i32_0 : i32, i32
  }
  func.func @transform_17(%arg0: i32, %arg1: i32) -> (i32, i32, i32) {
    %c0_i32 = arith.constant 0 : i32
    %c0_i32_0 = arith.constant 0 : i32
    return %arg0, %arg1, %c0_i32 : i32, i32, i32
  }
}

</mosaic_0001>

<llo_original>
// kernel: tpu_custom_call.1
$region0: #{tpu_custom_call.1}
  #allocation0 [shape = 'u32[]', space=smem, size = 0x4, offset = 0x4, fixed_abs, tag = 'smem constant byte address 0x4 - core index']
  #allocation1 [shape = 'u32[144,128]{1,0:T(1,128)}', space=vmem, size = 0x12000, scoped, tag = 'internal scratch']
  #allocation2 [shape = 'bf16[48,128]{1,0:T(16,128)(2,1)}', space=vmem, size = 0x3000, scoped, tag = 'scratch operand']
  %s0 = inlined_call_operand.hbm [shape: bf16[2,16,128], index: 0, kind: input, shape index: {}]
  %s1 = inlined_call_operand.hbm [shape: bf16[3,128,128], index: 1, kind: input, shape index: {}]
  %s2 = inlined_call_operand.vmem [shape: f32[1,128], index: 2, kind: input, shape index: {}]
  %s3 = inlined_call_operand.hbm [shape: bf16[3,128,128], index: 3, kind: input, shape index: {}]
  %s4 = inlined_call_operand.vmem [shape: f32[1,128], index: 4, kind: input, shape index: {}]
  %s5 = inlined_call_operand.hbm [shape: bf16[128,128], index: 5, kind: input, shape index: {}]
  %s6 = inlined_call_operand.vmem [shape: f32[1,128], index: 6, kind: input, shape index: {}]
  %s7 = inlined_call_operand.hbm [shape: bf16[3,128,128], index: 7, kind: input, shape index: {}]
  %s8 = inlined_call_operand.vmem [shape: f32[1,128], index: 8, kind: input, shape index: {}]
  %s9 = inlined_call_operand.hbm [shape: bf16[3,128,128], index: 9, kind: input, shape index: {}]
  %s10 = inlined_call_operand.vmem [shape: f32[1,128], index: 10, kind: input, shape index: {}]
  %s11 = inlined_call_operand.hbm [shape: bf16[3,128,128], index: 11, kind: input, shape index: {}]
  %s12 = inlined_call_operand.vmem [shape: f32[1,128], index: 12, kind: input, shape index: {}]
  %s13 = inlined_call_operand.hbm [shape: bf16[3,128,128], index: 13, kind: input, shape index: {}]
  %s14 = inlined_call_operand.vmem [shape: f32[1,128], index: 14, kind: input, shape index: {}]
  %s15 = inlined_call_operand.hbm [shape: bf16[128,128], index: 15, kind: input, shape index: {}]
  %s16 = inlined_call_operand.vmem [shape: f32[1,128], index: 16, kind: input, shape index: {}]
  %s17 = inlined_call_operand.hbm [shape: bf16[2,16,128], index: 17, kind: output, shape index: {}]
  %s18 = sld [smem:[#allocation0]]
  $region137: #{tpu_custom_call.1} parent=0
    _
  %s20 = ssub.s32 1, %s18
  %s21 = scalar_select 0, %s20, %s18
  $region1: #{tpu_custom_call.1} parent=0
    #allocation3 [shape = 'u8[8192]{0}', space=vmem, size = 0x2000, scoped, tag = 'input window, operand 0']
    #allocation4 [shape = 's32[2]{0}', space=sflag, size = 0x8, scoped, tag = 'scoped memory for tpu_custom_call.1']
    #allocation5 [shape = 's32[2]{0}', space=sflag, size = 0x8, scoped, tag = 'scoped memory for tpu_custom_call.1']
    #allocation6 [shape = 'u8[98304]{0}', space=vmem, size = 0x18000, scoped, tag = 'input window, operand 1, single buffered']
    #allocation7 [shape = 's32[1]{0}', space=sflag, size = 0x4, scoped, tag = 'scoped memory for tpu_custom_call.1']
    #allocation8 [shape = 'u8[98304]{0}', space=vmem, size = 0x18000, scoped, tag = 'input window, operand 3, single buffered']
    #allocation9 [shape = 'u8[32768]{0}', space=vmem, size = 0x8000, scoped, tag = 'input window, operand 5, single buffered']
    #allocation10 [shape = 's32[1]{0}', space=sflag, size = 0x4, scoped, tag = 'scoped memory for tpu_custom_call.1']
    #allocation11 [shape = 'u8[98304]{0}', space=vmem, size = 0x18000, scoped, tag = 'input window, operand 7, single buffered']
    #allocation12 [shape = 'u8[98304]{0}', space=vmem, size = 0x18000, scoped, tag = 'input window, operand 9, single buffered']
    #allocation13 [shape = 's32[1]{0}', space=sflag, size = 0x4, scoped, tag = 'scoped memory for tpu_custom_call.1']
    #allocation14 [shape = 'u8[98304]{0}', space=vmem, size = 0x18000, scoped, tag = 'input window, operand 11, single buffered']
    #allocation15 [shape = 'u8[98304]{0}', space=vmem, size = 0x18000, scoped, tag = 'input window, operand 13, single buffered']
    #allocation16 [shape = 's32[1]{0}', space=sflag, size = 0x4, scoped, tag = 'scoped memory for tpu_custom_call.1']
    #allocation17 [shape = 'u8[32768]{0}', space=vmem, size = 0x8000, scoped, tag = 'input window, operand 15, single buffered']
    #allocation18 [shape = 'u8[8192]{0}', space=vmem, size = 0x2000, scoped, tag = 'output window, operand 0']
    %22 = vsyncpa [#allocation4], 0
    %s23 = scalar_lea.sflag [#allocation4], 1
    %24 = vsyncpa %s23, 0
    %25 = vsyncpa [#allocation7], 0
    %26 = vsyncpa [#allocation10], 0
    %27 = vsyncpa [#allocation13], 0
    %28 = vsyncpa [#allocation16], 0
    %29 = vsyncpa [#allocation5], 0
    %s30 = scalar_lea.sflag [#allocation5], 1
    %31 = vsyncpa %s30, 0
    loop: start=0, step=1, limit=4
    $region2: #{tpu_custom_call.1} parent=1 // loop_pre_header
      _
    $region3: #{tpu_custom_call.1} parent=1 // loop_header
      %s33 = sphi 0, %s37
      %p34 = scmp.ge.s32.totalorder %s33, 4
      %s40 = sphi 0, %s52
      %s41 = sphi 0, %s48
      %s42 = sphi 0, %s40
      %s43 = sphi 0, %s41
      %s44 = sphi 0, %s42
      %s45 = sphi 0, %s43
      %s57 = sphi 0, %s59
      %s60 = sphi 0, %s57
      %s61 = sphi 0, %s60
      %s77 = sphi 0, %s61
      %s81 = sphi 0, %s81
      %s83 = sphi 0, %s81
      %s84 = sphi 0, %s83
      %s98 = sphi 0, %s84
      %s102 = sphi 0, %s102
      %s104 = sphi 0, %s102
      %s105 = sphi 0, %s104
      %s119 = sphi 0, %s105
      %s123 = sphi 0, %s123
      %s125 = sphi 0, %s123
      %s126 = sphi 0, %s125
      %s140 = sphi 0, %s126
      %s144 = sphi 0, %s144
      %s146 = sphi 0, %s144
      %s147 = sphi 0, %s146
      %s161 = sphi 0, %s147
      %s165 = sphi 0, %s165
      %s167 = sphi 0, %s165
      %s168 = sphi 0, %s167
      %s182 = sphi 0, %s168
      %s186 = sphi 0, %s186
      %s188 = sphi 0, %s186
      %s189 = sphi 0, %s188
      %s203 = sphi 0, %s189
      %s207 = sphi 0, %s207
      %s209 = sphi 0, %s207
      %s210 = sphi 0, %s209
      %s224 = sphi 0, %s210
      %s228 = sphi 0, %s228
      %s230 = sphi 0, %s228
      %s231 = sphi 0, %s230
      %s245 = sphi 0, %s231
      %s249 = sphi 0, %s249
      %s251 = sphi 0, %s249
      %s252 = sphi 0, %s251
      %s266 = sphi 0, %s252
      %s270 = sphi 0, %s270
      %s272 = sphi 0, %s270
      %s273 = sphi 0, %s272
      %s287 = sphi 0, %s273
      %s291 = sphi 0, %s291
      %s293 = sphi 0, %s291
      %s294 = sphi 0, %s293
      %s308 = sphi 0, %s294
      %s312 = sphi 0, %s312
      %s314 = sphi 0, %s312
      %s315 = sphi 0, %s314
      %s329 = sphi 0, %s315
      %s333 = sphi 0, %s333
      %s335 = sphi 0, %s333
      %s336 = sphi 0, %s335
      %s350 = sphi 0, %s336
      %s354 = sphi 0, %s354
      %s356 = sphi 0, %s354
      %s357 = sphi 0, %s356
      %s371 = sphi 0, %s357
      %s375 = sphi 0, %s375
      %s377 = sphi 0, %s375
      %s378 = sphi 0, %s377
      %s392 = sphi 0, %s378
      %s396 = sphi 0, %s396
      %s398 = sphi 0, %s396
      %s399 = sphi 0, %s398
      %s413 = sphi 0, %s399
      %s421 = sphi 0, %s423
      %s424 = sphi 0, %s421
      %s425 = sphi 0, %s424
      %s441 = sphi 0, %s425
    $region4: #{tpu_custom_call.1} parent=1 // loop_header_branch
      %36 = sbr.rel (%p34) target = $region8
    $region5: #{tpu_custom_call.1} parent=1 // loop_body
      %s38 = ssub.s32 %s33, 1
      %s39 = ssub.s32 %s33, 2
      %s46 = sadd.s32 1, %s41
      %p47 = scmp.ge.s32.totalorder %s46, 1
      %s48 = scalar_select %p47, 0, %s46
      %s49 = sadd.s32 1, %s40
      %s50 = scalar_select %p47, %s49, %s40
      %p51 = scmp.ge.s32.totalorder %s50, 2
      %s52 = scalar_select %p51, 0, %s50
      %s53 = ssub.s32 %s40, %s52
      %s54 = ssub.s32 %s41, %s48
      %s55 = sor.u32 %s53, %s54
      %p56 = scmp.eq.s32.totalorder %s55, 0
      %s58 = sadd.s32 %s57, 1
      %s59 = scalar_select %p56, %s57, %s58
      %p62 = pneg %p56
      %p63 = scmp.eq.s32.totalorder %s33, 1
      %p64 = por %p62, %p63
      %p65 = scmp.ne.s32.totalorder %s57, %s60
      %p66 = scmp.eq.s32.totalorder %s33, 0
      %p67 = por %p65, %p66
      %p68 = scmp.ne.s32.totalorder %s57, %s60
      %p69 = scmp.eq.s32.totalorder %s38, 1
      %p70 = por %p68, %p69
      %p71 = scmp.ne.s32.totalorder %s60, %s61
      %p72 = scmp.eq.s32.totalorder %s38, 0
      %p73 = por %p71, %p72
      %p74 = scmp.ne.s32.totalorder %s60, %s61
      %p75 = scmp.eq.s32.totalorder %s39, 1
      %p76 = por %p74, %p75
      %p78 = scmp.ne.s32.totalorder %s61, %s77
      %p79 = scmp.eq.s32.totalorder %s39, 0
      %p80 = por %p78, %p79
      %s82 = sadd.s32 %s81, 1
      %p85 = scmp.eq.s32.totalorder %s33, 1
      %p86 = scmp.ne.s32.totalorder %s81, %s83
      %p87 = scmp.eq.s32.totalorder %s33, 0
      %p88 = por %p86, %p87
      %p89 = scmp.ne.s32.totalorder %s81, %s83
      %p90 = scmp.eq.s32.totalorder %s38, 1
      %p91 = por %p89, %p90
      %p92 = scmp.ne.s32.totalorder %s83, %s84
      %p93 = scmp.eq.s32.totalorder %s38, 0
      %p94 = por %p92, %p93
      %p95 = scmp.ne.s32.totalorder %s83, %s84
      %p96 = scmp.eq.s32.totalorder %s39, 1
      %p97 = por %p95, %p96
      %p99 = scmp.ne.s32.totalorder %s84, %s98
      %p100 = scmp.eq.s32.totalorder %s39, 0
      %p101 = por %p99, %p100
      %s103 = sadd.s32 %s102, 1
      %p106 = scmp.eq.s32.totalorder %s33, 1
      %p107 = scmp.ne.s32.totalorder %s102, %s104
      %p108 = scmp.eq.s32.totalorder %s33, 0
      %p109 = por %p107, %p108
      %p110 = scmp.ne.s32.totalorder %s102, %s104
      %p111 = scmp.eq.s32.totalorder %s38, 1
      %p112 = por %p110, %p111
      %p113 = scmp.ne.s32.totalorder %s104, %s105
      %p114 = scmp.eq.s32.totalorder %s38, 0
      %p115 = por %p113, %p114
      %p116 = scmp.ne.s32.totalorder %s104, %s105
      %p117 = scmp.eq.s32.totalorder %s39, 1
      %p118 = por %p116, %p117
      %p120 = scmp.ne.s32.totalorder %s105, %s119
      %p121 = scmp.eq.s32.totalorder %s39, 0
      %p122 = por %p120, %p121
      %s124 = sadd.s32 %s123, 1
      %p127 = scmp.eq.s32.totalorder %s33, 1
      %p128 = scmp.ne.s32.totalorder %s123, %s125
      %p129 = scmp.eq.s32.totalorder %s33, 0
      %p130 = por %p128, %p129
      %p131 = scmp.ne.s32.totalorder %s123, %s125
      %p132 = scmp.eq.s32.totalorder %s38, 1
      %p133 = por %p131, %p132
      %p134 = scmp.ne.s32.totalorder %s125, %s126
      %p135 = scmp.eq.s32.totalorder %s38, 0
      %p136 = por %p134, %p135
      %p137 = scmp.ne.s32.totalorder %s125, %s126
      %p138 = scmp.eq.s32.totalorder %s39, 1
      %p139 = por %p137, %p138
      %p141 = scmp.ne.s32.totalorder %s126, %s140
      %p142 = scmp.eq.s32.totalorder %s39, 0
      %p143 = por %p141, %p142
      %s145 = sadd.s32 %s144, 1
      %p148 = scmp.eq.s32.totalorder %s33, 1
      %p149 = scmp.ne.s32.totalorder %s144, %s146
      %p150 = scmp.eq.s32.totalorder %s33, 0
      %p151 = por %p149, %p150
      %p152 = scmp.ne.s32.totalorder %s144, %s146
      %p153 = scmp.eq.s32.totalorder %s38, 1
      %p154 = por %p152, %p153
      %p155 = scmp.ne.s32.totalorder %s146, %s147
      %p156 = scmp.eq.s32.totalorder %s38, 0
      %p157 = por %p155, %p156
      %p158 = scmp.ne.s32.totalorder %s146, %s147
      %p159 = scmp.eq.s32.totalorder %s39, 1
      %p160 = por %p158, %p159
      %p162 = scmp.ne.s32.totalorder %s147, %s161
      %p163 = scmp.eq.s32.totalorder %s39, 0
      %p164 = por %p162, %p163
      %s166 = sadd.s32 %s165, 1
      %p169 = scmp.eq.s32.totalorder %s33, 1
      %p170 = scmp.ne.s32.totalorder %s165, %s167
      %p171 = scmp.eq.s32.totalorder %s33, 0
      %p172 = por %p170, %p171
      %p173 = scmp.ne.s32.totalorder %s165, %s167
      %p174 = scmp.eq.s32.totalorder %s38, 1
      %p175 = por %p173, %p174
      %p176 = scmp.ne.s32.totalorder %s167, %s168
      %p177 = scmp.eq.s32.totalorder %s38, 0
      %p178 = por %p176, %p177
      %p179 = scmp.ne.s32.totalorder %s167, %s168
      %p180 = scmp.eq.s32.totalorder %s39, 1
      %p181 = por %p179, %p180
      %p183 = scmp.ne.s32.totalorder %s168, %s182
      %p184 = scmp.eq.s32.totalorder %s39, 0
      %p185 = por %p183, %p184
      %s187 = sadd.s32 %s186, 1
      %p190 = scmp.eq.s32.totalorder %s33, 1
      %p191 = scmp.ne.s32.totalorder %s186, %s188
      %p192 = scmp.eq.s32.totalorder %s33, 0
      %p193 = por %p191, %p192
      %p194 = scmp.ne.s32.totalorder %s186, %s188
      %p195 = scmp.eq.s32.totalorder %s38, 1
      %p196 = por %p194, %p195
      %p197 = scmp.ne.s32.totalorder %s188, %s189
      %p198 = scmp.eq.s32.totalorder %s38, 0
      %p199 = por %p197, %p198
      %p200 = scmp.ne.s32.totalorder %s188, %s189
      %p201 = scmp.eq.s32.totalorder %s39, 1
      %p202 = por %p200, %p201
      %p204 = scmp.ne.s32.totalorder %s189, %s203
      %p205 = scmp.eq.s32.totalorder %s39, 0
      %p206 = por %p204, %p205
      %s208 = sadd.s32 %s207, 1
      %p211 = scmp.eq.s32.totalorder %s33, 1
      %p212 = scmp.ne.s32.totalorder %s207, %s209
      %p213 = scmp.eq.s32.totalorder %s33, 0
      %p214 = por %p212, %p213
      %p215 = scmp.ne.s32.totalorder %s207, %s209
      %p216 = scmp.eq.s32.totalorder %s38, 1
      %p217 = por %p215, %p216
      %p218 = scmp.ne.s32.totalorder %s209, %s210
      %p219 = scmp.eq.s32.totalorder %s38, 0
      %p220 = por %p218, %p219
      %p221 = scmp.ne.s32.totalorder %s209, %s210
      %p222 = scmp.eq.s32.totalorder %s39, 1
      %p223 = por %p221, %p222
      %p225 = scmp.ne.s32.totalorder %s210, %s224
      %p226 = scmp.eq.s32.totalorder %s39, 0
      %p227 = por %p225, %p226
      %s229 = sadd.s32 %s228, 1
      %p232 = scmp.eq.s32.totalorder %s33, 1
      %p233 = scmp.ne.s32.totalorder %s228, %s230
      %p234 = scmp.eq.s32.totalorder %s33, 0
      %p235 = por %p233, %p234
      %p236 = scmp.ne.s32.totalorder %s228, %s230
      %p237 = scmp.eq.s32.totalorder %s38, 1
      %p238 = por %p236, %p237
      %p239 = scmp.ne.s32.totalorder %s230, %s231
      %p240 = scmp.eq.s32.totalorder %s38, 0
      %p241 = por %p239, %p240
      %p242 = scmp.ne.s32.totalorder %s230, %s231
      %p243 = scmp.eq.s32.totalorder %s39, 1
      %p244 = por %p242, %p243
      %p246 = scmp.ne.s32.totalorder %s231, %s245
      %p247 = scmp.eq.s32.totalorder %s39, 0
      %p248 = por %p246, %p247
      %s250 = sadd.s32 %s249, 1
      %p253 = scmp.eq.s32.totalorder %s33, 1
      %p254 = scmp.ne.s32.totalorder %s249, %s251
      %p255 = scmp.eq.s32.totalorder %s33, 0
      %p256 = por %p254, %p255
      %p257 = scmp.ne.s32.totalorder %s249, %s251
      %p258 = scmp.eq.s32.totalorder %s38, 1
      %p259 = por %p257, %p258
      %p260 = scmp.ne.s32.totalorder %s251, %s252
      %p261 = scmp.eq.s32.totalorder %s38, 0
      %p262 = por %p260, %p261
      %p263 = scmp.ne.s32.totalorder %s251, %s252
      %p264 = scmp.eq.s32.totalorder %s39, 1
      %p265 = por %p263, %p264
      %p267 = scmp.ne.s32.totalorder %s252, %s266
      %p268 = scmp.eq.s32.totalorder %s39, 0
      %p269 = por %p267, %p268
      %s271 = sadd.s32 %s270, 1
      %p274 = scmp.eq.s32.totalorder %s33, 1
      %p275 = scmp.ne.s32.totalorder %s270, %s272
      %p276 = scmp.eq.s32.totalorder %s33, 0
      %p277 = por %p275, %p276
      %p278 = scmp.ne.s32.totalorder %s270, %s272
      %p279 = scmp.eq.s32.totalorder %s38, 1
      %p280 = por %p278, %p279
      %p281 = scmp.ne.s32.totalorder %s272, %s273
      %p282 = scmp.eq.s32.totalorder %s38, 0
      %p283 = por %p281, %p282
      %p284 = scmp.ne.s32.totalorder %s272, %s273
      %p285 = scmp.eq.s32.totalorder %s39, 1
      %p286 = por %p284, %p285
      %p288 = scmp.ne.s32.totalorder %s273, %s287
      %p289 = scmp.eq.s32.totalorder %s39, 0
      %p290 = por %p288, %p289
      %s292 = sadd.s32 %s291, 1
      %p295 = scmp.eq.s32.totalorder %s33, 1
      %p296 = scmp.ne.s32.totalorder %s291, %s293
      %p297 = scmp.eq.s32.totalorder %s33, 0
      %p298 = por %p296, %p297
      %p299 = scmp.ne.s32.totalorder %s291, %s293
      %p300 = scmp.eq.s32.totalorder %s38, 1
      %p301 = por %p299, %p300
      %p302 = scmp.ne.s32.totalorder %s293, %s294
      %p303 = scmp.eq.s32.totalorder %s38, 0
      %p304 = por %p302, %p303
      %p305 = scmp.ne.s32.totalorder %s293, %s294
      %p306 = scmp.eq.s32.totalorder %s39, 1
      %p307 = por %p305, %p306
      %p309 = scmp.ne.s32.totalorder %s294, %s308
      %p310 = scmp.eq.s32.totalorder %s39, 0
      %p311 = por %p309, %p310
      %s313 = sadd.s32 %s312, 1
      %p316 = scmp.eq.s32.totalorder %s33, 1
      %p317 = scmp.ne.s32.totalorder %s312, %s314
      %p318 = scmp.eq.s32.totalorder %s33, 0
      %p319 = por %p317, %p318
      %p320 = scmp.ne.s32.totalorder %s312, %s314
      %p321 = scmp.eq.s32.totalorder %s38, 1
      %p322 = por %p320, %p321
      %p323 = scmp.ne.s32.totalorder %s314, %s315
      %p324 = scmp.eq.s32.totalorder %s38, 0
      %p325 = por %p323, %p324
      %p326 = scmp.ne.s32.totalorder %s314, %s315
      %p327 = scmp.eq.s32.totalorder %s39, 1
      %p328 = por %p326, %p327
      %p330 = scmp.ne.s32.totalorder %s315, %s329
      %p331 = scmp.eq.s32.totalorder %s39, 0
      %p332 = por %p330, %p331
      %s334 = sadd.s32 %s333, 1
      %p337 = scmp.eq.s32.totalorder %s33, 1
      %p338 = scmp.ne.s32.totalorder %s333, %s335
      %p339 = scmp.eq.s32.totalorder %s33, 0
      %p340 = por %p338, %p339
      %p341 = scmp.ne.s32.totalorder %s333, %s335
      %p342 = scmp.eq.s32.totalorder %s38, 1
      %p343 = por %p341, %p342
      %p344 = scmp.ne.s32.totalorder %s335, %s336
      %p345 = scmp.eq.s32.totalorder %s38, 0
      %p346 = por %p344, %p345
      %p347 = scmp.ne.s32.totalorder %s335, %s336
      %p348 = scmp.eq.s32.totalorder %s39, 1
      %p349 = por %p347, %p348
      %p351 = scmp.ne.s32.totalorder %s336, %s350
      %p352 = scmp.eq.s32.totalorder %s39, 0
      %p353 = por %p351, %p352
      %s355 = sadd.s32 %s354, 1
      %p358 = scmp.eq.s32.totalorder %s33, 1
      %p359 = scmp.ne.s32.totalorder %s354, %s356
      %p360 = scmp.eq.s32.totalorder %s33, 0
      %p361 = por %p359, %p360
      %p362 = scmp.ne.s32.totalorder %s354, %s356
      %p363 = scmp.eq.s32.totalorder %s38, 1
      %p364 = por %p362, %p363
      %p365 = scmp.ne.s32.totalorder %s356, %s357
      %p366 = scmp.eq.s32.totalorder %s38, 0
      %p367 = por %p365, %p366
      %p368 = scmp.ne.s32.totalorder %s356, %s357
      %p369 = scmp.eq.s32.totalorder %s39, 1
      %p370 = por %p368, %p369
      %p372 = scmp.ne.s32.totalorder %s357, %s371
      %p373 = scmp.eq.s32.totalorder %s39, 0
      %p374 = por %p372, %p373
      %s376 = sadd.s32 %s375, 1
      %p379 = scmp.eq.s32.totalorder %s33, 1
      %p380 = scmp.ne.s32.totalorder %s375, %s377
      %p381 = scmp.eq.s32.totalorder %s33, 0
      %p382 = por %p380, %p381
      %p383 = scmp.ne.s32.totalorder %s375, %s377
      %p384 = scmp.eq.s32.totalorder %s38, 1
      %p385 = por %p383, %p384
      %p386 = scmp.ne.s32.totalorder %s377, %s378
      %p387 = scmp.eq.s32.totalorder %s38, 0
      %p388 = por %p386, %p387
      %p389 = scmp.ne.s32.totalorder %s377, %s378
      %p390 = scmp.eq.s32.totalorder %s39, 1
      %p391 = por %p389, %p390
      %p393 = scmp.ne.s32.totalorder %s378, %s392
      %p394 = scmp.eq.s32.totalorder %s39, 0
      %p395 = por %p393, %p394
      %s397 = sadd.s32 %s396, 1
      %p400 = scmp.eq.s32.totalorder %s33, 1
      %p401 = scmp.ne.s32.totalorder %s396, %s398
      %p402 = scmp.eq.s32.totalorder %s33, 0
      %p403 = por %p401, %p402
      %p404 = scmp.ne.s32.totalorder %s396, %s398
      %p405 = scmp.eq.s32.totalorder %s38, 1
      %p406 = por %p404, %p405
      %p407 = scmp.ne.s32.totalorder %s398, %s399
      %p408 = scmp.eq.s32.totalorder %s38, 0
      %p409 = por %p407, %p408
      %p410 = scmp.ne.s32.totalorder %s398, %s399
      %p411 = scmp.eq.s32.totalorder %s39, 1
      %p412 = por %p410, %p411
      %p414 = scmp.ne.s32.totalorder %s399, %s413
      %p415 = scmp.eq.s32.totalorder %s39, 0
      %p416 = por %p414, %p415
      %s417 = ssub.s32 %s40, %s52
      %s418 = ssub.s32 %s41, %s48
      %s419 = sor.u32 %s417, %s418
      %p420 = scmp.eq.s32.totalorder %s419, 0
      %s422 = sadd.s32 %s421, 1
      %s423 = scalar_select %p420, %s421, %s422
      %p426 = pneg %p420
      %p427 = scmp.eq.s32.totalorder %s33, 1
      %p428 = por %p426, %p427
      %p429 = scmp.ne.s32.totalorder %s421, %s424
      %p430 = scmp.eq.s32.totalorder %s33, 0
      %p431 = por %p429, %p430
      %p432 = scmp.ne.s32.totalorder %s421, %s424
      %p433 = scmp.eq.s32.totalorder %s38, 1
      %p434 = por %p432, %p433
      %p435 = scmp.ne.s32.totalorder %s424, %s425
      %p436 = scmp.eq.s32.totalorder %s38, 0
      %p437 = por %p435, %p436
      %p438 = scmp.ne.s32.totalorder %s424, %s425
      %p439 = scmp.eq.s32.totalorder %s39, 1
      %p440 = por %p438, %p439
      %p442 = scmp.ne.s32.totalorder %s425, %s441
      %p443 = scmp.eq.s32.totalorder %s39, 0
      %p444 = por %p442, %p443
      %p445 = scmp.le.s32.totalorder 1, %s33
      %p446 = scmp.lt.s32.totalorder %s33, 3
      %p447 = pnand %p445, %p446
      %p448 = pneg %p447
      // Predicated region
      $region9: #{tpu_custom_call.1} parent=5 // pred_check
        _
      $region10: #{tpu_custom_call.1} parent=5 // pred_check_branch
        %450 = sbr.rel (%p447) target = $region12
      $region11: #{tpu_custom_call.1} parent=5 // pred_region
        %s451 = ssub.s32 %s33, 1
        // Predicated region
        $region13: #{tpu_custom_call.1} parent=11 // pred_check
          %p452 = pneg %p94
        $region14: #{tpu_custom_call.1} parent=11 // pred_check_branch
          %454 = sbr.rel (%p452) target = $region16
        $region15: #{tpu_custom_call.1} parent=11 // pred_region
          %s456 = ssub.s32 3072, 3072
          %457 = vsyncadd [#allocation7], %s456
          %s458 = sshll.u32 [#allocation6], 4
          %s459 = int_to_ptr.vmem [resolvable:$true] %s458
          %464 = dma.hbm_to_vmem [thread:$0]  %s1, 3072, %s459, [#allocation7], 64, 64, 4
        $region16: #{tpu_custom_call.1} parent=11 // pred_fallthru
          _
        // Predicated region
        $region17: #{tpu_custom_call.1} parent=11 // pred_check
          %p465 = pneg %p115
        $region18: #{tpu_custom_call.1} parent=11 // pred_check_branch
          %467 = sbr.rel (%p465) target = $region20
        $region19: #{tpu_custom_call.1} parent=11 // pred_region
          _
        $region20: #{tpu_custom_call.1} parent=11 // pred_fallthru
          _
        // Predicated region
        $region21: #{tpu_custom_call.1} parent=11 // pred_check
          %p468 = pneg %p136
        $region22: #{tpu_custom_call.1} parent=11 // pred_check_branch
          %470 = sbr.rel (%p468) target = $region24
        $region23: #{tpu_custom_call.1} parent=11 // pred_region
          %s472 = ssub.s32 3072, 3072
          %473 = vsyncadd [#allocation7], %s472
          %s474 = sshll.u32 [#allocation8], 4
          %s475 = int_to_ptr.vmem [resolvable:$true] %s474
          %480 = dma.hbm_to_vmem [thread:$0]  %s3, 3072, %s475, [#allocation7], 64, 64, 4
        $region24: #{tpu_custom_call.1} parent=11 // pred_fallthru
          _
        // Predicated region
        $region25: #{tpu_custom_call.1} parent=11 // pred_check
          %p481 = pneg %p157
        $region26: #{tpu_custom_call.1} parent=11 // pred_check_branch
          %483 = sbr.rel (%p481) target = $region28
        $region27: #{tpu_custom_call.1} parent=11 // pred_region
          _
        $region28: #{tpu_custom_call.1} parent=11 // pred_fallthru
          _
        // Predicated region
        $region29: #{tpu_custom_call.1} parent=11 // pred_check
          %p484 = pneg %p178
        $region30: #{tpu_custom_call.1} parent=11 // pred_check_branch
          %486 = sbr.rel (%p484) target = $region32
        $region31: #{tpu_custom_call.1} parent=11 // pred_region
          %s488 = ssub.s32 1024, 1024
          %489 = vsyncadd [#allocation10], %s488
          %s490 = sshll.u32 [#allocation9], 4
          %s491 = int_to_ptr.vmem [resolvable:$true] %s490
          %496 = dma.hbm_to_vmem [thread:$0]  %s5, 1024, %s491, [#allocation10], 64, 64, 4
        $region32: #{tpu_custom_call.1} parent=11 // pred_fallthru
          _
        // Predicated region
        $region33: #{tpu_custom_call.1} parent=11 // pred_check
          %p497 = pneg %p199
        $region34: #{tpu_custom_call.1} parent=11 // pred_check_branch
          %499 = sbr.rel (%p497) target = $region36
        $region35: #{tpu_custom_call.1} parent=11 // pred_region
          _
        $region36: #{tpu_custom_call.1} parent=11 // pred_fallthru
          _
        // Predicated region
        $region37: #{tpu_custom_call.1} parent=11 // pred_check
          %p500 = pneg %p220
        $region38: #{tpu_custom_call.1} parent=11 // pred_check_branch
          %502 = sbr.rel (%p500) target = $region40
        $region39: #{tpu_custom_call.1} parent=11 // pred_region
          %s504 = ssub.s32 3072, 3072
          %505 = vsyncadd [#allocation10], %s504
          %s506 = sshll.u32 [#allocation11], 4
          %s507 = int_to_ptr.vmem [resolvable:$true] %s506
          %512 = dma.hbm_to_vmem [thread:$0]  %s7, 3072, %s507, [#allocation10], 64, 64, 4
        $region40: #{tpu_custom_call.1} parent=11 // pred_fallthru
          _
        // Predicated region
        $region41: #{tpu_custom_call.1} parent=11 // pred_check
          %p513 = pneg %p241
        $region42: #{tpu_custom_call.1} parent=11 // pred_check_branch
          %515 = sbr.rel (%p513) target = $region44
        $region43: #{tpu_custom_call.1} parent=11 // pred_region
          _
        $region44: #{tpu_custom_call.1} parent=11 // pred_fallthru
          _
        // Predicated region
        $region45: #{tpu_custom_call.1} parent=11 // pred_check
          %p516 = pneg %p262
        $region46: #{tpu_custom_call.1} parent=11 // pred_check_branch
          %518 = sbr.rel (%p516) target = $region48
        $region47: #{tpu_custom_call.1} parent=11 // pred_region
          %s520 = ssub.s32 3072, 3072
          %521 = vsyncadd [#allocation13], %s520
          %s522 = sshll.u32 [#allocation12], 4
          %s523 = int_to_ptr.vmem [resolvable:$true] %s522
          %528 = dma.hbm_to_vmem [thread:$0]  %s9, 3072, %s523, [#allocation13], 64, 64, 4
        $region48: #{tpu_custom_call.1} parent=11 // pred_fallthru
          _
        // Predicated region
        $region49: #{tpu_custom_call.1} parent=11 // pred_check
          %p529 = pneg %p283
        $region50: #{tpu_custom_call.1} parent=11 // pred_check_branch
          %531 = sbr.rel (%p529) target = $region52
        $region51: #{tpu_custom_call.1} parent=11 // pred_region
          _
        $region52: #{tpu_custom_call.1} parent=11 // pred_fallthru
          _
        // Predicated region
        $region53: #{tpu_custom_call.1} parent=11 // pred_check
          %p532 = pneg %p304
        $region54: #{tpu_custom_call.1} parent=11 // pred_check_branch
          %534 = sbr.rel (%p532) target = $region56
        $region55: #{tpu_custom_call.1} parent=11 // pred_region
          %s536 = ssub.s32 3072, 3072
          %537 = vsyncadd [#allocation13], %s536
          %s538 = sshll.u32 [#allocation14], 4
          %s539 = int_to_ptr.vmem [resolvable:$true] %s538
          %544 = dma.hbm_to_vmem [thread:$0]  %s11, 3072, %s539, [#allocation13], 64, 64, 4
        $region56: #{tpu_custom_call.1} parent=11 // pred_fallthru
          _
        // Predicated region
        $region57: #{tpu_custom_call.1} parent=11 // pred_check
          %p545 = pneg %p325
        $region58: #{tpu_custom_call.1} parent=11 // pred_check_branch
          %547 = sbr.rel (%p545) target = $region60
        $region59: #{tpu_custom_call.1} parent=11 // pred_region
          _
        $region60: #{tpu_custom_call.1} parent=11 // pred_fallthru
          _
        // Predicated region
        $region61: #{tpu_custom_call.1} parent=11 // pred_check
          %p548 = pneg %p346
        $region62: #{tpu_custom_call.1} parent=11 // pred_check_branch
          %550 = sbr.rel (%p548) target = $region64
        $region63: #{tpu_custom_call.1} parent=11 // pred_region
          %s552 = ssub.s32 3072, 3072
          %553 = vsyncadd [#allocation16], %s552
          %s554 = sshll.u32 [#allocation15], 4
          %s555 = int_to_ptr.vmem [resolvable:$true] %s554
          %560 = dma.hbm_to_vmem [thread:$0]  %s13, 3072, %s555, [#allocation16], 64, 64, 4
        $region64: #{tpu_custom_call.1} parent=11 // pred_fallthru
          _
        // Predicated region
        $region65: #{tpu_custom_call.1} parent=11 // pred_check
          %p561 = pneg %p367
        $region66: #{tpu_custom_call.1} parent=11 // pred_check_branch
          %563 = sbr.rel (%p561) target = $region68
        $region67: #{tpu_custom_call.1} parent=11 // pred_region
          _
        $region68: #{tpu_custom_call.1} parent=11 // pred_fallthru
          _
        // Predicated region
        $region69: #{tpu_custom_call.1} parent=11 // pred_check
          %p564 = pneg %p388
        $region70: #{tpu_custom_call.1} parent=11 // pred_check_branch
          %566 = sbr.rel (%p564) target = $region72
        $region71: #{tpu_custom_call.1} parent=11 // pred_region
          %s568 = ssub.s32 1024, 1024
          %569 = vsyncadd [#allocation16], %s568
          %s570 = sshll.u32 [#allocation17], 4
          %s571 = int_to_ptr.vmem [resolvable:$true] %s570
          %576 = dma.hbm_to_vmem [thread:$0]  %s15, 1024, %s571, [#allocation16], 64, 64, 4
        $region72: #{tpu_custom_call.1} parent=11 // pred_fallthru
          _
        // Predicated region
        $region73: #{tpu_custom_call.1} parent=11 // pred_check
          %p577 = pneg %p409
        $region74: #{tpu_custom_call.1} parent=11 // pred_check_branch
          %579 = sbr.rel (%p577) target = $region76
        $region75: #{tpu_custom_call.1} parent=11 // pred_region
          _
        $region76: #{tpu_custom_call.1} parent=11 // pred_fallthru
          _
      $region12: #{tpu_custom_call.1} parent=5 // pred_fallthru
        _
      %p580 = scmp.lt.s32.totalorder %s33, 2
      // Predicated region
      $region77: #{tpu_custom_call.1} parent=5 // pred_check
        %p581 = pneg %p580
      $region78: #{tpu_custom_call.1} parent=5 // pred_check_branch
        %583 = sbr.rel (%p581) target = $region80
      $region79: #{tpu_custom_call.1} parent=5 // pred_region
        // Predicated region
        $region81: #{tpu_custom_call.1} parent=79 // pred_check
          %p584 = pneg %p67
        $region82: #{tpu_custom_call.1} parent=79 // pred_check_branch
          %586 = sbr.rel (%p584) target = $region84
        $region83: #{tpu_custom_call.1} parent=79 // pred_region
          %s587 = sand.u32 %s57, 1
          %s588 = scalar_lea.sflag [#allocation4], %s587
          %s589 = sand.u32 %s57, 1
          %s590 = smul.addr %s589, 8
          %s591 = scalar_lea.vmem [#allocation3], %s590
          %s592 = smul.u32 2, %s41
          %s594 = ssub.s32 128, 128
          %595 = vsyncadd %s588, %s594
          %s596 = smul.addr %s40, 2
          %s597 = sadd.s32 %s592, %s596
          %s598 = smul.addr %s597, 64
          %s599 = scalar_lea.hbm %s0, %s598
          %s600 = sshll.u32 %s591, 4
          %s601 = int_to_ptr.vmem [resolvable:$true] %s600
          %606 = dma.hbm_to_vmem [thread:$0]  %s599, 128, %s601, %s588, 64, 64, 4
        $region84: #{tpu_custom_call.1} parent=79 // pred_fallthru
          _
      $region80: #{tpu_custom_call.1} parent=5 // pred_fallthru
        _
      %p607 = scmp.le.s32.totalorder 1, %s33
      %p608 = scmp.lt.s32.totalorder %s33, 3
      %p609 = pnand %p607, %p608
      %p610 = pneg %p609
      // Predicated region
      $region85: #{tpu_custom_call.1} parent=5 // pred_check
        _
      $region86: #{tpu_custom_call.1} parent=5 // pred_check_branch
        %612 = sbr.rel (%p609) target = $region88
      $region87: #{tpu_custom_call.1} parent=5 // pred_region
        %s613 = ssub.s32 %s33, 1
        %s614 = sand.u32 %s60, 1
        %s615 = scalar_lea.sflag [#allocation4], %s614
        %s616 = sand.u32 %s60, 1
        %s617 = smul.addr %s616, 8
        %s618 = scalar_lea.vmem [#allocation3], %s617
        // Predicated region
        $region89: #{tpu_custom_call.1} parent=87 // pred_check
          %p619 = pneg %p73
        $region90: #{tpu_custom_call.1} parent=87 // pred_check_branch
          %621 = sbr.rel (%p619) target = $region92
        $region91: #{tpu_custom_call.1} parent=87 // pred_region
          %622 = dma.done %s615, 128
        $region92: #{tpu_custom_call.1} parent=87 // pred_fallthru
          _
        // Predicated region
        $region93: #{tpu_custom_call.1} parent=87 // pred_check
          %p623 = pneg %p94
        $region94: #{tpu_custom_call.1} parent=87 // pred_check_branch
          %625 = sbr.rel (%p623) target = $region96
        $region95: #{tpu_custom_call.1} parent=87 // pred_region
          %626 = dma.done [#allocation7], 3072
        $region96: #{tpu_custom_call.1} parent=87 // pred_fallthru
          _
        // Predicated region
        $region97: #{tpu_custom_call.1} parent=87 // pred_check
          %p627 = pneg %p136
        $region98: #{tpu_custom_call.1} parent=87 // pred_check_branch
          %629 = sbr.rel (%p627) target = $region100
        $region99: #{tpu_custom_call.1} parent=87 // pred_region
          %630 = dma.done [#allocation7], 3072
        $region100: #{tpu_custom_call.1} parent=87 // pred_fallthru
          _
        // Predicated region
        $region101: #{tpu_custom_call.1} parent=87 // pred_check
          %p631 = pneg %p178
        $region102: #{tpu_custom_call.1} parent=87 // pred_check_branch
          %633 = sbr.rel (%p631) target = $region104
        $region103: #{tpu_custom_call.1} parent=87 // pred_region
          %634 = dma.done [#allocation10], 1024
        $region104: #{tpu_custom_call.1} parent=87 // pred_fallthru
          _
        // Predicated region
        $region105: #{tpu_custom_call.1} parent=87 // pred_check
          %p635 = pneg %p220
        $region106: #{tpu_custom_call.1} parent=87 // pred_check_branch
          %637 = sbr.rel (%p635) target = $region108
        $region107: #{tpu_custom_call.1} parent=87 // pred_region
          %638 = dma.done [#allocation10], 3072
        $region108: #{tpu_custom_call.1} parent=87 // pred_fallthru
          _
        // Predicated region
        $region109: #{tpu_custom_call.1} parent=87 // pred_check
          %p639 = pneg %p262
        $region110: #{tpu_custom_call.1} parent=87 // pred_check_branch
          %641 = sbr.rel (%p639) target = $region112
        $region111: #{tpu_custom_call.1} parent=87 // pred_region
          %642 = dma.done [#allocation13], 3072
        $region112: #{tpu_custom_call.1} parent=87 // pred_fallthru
          _
        // Predicated region
        $region113: #{tpu_custom_call.1} parent=87 // pred_check
          %p643 = pneg %p304
        $region114: #{tpu_custom_call.1} parent=87 // pred_check_branch
          %645 = sbr.rel (%p643) target = $region116
        $region115: #{tpu_custom_call.1} parent=87 // pred_region
          %646 = dma.done [#allocation13], 3072
        $region116: #{tpu_custom_call.1} parent=87 // pred_fallthru
          _
        // Predicated region
        $region117: #{tpu_custom_call.1} parent=87 // pred_check
          %p647 = pneg %p346
        $region118: #{tpu_custom_call.1} parent=87 // pred_check_branch
          %649 = sbr.rel (%p647) target = $region120
        $region119: #{tpu_custom_call.1} parent=87 // pred_region
          %650 = dma.done [#allocation16], 3072
        $region120: #{tpu_custom_call.1} parent=87 // pred_fallthru
          _
        // Predicated region
        $region121: #{tpu_custom_call.1} parent=87 // pred_check
          %p651 = pneg %p388
        $region122: #{tpu_custom_call.1} parent=87 // pred_check_branch
          %653 = sbr.rel (%p651) target = $region124
        $region123: #{tpu_custom_call.1} parent=87 // pred_region
          %654 = dma.done [#allocation16], 1024
        $region124: #{tpu_custom_call.1} parent=87 // pred_fallthru
          _
        %s655 = sand.u32 %s60, 1
        %s656 = scalar_lea.sflag [#allocation4], %s655
        %s657 = sand.u32 %s60, 1
        %s658 = smul.addr %s657, 8
        %s659 = scalar_lea.vmem [#allocation3], %s658
        %p660 = pneg %p73
        %p661 = pneg %p70
        %p662 = pneg %p94
        %p663 = pneg %p91
        %p664 = pneg %p115
        %p665 = pneg %p112
        %p666 = pneg %p136
        %p667 = pneg %p133
        %p668 = pneg %p157
        %p669 = pneg %p154
        %p670 = pneg %p178
        %p671 = pneg %p175
        %p672 = pneg %p199
        %p673 = pneg %p196
        %p674 = pneg %p220
        %p675 = pneg %p217
        %p676 = pneg %p241
        %p677 = pneg %p238
        %p678 = pneg %p262
        %p679 = pneg %p259
        %p680 = pneg %p283
        %p681 = pneg %p280
        %p682 = pneg %p304
        %p683 = pneg %p301
        %p684 = pneg %p325
        %p685 = pneg %p322
        %p686 = pneg %p346
        %p687 = pneg %p343
        %p688 = pneg %p367
        %p689 = pneg %p364
        %p690 = pneg %p388
        %p691 = pneg %p385
        %p692 = pneg %p409
        %p693 = pneg %p406
        %p694 = pneg %p437
        %p695 = pneg %p434
        %s696 = sand.u32 %s424, 1
        %s697 = scalar_lea.sflag [#allocation5], %s696
        %s698 = sand.u32 %s424, 1
        %s699 = smul.addr %s698, 8
        %s700 = scalar_lea.vmem [#allocation18], %s699
        %s701 = smul.u32 2, %s43
        %s702 = smul.u32 2, %s43
        %s704 = smul.u32 %s43, 16
        %705 = vst [vmem:[#allocation2] sm:$0xff] 0
        %706 = vst [vmem:[#allocation2 + $0x8] sm:$0xff] 0
        %v707 = vld [vmem:[%s618] sm:$0xf]
        %v708 = vld [vmem:[%s618 + $0x4] sm:$0xf]
        %v711 = vunpack.c.l.b16 %v707
        %v712 = vunpack.c.l.b16 %v708
        %v713 = vpack.c.b16 %v712, %v711
        %715 = vst [vmem:[#allocation2 + $0x10] sm:$0xff] %v713
        %v716 = vld [vmem:[%s2] sm:$0x1]
        %v718 = vlaneseq
        %v719 = vshrl.u32 %v718, 7
        %v720 = vsub.s32 0, %v719
        %v721 = vrot.slane %v716, %v720
        %v723 = vld [vmem:[#allocation2] sm:$0xfc]
        %v724 = vld [vmem:[#allocation2 + $0x8] sm:$0xff]
        %v725 = vld [vmem:[#allocation2 + $0x10] sm:$0x7f]
        %v726 = vld [vmem:[#allocation6] sm:$0xf]
        %v727 = vld [vmem:[#allocation6 + $0x4] sm:$0xf]
        %v728 = vld [vmem:[#allocation6 + $0x8] sm:$0xf]
        %v729 = vld [vmem:[#allocation6 + $0xc] sm:$0xf]
        %v730 = vld [vmem:[#allocation6 + $0x10] sm:$0xf]
        %v731 = vld [vmem:[#allocation6 + $0x14] sm:$0xf]
        %v732 = vld [vmem:[#allocation6 + $0x18] sm:$0xf]
        %v733 = vld [vmem:[#allocation6 + $0x1c] sm:$0xf]
        %v734 = vld [vmem:[#allocation6 + $0x20] sm:$0xf]
        %v735 = vld [vmem:[#allocation6 + $0x24] sm:$0xf]
        %v736 = vld [vmem:[#allocation6 + $0x28] sm:$0xf]
        %v737 = vld [vmem:[#allocation6 + $0x2c] sm:$0xf]
        %v738 = vld [vmem:[#allocation6 + $0x30] sm:$0xf]
        %v739 = vld [vmem:[#allocation6 + $0x34] sm:$0xf]
        %v740 = vld [vmem:[#allocation6 + $0x38] sm:$0xf]
        %v741 = vld [vmem:[#allocation6 + $0x3c] sm:$0xf]
        %vm745 = vcmask 1045504
        %v746 = vrot.slane %v723, 2
        %v747 = vrot.slane %v724, 2
        %v748 = vsel %vm745, %v746, %v747
        %v749 = vrot.slane %v725, 2
        %v750 = vsel %vm745, %v747, %v749
        %v770 = vunpack.c.l.b16 %v726
        %v771 = vunpack.c.l.b16 %v727
        %v772 = vunpack.c.l.b16 %v728
        %v773 = vunpack.c.l.b16 %v729
        %v774 = vunpack.c.l.b16 %v730
        %v775 = vunpack.c.l.b16 %v731
        %v776 = vunpack.c.l.b16 %v732
        %v777 = vunpack.c.l.b16 %v733
        %v778 = vunpack.c.l.b16 %v734
        %v779 = vunpack.c.l.b16 %v735
        %v780 = vunpack.c.l.b16 %v736
        %v781 = vunpack.c.l.b16 %v737
        %v782 = vunpack.c.l.b16 %v738
        %v783 = vunpack.c.l.b16 %v739
        %v784 = vunpack.c.l.b16 %v740
        %v785 = vunpack.c.l.b16 %v741
        %v786 = vpack.c.b16 %v771, %v770
        %v787 = vpack.c.b16 %v773, %v772
        %v788 = vpack.c.b16 %v775, %v774
        %v789 = vpack.c.b16 %v777, %v776
        %v790 = vpack.c.b16 %v779, %v778
        %v791 = vpack.c.b16 %v781, %v780
        %v792 = vpack.c.b16 %v783, %v782
        %v793 = vpack.c.b16 %v785, %v784
        %802 = vmatprep.subr.bf16.mxu0 0
        %803 = vmatpush1.bf16.msra.mxu0 %v786
        %804 = vmatprep.subr.bf16.mxu0 0
        %805 = vmatpush1.bf16.msra.mxu0 %v787
        %806 = vmatprep.subr.bf16.mxu0 0
        %807 = vmatpush1.bf16.msra.mxu0 %v788
        %808 = vmatprep.subr.bf16.mxu0 0
        %809 = vmatpush1.bf16.msra.mxu0 %v789
        %810 = vmatprep.subr.bf16.mxu0 0
        %811 = vmatpush1.bf16.msra.mxu0 %v790
        %812 = vmatprep.subr.bf16.mxu0 0
        %813 = vmatpush1.bf16.msra.mxu0 %v791
        %814 = vmatprep.subr.bf16.mxu0 0
        %815 = vmatpush1.bf16.msra.mxu0 %v792
        %816 = vmatprep.subr.bf16.mxu0 0
        %817 = vmatpush1.bf16.msra.mxu0 %v793
        %818 = vmatprep.subr.bf16.mxu0 0
        %819 = vmatpush1.bf16.msra.mxu0 0
        %820 = vmatprep.subr.bf16.mxu0 0
        %821 = vmatpush1.bf16.msra.mxu0 0
        %822 = vmatprep.subr.bf16.mxu0 0
        %823 = vmatpush1.bf16.msra.mxu0 0
        %824 = vmatprep.subr.bf16.mxu0 0
        %825 = vmatpush1.bf16.msra.mxu0 0
        %826 = vmatprep.subr.bf16.mxu0 0
        %827 = vmatpush1.bf16.msra.mxu0 0
        %828 = vmatprep.subr.bf16.mxu0 0
        %829 = vmatpush1.bf16.msra.mxu0 0
        %830 = vmatprep.subr.bf16.mxu0 0
        %831 = vmatpush1.bf16.msra.mxu0 0
        %832 = vmatprep.subr.bf16.mxu0 0
        %833 = vmatpush1.bf16.msra.mxu0 0
        %834 = vmatprep.mubr.bf16.mxu0 0
        %835 = vmatmul.mubr.bf16.gmra.mrb[0].mxu0 %v748
        %v836 = vpop.f32.mrb[0].mxu0
        %v837 = vadd.f32 0.0, %v836
        %v838 = vpop.f32.mrb[0].mxu0
        %v839 = vpop.f32.mrb[0].mxu0
        %v840 = vadd.f32 0.0, %v839
        %v841 = vpop.f32.mrb[0].mxu0
        %842 = vmatprep.mubr.bf16.mxu0 0
        %843 = vmatmul.mubr.bf16.gmra.mrb[0].mxu0 %v750
        %v844 = vpop.f32.mrb[0].mxu0
        %v845 = vadd.f32 0.0, %v844
        %v846 = vpop.f32.mrb[0].mxu0
        %v847 = vpop.f32.mrb[0].mxu0
        %v848 = vadd.f32 0.0, %v847
        %v849 = vpop.f32.mrb[0].mxu0
        %850 = vmatprep.mubr.bf16.mxu0 0
        %851 = vmatmul.mubr.bf16.gmra.mrb[0].mxu0 %v749
        %v852 = vpop.f32.mrb[0].mxu0
        %v853 = vadd.f32 0.0, %v852
        %v854 = vpop.f32.mrb[0].mxu0
        %v855 = vpop.f32.mrb[0].mxu0
        %v856 = vadd.f32 0.0, %v855
        %v857 = vpop.f32.mrb[0].mxu0
        %858 = vdwg.mxu0
        %v859 = vadd.f32 %v721, %v837
        %v860 = vadd.f32 %v721, %v840
        %v861 = vadd.f32 %v721, %v845
        %v862 = vadd.f32 %v721, %v848
        %v863 = vadd.f32 %v721, %v853
        %v864 = vadd.f32 %v721, %v856
        %v865 = vld [vmem:[#allocation2 + $0x10] sm:$0xff]
        %s866 = scalar_lea.vmem [#allocation6], 64
        %v867 = vld [vmem:[%s866] sm:$0xf]
        %v868 = vld [vmem:[%s866 + $0x4] sm:$0xf]
        %v869 = vld [vmem:[%s866 + $0x8] sm:$0xf]
        %v870 = vld [vmem:[%s866 + $0xc] sm:$0xf]
        %v871 = vld [vmem:[%s866 + $0x10] sm:$0xf]
        %v872 = vld [vmem:[%s866 + $0x14] sm:$0xf]
        %v873 = vld [vmem:[%s866 + $0x18] sm:$0xf]
        %v874 = vld [vmem:[%s866 + $0x1c] sm:$0xf]
        %v875 = vld [vmem:[%s866 + $0x20] sm:$0xf]
        %v876 = vld [vmem:[%s866 + $0x24] sm:$0xf]
        %v877 = vld [vmem:[%s866 + $0x28] sm:$0xf]
        %v878 = vld [vmem:[%s866 + $0x2c] sm:$0xf]
        %v879 = vld [vmem:[%s866 + $0x30] sm:$0xf]
        %v880 = vld [vmem:[%s866 + $0x34] sm:$0xf]
        %v881 = vld [vmem:[%s866 + $0x38] sm:$0xf]
        %v882 = vld [vmem:[%s866 + $0x3c] sm:$0xf]
        %vm883 = vsmask.f32 5376
        %v885 = vshrl.u32 %v723, 16
        %v887 = vrot.slane %v885, 2
        %v888 = vshll.u32 %v723, 16
        %v890 = vrot.slane %v888, 3
        %v891 = vor.u32 %v887, %v890
        %v893 = vshrl.u32 %v724, 16
        %v895 = vrot.slane %v893, 2
        %v896 = vshll.u32 %v724, 16
        %v898 = vrot.slane %v896, 3
        %v899 = vor.u32 %v895, %v898
        %v900 = vsel %vm883, %v891, %v899
        %v902 = vshrl.u32 %v865, 16
        %v904 = vrot.slane %v902, 2
        %v905 = vshll.u32 %v865, 16
        %v907 = vrot.slane %v905, 3
        %v908 = vor.u32 %v904, %v907
        %v909 = vsel %vm883, %v899, %v908
        %v929 = vunpack.c.l.b16 %v867
        %v930 = vunpack.c.l.b16 %v868
        %v931 = vunpack.c.l.b16 %v869
        %v932 = vunpack.c.l.b16 %v870
        %v933 = vunpack.c.l.b16 %v871
        %v934 = vunpack.c.l.b16 %v872
        %v935 = vunpack.c.l.b16 %v873
        %v936 = vunpack.c.l.b16 %v874
        %v937 = vunpack.c.l.b16 %v875
        %v938 = vunpack.c.l.b16 %v876
        %v939 = vunpack.c.l.b16 %v877
        %v940 = vunpack.c.l.b16 %v878
        %v941 = vunpack.c.l.b16 %v879
        %v942 = vunpack.c.l.b16 %v880
        %v943 = vunpack.c.l.b16 %v881
        %v944 = vunpack.c.l.b16 %v882
        %v945 = vpack.c.b16 %v930, %v929
        %v946 = vpack.c.b16 %v932, %v931
        %v947 = vpack.c.b16 %v934, %v933
        %v948 = vpack.c.b16 %v936, %v935
        %v949 = vpack.c.b16 %v938, %v937
        %v950 = vpack.c.b16 %v940, %v939
        %v951 = vpack.c.b16 %v942, %v941
        %v952 = vpack.c.b16 %v944, %v943
        %961 = vmatprep.subr.bf16.mxu0 0
        %962 = vmatpush1.bf16.msra.mxu0 %v945
        %963 = vmatprep.subr.bf16.mxu0 0
        %964 = vmatpush1.bf16.msra.mxu0 %v946
        %965 = vmatprep.subr.bf16.mxu0 0
        %966 = vmatpush1.bf16.msra.mxu0 %v947
        %967 = vmatprep.subr.bf16.mxu0 0
        %968 = vmatpush1.bf16.msra.mxu0 %v948
        %969 = vmatprep.subr.bf16.mxu0 0
        %970 = vmatpush1.bf16.msra.mxu0 %v949
        %971 = vmatprep.subr.bf16.mxu0 0
        %972 = vmatpush1.bf16.msra.mxu0 %v950
        %973 = vmatprep.subr.bf16.mxu0 0
        %974 = vmatpush1.bf16.msra.mxu0 %v951
        %975 = vmatprep.subr.bf16.mxu0 0
        %976 = vmatpush1.bf16.msra.mxu0 %v952
        %977 = vmatprep.subr.bf16.mxu0 0
        %978 = vmatpush1.bf16.msra.mxu0 0
        %979 = vmatprep.subr.bf16.mxu0 0
        %980 = vmatpush1.bf16.msra.mxu0 0
        %981 = vmatprep.subr.bf16.mxu0 0
        %982 = vmatpush1.bf16.msra.mxu0 0
        %983 = vmatprep.subr.bf16.mxu0 0
        %984 = vmatpush1.bf16.msra.mxu0 0
        %985 = vmatprep.subr.bf16.mxu0 0
        %986 = vmatpush1.bf16.msra.mxu0 0
        %987 = vmatprep.subr.bf16.mxu0 0
        %988 = vmatpush1.bf16.msra.mxu0 0
        %989 = vmatprep.subr.bf16.mxu0 0
        %990 = vmatpush1.bf16.msra.mxu0 0
        %991 = vmatprep.subr.bf16.mxu0 0
        %992 = vmatpush1.bf16.msra.mxu0 0
        %993 = vmatprep.mubr.bf16.mxu0 0
        %994 = vmatmul.mubr.bf16.gmra.mrb[0].mxu0 %v900
        %v995 = vpop.f32.mrb[0].mxu0
        %v996 = vadd.f32 0.0, %v995
        %v997 = vpop.f32.mrb[0].mxu0
        %v998 = vpop.f32.mrb[0].mxu0
        %v999 = vadd.f32 0.0, %v998
        %v1000 = vpop.f32.mrb[0].mxu0
        %1001 = vmatprep.mubr.bf16.mxu0 0
        %1002 = vmatmul.mubr.bf16.gmra.mrb[0].mxu0 %v909
        %v1003 = vpop.f32.mrb[0].mxu0
        %v1004 = vadd.f32 0.0, %v1003
        %v1005 = vpop.f32.mrb[0].mxu0
        %v1006 = vpop.f32.mrb[0].mxu0
        %v1007 = vadd.f32 0.0, %v1006
        %v1008 = vpop.f32.mrb[0].mxu0
        %1009 = vmatprep.mubr.bf16.mxu0 0
        %1010 = vmatmul.mubr.bf16.gmra.mrb[0].mxu0 %v908
        %v1011 = vpop.f32.mrb[0].mxu0
        %v1012 = vadd.f32 0.0, %v1011
        %v1013 = vpop.f32.mrb[0].mxu0
        %v1014 = vpop.f32.mrb[0].mxu0
        %v1015 = vadd.f32 0.0, %v1014
        %v1016 = vpop.f32.mrb[0].mxu0
        %1017 = vdwg.mxu0
        %v1018 = vadd.f32 %v859, %v996
        %v1019 = vadd.f32 %v860, %v999
        %v1020 = vadd.f32 %v861, %v1004
        %v1021 = vadd.f32 %v862, %v1007
        %v1022 = vadd.f32 %v863, %v1012
        %v1023 = vadd.f32 %v864, %v1015
        %v1024 = vld [vmem:[#allocation2] sm:$0xf8]
        %s1025 = scalar_lea.vmem [#allocation6], 128
        %v1026 = vld [vmem:[%s1025] sm:$0xf]
        %v1027 = vld [vmem:[%s1025 + $0x4] sm:$0xf]
        %v1028 = vld [vmem:[%s1025 + $0x8] sm:$0xf]
        %v1029 = vld [vmem:[%s1025 + $0xc] sm:$0xf]
        %v1030 = vld [vmem:[%s1025 + $0x10] sm:$0xf]
        %v1031 = vld [vmem:[%s1025 + $0x14] sm:$0xf]
        %v1032 = vld [vmem:[%s1025 + $0x18] sm:$0xf]
        %v1033 = vld [vmem:[%s1025 + $0x1c] sm:$0xf]
        %v1034 = vld [vmem:[%s1025 + $0x20] sm:$0xf]
        %v1035 = vld [vmem:[%s1025 + $0x24] sm:$0xf]
        %v1036 = vld [vmem:[%s1025 + $0x28] sm:$0xf]
        %v1037 = vld [vmem:[%s1025 + $0x2c] sm:$0xf]
        %v1038 = vld [vmem:[%s1025 + $0x30] sm:$0xf]
        %v1039 = vld [vmem:[%s1025 + $0x34] sm:$0xf]
        %v1040 = vld [vmem:[%s1025 + $0x38] sm:$0xf]
        %v1041 = vld [vmem:[%s1025 + $0x3c] sm:$0xf]
        %vm1044 = vcmask 1044480
        %v1045 = vrot.slane %v1024, 3
        %v1046 = vrot.slane %v724, 3
        %v1047 = vsel %vm1044, %v1045, %v1046
        %v1048 = vrot.slane %v865, 3
        %v1049 = vsel %vm1044, %v1046, %v1048
        %v1069 = vunpack.c.l.b16 %v1026
        %v1070 = vunpack.c.l.b16 %v1027
        %v1071 = vunpack.c.l.b16 %v1028
        %v1072 = vunpack.c.l.b16 %v1029
        %v1073 = vunpack.c.l.b16 %v1030
        %v1074 = vunpack.c.l.b16 %v1031
        %v1075 = vunpack.c.l.b16 %v1032
        %v1076 = vunpack.c.l.b16 %v1033
        %v1077 = vunpack.c.l.b16 %v1034
        %v1078 = vunpack.c.l.b16 %v1035
        %v1079 = vunpack.c.l.b16 %v1036
        %v1080 = vunpack.c.l.b16 %v1037
        %v1081 = vunpack.c.l.b16 %v1038
        %v1082 = vunpack.c.l.b16 %v1039
        %v1083 = vunpack.c.l.b16 %v1040
        %v1084 = vunpack.c.l.b16 %v1041
        %v1085 = vpack.c.b16 %v1070, %v1069
        %v1086 = vpack.c.b16 %v1072, %v1071
        %v1087 = vpack.c.b16 %v1074, %v1073
        %v1088 = vpack.c.b16 %v1076, %v1075
        %v1089 = vpack.c.b16 %v1078, %v1077
        %v1090 = vpack.c.b16 %v1080, %v1079
        %v1091 = vpack.c.b16 %v1082, %v1081
        %v1092 = vpack.c.b16 %v1084, %v1083
        %1101 = vmatprep.subr.bf16.mxu0 0
        %1102 = vmatpush1.bf16.msra.mxu0 %v1085
        %1103 = vmatprep.subr.bf16.mxu0 0
        %1104 = vmatpush1.bf16.msra.mxu0 %v1086
        %1105 = vmatprep.subr.bf16.mxu0 0
        %1106 = vmatpush1.bf16.msra.mxu0 %v1087
        %1107 = vmatprep.subr.bf16.mxu0 0
        %1108 = vmatpush1.bf16.msra.mxu0 %v1088
        %1109 = vmatprep.subr.bf16.mxu0 0
        %1110 = vmatpush1.bf16.msra.mxu0 %v1089
        %1111 = vmatprep.subr.bf16.mxu0 0
        %1112 = vmatpush1.bf16.msra.mxu0 %v1090
        %1113 = vmatprep.subr.bf16.mxu0 0
        %1114 = vmatpush1.bf16.msra.mxu0 %v1091
        %1115 = vmatprep.subr.bf16.mxu0 0
        %1116 = vmatpush1.bf16.msra.mxu0 %v1092
        %1117 = vmatprep.subr.bf16.mxu0 0
        %1118 = vmatpush1.bf16.msra.mxu0 0
        %1119 = vmatprep.subr.bf16.mxu0 0
        %1120 = vmatpush1.bf16.msra.mxu0 0
        %1121 = vmatprep.subr.bf16.mxu0 0
        %1122 = vmatpush1.bf16.msra.mxu0 0
        %1123 = vmatprep.subr.bf16.mxu0 0
        %1124 = vmatpush1.bf16.msra.mxu0 0
        %1125 = vmatprep.subr.bf16.mxu0 0
        %1126 = vmatpush1.bf16.msra.mxu0 0
        %1127 = vmatprep.subr.bf16.mxu0 0
        %1128 = vmatpush1.bf16.msra.mxu0 0
        %1129 = vmatprep.subr.bf16.mxu0 0
        %1130 = vmatpush1.bf16.msra.mxu0 0
        %1131 = vmatprep.subr.bf16.mxu0 0
        %1132 = vmatpush1.bf16.msra.mxu0 0
        %1133 = vmatprep.mubr.bf16.mxu0 0
        %1134 = vmatmul.mubr.bf16.gmra.mrb[0].mxu0 %v1047
        %v1135 = vpop.f32.mrb[0].mxu0
        %v1136 = vadd.f32 0.0, %v1135
        %v1137 = vpop.f32.mrb[0].mxu0
        %v1138 = vpop.f32.mrb[0].mxu0
        %v1139 = vadd.f32 0.0, %v1138
        %v1140 = vpop.f32.mrb[0].mxu0
        %1141 = vmatprep.mubr.bf16.mxu0 0
        %1142 = vmatmul.mubr.bf16.gmra.mrb[0].mxu0 %v1049
        %v1143 = vpop.f32.mrb[0].mxu0
        %v1144 = vadd.f32 0.0, %v1143
        %v1145 = vpop.f32.mrb[0].mxu0
        %v1146 = vpop.f32.mrb[0].mxu0
        %v1147 = vadd.f32 0.0, %v1146
        %v1148 = vpop.f32.mrb[0].mxu0
        %1149 = vmatprep.mubr.bf16.mxu0 0
        %1150 = vmatmul.mubr.bf16.gmra.mrb[0].mxu0 %v1048
        %v1151 = vpop.f32.mrb[0].mxu0
        %v1152 = vadd.f32 0.0, %v1151
        %v1153 = vpop.f32.mrb[0].mxu0
        %v1154 = vpop.f32.mrb[0].mxu0
        %v1155 = vadd.f32 0.0, %v1154
        %v1156 = vpop.f32.mrb[0].mxu0
        %1157 = vdwg.mxu0
        %v1158 = vadd.f32 %v1018, %v1136
        %v1159 = vadd.f32 %v1019, %v1139
        %v1160 = vadd.f32 %v1020, %v1144
        %v1161 = vadd.f32 %v1021, %v1147
        %v1162 = vadd.f32 %v1022, %v1152
        %v1163 = vadd.f32 %v1023, %v1155
        %v1164 = vmax.f32 %v1158, 0.0
        %v1165 = vmax.f32 %v1159, 0.0
        %v1166 = vmax.f32 %v1160, 0.0
        %v1167 = vmax.f32 %v1161, 0.0
        %v1168 = vmax.f32 %v1162, 0.0
        %v1169 = vmax.f32 %v1163, 0.0
        %s1170 = ssub.s32 26, %s704
        %v1171 = vlaneseq
        %v1172 = vshrl.u32 %v1171, 7
        %v1173 = vadd.s32 %v1172, 8
        %v1174 = vadd.s32 %v1172, 16
        %v1175 = vadd.s32 %v1172, 24
        %v1176 = vadd.s32 %v1172, 32
        %v1177 = vadd.s32 %v1172, 40
        %v1178 = vstv %s1170
        %vm1179 = vcmp.lt.s32.totalorder %v1172, %v1178
        %vm1180 = vcmp.lt.s32.totalorder %v1173, %v1178
        %vm1181 = vcmp.lt.s32.totalorder %v1174, %v1178
        %vm1182 = vcmp.lt.s32.totalorder %v1175, %v1178
        %vm1183 = vcmp.lt.s32.totalorder %v1176, %v1178
        %vm1184 = vcmp.lt.s32.totalorder %v1177, %v1178
        %v1185 = vsel %vm1179, 1, 0
        %v1186 = vsel %vm1180, 1, 0
        %v1187 = vsel %vm1181, 1, 0
        %v1188 = vsel %vm1182, 1, 0
        %v1189 = vsel %vm1183, 1, 0
        %v1190 = vsel %vm1184, 1, 0
        %vm1191 = vcmp.eq.s32.totalorder %v1185, 1
        %vm1192 = vcmp.eq.s32.totalorder %v1186, 1
        %vm1193 = vcmp.eq.s32.totalorder %v1187, 1
        %vm1194 = vcmp.eq.s32.totalorder %v1188, 1
        %vm1195 = vcmp.eq.s32.totalorder %v1189, 1
        %vm1196 = vcmp.eq.s32.totalorder %v1190, 1
        %v1197 = vsel %vm1191, 0.0, %v1164
        %v1198 = vsel %vm1192, 0.0, %v1165
        %v1199 = vsel %vm1193, 0.0, %v1166
        %v1200 = vsel %vm1194, 0.0, %v1167
        %v1201 = vsel %vm1195, 0.0, %v1168
        %v1202 = vsel %vm1196, 0.0, %v1169
        %v1203 = vpack.c.bf16 %v1198, %v1197
        %v1204 = vpack.c.bf16 %v1200, %v1199
        %v1205 = vpack.c.bf16 %v1202, %v1201
        %v1206 = vld [vmem:[%s4] sm:$0x1]
        %v1208 = vlaneseq
        %v1209 = vshrl.u32 %v1208, 7
        %v1210 = vsub.s32 0, %v1209
        %v1211 = vrot.slane %v1206, %v1210
        %v1213 = vld [vmem:[#allocation8] sm:$0xf]
        %v1214 = vld [vmem:[#allocation8 + $0x4] sm:$0xf]
        %v1215 = vld [vmem:[#allocation8 + $0x8] sm:$0xf]
        %v1216 = vld [vmem:[#allocation8 + $0xc] sm:$0xf]
        %v1217 = vld [vmem:[#allocation8 + $0x10] sm:$0xf]
        %v1218 = vld [vmem:[#allocation8 + $0x14] sm:$0xf]
        %v1219 = vld [vmem:[#allocation8 + $0x18] sm:$0xf]
        %v1220 = vld [vmem:[#allocation8 + $0x1c] sm:$0xf]
        %v1221 = vld [vmem:[#allocation8 + $0x20] sm:$0xf]
        %v1222 = vld [vmem:[#allocation8 + $0x24] sm:$0xf]
        %v1223 = vld [vmem:[#allocation8 + $0x28] sm:$0xf]
        %v1224 = vld [vmem:[#allocation8 + $0x2c] sm:$0xf]
        %v1225 = vld [vmem:[#allocation8 + $0x30] sm:$0xf]
        %v1226 = vld [vmem:[#allocation8 + $0x34] sm:$0xf]
        %v1227 = vld [vmem:[#allocation8 + $0x38] sm:$0xf]
        %v1228 = vld [vmem:[#allocation8 + $0x3c] sm:$0xf]
        %v1245 = vunpack.c.l.b16 %v1213
        %v1246 = vunpack.c.l.b16 %v1214
        %v1247 = vunpack.c.l.b16 %v1215
        %v1248 = vunpack.c.l.b16 %v1216
        %v1249 = vunpack.c.l.b16 %v1217
        %v1250 = vunpack.c.l.b16 %v1218
        %v1251 = vunpack.c.l.b16 %v1219
        %v1252 = vunpack.c.l.b16 %v1220
        %v1253 = vunpack.c.l.b16 %v1221
        %v1254 = vunpack.c.l.b16 %v1222
        %v1255 = vunpack.c.l.b16 %v1223
        %v1256 = vunpack.c.l.b16 %v1224
        %v1257 = vunpack.c.l.b16 %v1225
        %v1258 = vunpack.c.l.b16 %v1226
        %v1259 = vunpack.c.l.b16 %v1227
        %v1260 = vunpack.c.l.b16 %v1228
        %v1261 = vpack.c.b16 %v1246, %v1245
        %v1262 = vpack.c.b16 %v1248, %v1247
        %v1263 = vpack.c.b16 %v1250, %v1249
        %v1264 = vpack.c.b16 %v1252, %v1251
        %v1265 = vpack.c.b16 %v1254, %v1253
        %v1266 = vpack.c.b16 %v1256, %v1255
        %v1267 = vpack.c.b16 %v1258, %v1257
        %v1268 = vpack.c.b16 %v1260, %v1259
        %1277 = vmatprep.subr.bf16.mxu0 0
        %1278 = vmatpush1.bf16.msra.mxu0 %v1261
        %1279 = vmatprep.subr.bf16.mxu0 0
        %1280 = vmatpush1.bf16.msra.mxu0 %v1262
        %1281 = vmatprep.subr.bf16.mxu0 0
        %1282 = vmatpush1.bf16.msra.mxu0 %v1263
        %1283 = vmatprep.subr.bf16.mxu0 0
        %1284 = vmatpush1.bf16.msra.mxu0 %v1264
        %1285 = vmatprep.subr.bf16.mxu0 0
        %1286 = vmatpush1.bf16.msra.mxu0 %v1265
        %1287 = vmatprep.subr.bf16.mxu0 0
        %1288 = vmatpush1.bf16.msra.mxu0 %v1266
        %1289 = vmatprep.subr.bf16.mxu0 0
        %1290 = vmatpush1.bf16.msra.mxu0 %v1267
        %1291 = vmatprep.subr.bf16.mxu0 0
        %1292 = vmatpush1.bf16.msra.mxu0 %v1268
        %1293 = vmatprep.subr.bf16.mxu0 0
        %1294 = vmatpush1.bf16.msra.mxu0 0
        %1295 = vmatprep.subr.bf16.mxu0 0
        %1296 = vmatpush1.bf16.msra.mxu0 0
        %1297 = vmatprep.subr.bf16.mxu0 0
        %1298 = vmatpush1.bf16.msra.mxu0 0
        %1299 = vmatprep.subr.bf16.mxu0 0
        %1300 = vmatpush1.bf16.msra.mxu0 0
        %1301 = vmatprep.subr.bf16.mxu0 0
        %1302 = vmatpush1.bf16.msra.mxu0 0
        %1303 = vmatprep.subr.bf16.mxu0 0
        %1304 = vmatpush1.bf16.msra.mxu0 0
        %1305 = vmatprep.subr.bf16.mxu0 0
        %1306 = vmatpush1.bf16.msra.mxu0 0
        %1307 = vmatprep.subr.bf16.mxu0 0
        %1308 = vmatpush1.bf16.msra.mxu0 0
        %1309 = vmatprep.mubr.bf16.mxu0 0
        %1310 = vmatmul.mubr.bf16.gmra.mrb[0].mxu0 %v1203
        %v1311 = vpop.f32.mrb[0].mxu0
        %v1312 = vadd.f32 0.0, %v1311
        %v1313 = vpop.f32.mrb[0].mxu0
        %v1314 = vpop.f32.mrb[0].mxu0
        %v1315 = vadd.f32 0.0, %v1314
        %v1316 = vpop.f32.mrb[0].mxu0
        %1317 = vmatprep.mubr.bf16.mxu0 0
        %1318 = vmatmul.mubr.bf16.gmra.mrb[0].mxu0 %v1204
        %v1319 = vpop.f32.mrb[0].mxu0
        %v1320 = vadd.f32 0.0, %v1319
        %v1321 = vpop.f32.mrb[0].mxu0
        %v1322 = vpop.f32.mrb[0].mxu0
        %v1323 = vadd.f32 0.0, %v1322
        %v1324 = vpop.f32.mrb[0].mxu0
        %1325 = vmatprep.mubr.bf16.mxu0 0
        %1326 = vmatmul.mubr.bf16.gmra.mrb[0].mxu0 %v1205
        %v1327 = vpop.f32.mrb[0].mxu0
        %v1328 = vadd.f32 0.0, %v1327
        %v1329 = vpop.f32.mrb[0].mxu0
        %v1330 = vpop.f32.mrb[0].mxu0
        %v1331 = vpop.f32.mrb[0].mxu0
        %1332 = vdwg.mxu0
        %v1333 = vadd.f32 %v1211, %v1312
        %v1334 = vadd.f32 %v1211, %v1315
        %v1335 = vadd.f32 %v1211, %v1320
        %v1336 = vadd.f32 %v1211, %v1323
        %v1337 = vadd.f32 %v1211, %v1328
        %s1338 = scalar_lea.vmem [#allocation8], 64
        %v1339 = vld [vmem:[%s1338] sm:$0xf]
        %v1340 = vld [vmem:[%s1338 + $0x4] sm:$0xf]
        %v1341 = vld [vmem:[%s1338 + $0x8] sm:$0xf]
        %v1342 = vld [vmem:[%s1338 + $0xc] sm:$0xf]
        %v1343 = vld [vmem:[%s1338 + $0x10] sm:$0xf]
        %v1344 = vld [vmem:[%s1338 + $0x14] sm:$0xf]
        %v1345 = vld [vmem:[%s1338 + $0x18] sm:$0xf]
        %v1346 = vld [vmem:[%s1338 + $0x1c] sm:$0xf]
        %v1347 = vld [vmem:[%s1338 + $0x20] sm:$0xf]
        %v1348 = vld [vmem:[%s1338 + $0x24] sm:$0xf]
        %v1349 = vld [vmem:[%s1338 + $0x28] sm:$0xf]
        %v1350 = vld [vmem:[%s1338 + $0x2c] sm:$0xf]
        %v1351 = vld [vmem:[%s1338 + $0x30] sm:$0xf]
        %v1352 = vld [vmem:[%s1338 + $0x34] sm:$0xf]
        %v1353 = vld [vmem:[%s1338 + $0x38] sm:$0xf]
        %v1354 = vld [vmem:[%s1338 + $0x3c] sm:$0xf]
        %vm1355 = vsmask.f32 7424
        %v1357 = vshrl.u32 %v1203, 16
        %v1359 = vshll.u32 %v1203, 16
        %v1361 = vrot.slane %v1359, 1
        %v1362 = vor.u32 %v1357, %v1361
        %v1364 = vshll.u32 %v1204, 16
        %v1366 = vrot.slane %v1364, 1
        %v1367 = vsel %vm1355, %v1362, %v1366
        %v1368 = vshrl.u32 %v1204, 16
        %v1370 = vor.u32 %v1368, %v1366
        %v1372 = vshll.u32 %v1205, 16
        %v1374 = vrot.slane %v1372, 1
        %v1375 = vsel %vm1355, %v1370, %v1374
        %v1376 = vshrl.u32 %v1205, 16
        %v1378 = vor.u32 %v1376, %v1374
        %v1398 = vunpack.c.l.b16 %v1339
        %v1399 = vunpack.c.l.b16 %v1340
        %v1400 = vunpack.c.l.b16 %v1341
        %v1401 = vunpack.c.l.b16 %v1342
        %v1402 = vunpack.c.l.b16 %v1343
        %v1403 = vunpack.c.l.b16 %v1344
        %v1404 = vunpack.c.l.b16 %v1345
        %v1405 = vunpack.c.l.b16 %v1346
        %v1406 = vunpack.c.l.b16 %v1347
        %v1407 = vunpack.c.l.b16 %v1348
        %v1408 = vunpack.c.l.b16 %v1349
        %v1409 = vunpack.c.l.b16 %v1350
        %v1410 = vunpack.c.l.b16 %v1351
        %v1411 = vunpack.c.l.b16 %v1352
        %v1412 = vunpack.c.l.b16 %v1353
        %v1413 = vunpack.c.l.b16 %v1354
        %v1414 = vpack.c.b16 %v1399, %v1398
        %v1415 = vpack.c.b16 %v1401, %v1400
        %v1416 = vpack.c.b16 %v1403, %v1402
        %v1417 = vpack.c.b16 %v1405, %v1404
        %v1418 = vpack.c.b16 %v1407, %v1406
        %v1419 = vpack.c.b16 %v1409, %v1408
        %v1420 = vpack.c.b16 %v1411, %v1410
        %v1421 = vpack.c.b16 %v1413, %v1412
        %1430 = vmatprep.subr.bf16.mxu0 0
        %1431 = vmatpush1.bf16.msra.mxu0 %v1414
        %1432 = vmatprep.subr.bf16.mxu0 0
        %1433 = vmatpush1.bf16.msra.mxu0 %v1415
        %1434 = vmatprep.subr.bf16.mxu0 0
        %1435 = vmatpush1.bf16.msra.mxu0 %v1416
        %1436 = vmatprep.subr.bf16.mxu0 0
        %1437 = vmatpush1.bf16.msra.mxu0 %v1417
        %1438 = vmatprep.subr.bf16.mxu0 0
        %1439 = vmatpush1.bf16.msra.mxu0 %v1418
        %1440 = vmatprep.subr.bf16.mxu0 0
        %1441 = vmatpush1.bf16.msra.mxu0 %v1419
        %1442 = vmatprep.subr.bf16.mxu0 0
        %1443 = vmatpush1.bf16.msra.mxu0 %v1420
        %1444 = vmatprep.subr.bf16.mxu0 0
        %1445 = vmatpush1.bf16.msra.mxu0 %v1421
        %1446 = vmatprep.subr.bf16.mxu0 0
        %1447 = vmatpush1.bf16.msra.mxu0 0
        %1448 = vmatprep.subr.bf16.mxu0 0
        %1449 = vmatpush1.bf16.msra.mxu0 0
        %1450 = vmatprep.subr.bf16.mxu0 0
        %1451 = vmatpush1.bf16.msra.mxu0 0
        %1452 = vmatprep.subr.bf16.mxu0 0
        %1453 = vmatpush1.bf16.msra.mxu0 0
        %1454 = vmatprep.subr.bf16.mxu0 0
        %1455 = vmatpush1.bf16.msra.mxu0 0
        %1456 = vmatprep.subr.bf16.mxu0 0
        %1457 = vmatpush1.bf16.msra.mxu0 0
        %1458 = vmatprep.subr.bf16.mxu0 0
        %1459 = vmatpush1.bf16.msra.mxu0 0
        %1460 = vmatprep.subr.bf16.mxu0 0
        %1461 = vmatpush1.bf16.msra.mxu0 0
        %1462 = vmatprep.mubr.bf16.mxu0 0
        %1463 = vmatmul.mubr.bf16.gmra.mrb[0].mxu0 %v1367
        %v1464 = vpop.f32.mrb[0].mxu0
        %v1465 = vadd.f32 0.0, %v1464
        %v1466 = vpop.f32.mrb[0].mxu0
        %v1467 = vpop.f32.mrb[0].mxu0
        %v1468 = vadd.f32 0.0, %v1467
        %v1469 = vpop.f32.mrb[0].mxu0
        %1470 = vmatprep.mubr.bf16.mxu0 0
        %1471 = vmatmul.mubr.bf16.gmra.mrb[0].mxu0 %v1375
        %v1472 = vpop.f32.mrb[0].mxu0
        %v1473 = vadd.f32 0.0, %v1472
        %v1474 = vpop.f32.mrb[0].mxu0
        %v1475 = vpop.f32.mrb[0].mxu0
        %v1476 = vadd.f32 0.0, %v1475
        %v1477 = vpop.f32.mrb[0].mxu0
        %1478 = vmatprep.mubr.bf16.mxu0 0
        %1479 = vmatmul.mubr.bf16.gmra.mrb[0].mxu0 %v1378
        %v1480 = vpop.f32.mrb[0].mxu0
        %v1481 = vadd.f32 0.0, %v1480
        %v1482 = vpop.f32.mrb[0].mxu0
        %v1483 = vpop.f32.mrb[0].mxu0
        %v1484 = vpop.f32.mrb[0].mxu0
        %1485 = vdwg.mxu0
        %v1486 = vadd.f32 %v1333, %v1465
        %v1487 = vadd.f32 %v1334, %v1468
        %v1488 = vadd.f32 %v1335, %v1473
        %v1489 = vadd.f32 %v1336, %v1476
        %v1490 = vadd.f32 %v1337, %v1481
        %s1491 = scalar_lea.vmem [#allocation8], 128
        %v1492 = vld [vmem:[%s1491] sm:$0xf]
        %v1493 = vld [vmem:[%s1491 + $0x4] sm:$0xf]
        %v1494 = vld [vmem:[%s1491 + $0x8] sm:$0xf]
        %v1495 = vld [vmem:[%s1491 + $0xc] sm:$0xf]
        %v1496 = vld [vmem:[%s1491 + $0x10] sm:$0xf]
        %v1497 = vld [vmem:[%s1491 + $0x14] sm:$0xf]
        %v1498 = vld [vmem:[%s1491 + $0x18] sm:$0xf]
        %v1499 = vld [vmem:[%s1491 + $0x1c] sm:$0xf]
        %v1500 = vld [vmem:[%s1491 + $0x20] sm:$0xf]
        %v1501 = vld [vmem:[%s1491 + $0x24] sm:$0xf]
        %v1502 = vld [vmem:[%s1491 + $0x28] sm:$0xf]
        %v1503 = vld [vmem:[%s1491 + $0x2c] sm:$0xf]
        %v1504 = vld [vmem:[%s1491 + $0x30] sm:$0xf]
        %v1505 = vld [vmem:[%s1491 + $0x34] sm:$0xf]
        %v1506 = vld [vmem:[%s1491 + $0x38] sm:$0xf]
        %v1507 = vld [vmem:[%s1491 + $0x3c] sm:$0xf]
        %vm1511 = vcmask 1046528
        %v1512 = vrot.slane %v1203, 1
        %v1513 = vrot.slane %v1204, 1
        %v1514 = vsel %vm1511, %v1512, %v1513
        %v1515 = vrot.slane %v1205, 1
        %v1516 = vsel %vm1511, %v1513, %v1515
        %v1536 = vunpack.c.l.b16 %v1492
        %v1537 = vunpack.c.l.b16 %v1493
        %v1538 = vunpack.c.l.b16 %v1494
        %v1539 = vunpack.c.l.b16 %v1495
        %v1540 = vunpack.c.l.b16 %v1496
        %v1541 = vunpack.c.l.b16 %v1497
        %v1542 = vunpack.c.l.b16 %v1498
        %v1543 = vunpack.c.l.b16 %v1499
        %v1544 = vunpack.c.l.b16 %v1500
        %v1545 = vunpack.c.l.b16 %v1501
        %v1546 = vunpack.c.l.b16 %v1502
        %v1547 = vunpack.c.l.b16 %v1503
        %v1548 = vunpack.c.l.b16 %v1504
        %v1549 = vunpack.c.l.b16 %v1505
        %v1550 = vunpack.c.l.b16 %v1506
        %v1551 = vunpack.c.l.b16 %v1507
        %v1552 = vpack.c.b16 %v1537, %v1536
        %v1553 = vpack.c.b16 %v1539, %v1538
        %v1554 = vpack.c.b16 %v1541, %v1540
        %v1555 = vpack.c.b16 %v1543, %v1542
        %v1556 = vpack.c.b16 %v1545, %v1544
        %v1557 = vpack.c.b16 %v1547, %v1546
        %v1558 = vpack.c.b16 %v1549, %v1548
        %v1559 = vpack.c.b16 %v1551, %v1550
        %1568 = vmatprep.subr.bf16.mxu0 0
        %1569 = vmatpush1.bf16.msra.mxu0 %v1552
        %1570 = vmatprep.subr.bf16.mxu0 0
        %1571 = vmatpush1.bf16.msra.mxu0 %v1553
        %1572 = vmatprep.subr.bf16.mxu0 0
        %1573 = vmatpush1.bf16.msra.mxu0 %v1554
        %1574 = vmatprep.subr.bf16.mxu0 0
        %1575 = vmatpush1.bf16.msra.mxu0 %v1555
        %1576 = vmatprep.subr.bf16.mxu0 0
        %1577 = vmatpush1.bf16.msra.mxu0 %v1556
        %1578 = vmatprep.subr.bf16.mxu0 0
        %1579 = vmatpush1.bf16.msra.mxu0 %v1557
        %1580 = vmatprep.subr.bf16.mxu0 0
        %1581 = vmatpush1.bf16.msra.mxu0 %v1558
        %1582 = vmatprep.subr.bf16.mxu0 0
        %1583 = vmatpush1.bf16.msra.mxu0 %v1559
        %1584 = vmatprep.subr.bf16.mxu0 0
        %1585 = vmatpush1.bf16.msra.mxu0 0
        %1586 = vmatprep.subr.bf16.mxu0 0
        %1587 = vmatpush1.bf16.msra.mxu0 0
        %1588 = vmatprep.subr.bf16.mxu0 0
        %1589 = vmatpush1.bf16.msra.mxu0 0
        %1590 = vmatprep.subr.bf16.mxu0 0
        %1591 = vmatpush1.bf16.msra.mxu0 0
        %1592 = vmatprep.subr.bf16.mxu0 0
        %1593 = vmatpush1.bf16.msra.mxu0 0
        %1594 = vmatprep.subr.bf16.mxu0 0
        %1595 = vmatpush1.bf16.msra.mxu0 0
        %1596 = vmatprep.subr.bf16.mxu0 0
        %1597 = vmatpush1.bf16.msra.mxu0 0
        %1598 = vmatprep.subr.bf16.mxu0 0
        %1599 = vmatpush1.bf16.msra.mxu0 0
        %1600 = vmatprep.mubr.bf16.mxu0 0
        %1601 = vmatmul.mubr.bf16.gmra.mrb[0].mxu0 %v1514
        %v1602 = vpop.f32.mrb[0].mxu0
        %v1603 = vadd.f32 0.0, %v1602
        %v1604 = vpop.f32.mrb[0].mxu0
        %v1605 = vpop.f32.mrb[0].mxu0
        %v1606 = vadd.f32 0.0, %v1605
        %v1607 = vpop.f32.mrb[0].mxu0
        %1608 = vmatprep.mubr.bf16.mxu0 0
        %1609 = vmatmul.mubr.bf16.gmra.mrb[0].mxu0 %v1516
        %v1610 = vpop.f32.mrb[0].mxu0
        %v1611 = vadd.f32 0.0, %v1610
        %v1612 = vpop.f32.mrb[0].mxu0
        %v1613 = vpop.f32.mrb[0].mxu0
        %v1614 = vadd.f32 0.0, %v1613
        %v1615 = vpop.f32.mrb[0].mxu0
        %1616 = vmatprep.mubr.bf16.mxu0 0
        %1617 = vmatmul.mubr.bf16.gmra.mrb[0].mxu0 %v1515
        %v1618 = vpop.f32.mrb[0].mxu0
        %v1619 = vadd.f32 0.0, %v1618
        %v1620 = vpop.f32.mrb[0].mxu0
        %v1621 = vpop.f32.mrb[0].mxu0
        %v1622 = vpop.f32.mrb[0].mxu0
        %1623 = vdwg.mxu0
        %v1624 = vadd.f32 %v1486, %v1603
        %v1625 = vadd.f32 %v1487, %v1606
        %v1626 = vadd.f32 %v1488, %v1611
        %v1627 = vadd.f32 %v1489, %v1614
        %v1628 = vadd.f32 %v1490, %v1619
        %v1629 = vmax.f32 %v1624, 0.0
        %v1630 = vmax.f32 %v1625, 0.0
        %v1631 = vmax.f32 %v1626, 0.0
        %v1632 = vmax.f32 %v1627, 0.0
        %v1633 = vmax.f32 %v1628, 0.0
        %v1634 = vld [vmem:[#allocation2] sm:$0xf0]
        %v1635 = vld [vmem:[#allocation9] sm:$0xf]
        %v1636 = vld [vmem:[#allocation9 + $0x4] sm:$0xf]
        %v1637 = vld [vmem:[#allocation9 + $0x8] sm:$0xf]
        %v1638 = vld [vmem:[#allocation9 + $0xc] sm:$0xf]
        %v1639 = vld [vmem:[#allocation9 + $0x10] sm:$0xf]
        %v1640 = vld [vmem:[#allocation9 + $0x14] sm:$0xf]
        %v1641 = vld [vmem:[#allocation9 + $0x18] sm:$0xf]
        %v1642 = vld [vmem:[#allocation9 + $0x1c] sm:$0xf]
        %v1643 = vld [vmem:[#allocation9 + $0x20] sm:$0xf]
        %v1644 = vld [vmem:[#allocation9 + $0x24] sm:$0xf]
        %v1645 = vld [vmem:[#allocation9 + $0x28] sm:$0xf]
        %v1646 = vld [vmem:[#allocation9 + $0x2c] sm:$0xf]
        %v1647 = vld [vmem:[#allocation9 + $0x30] sm:$0xf]
        %v1648 = vld [vmem:[#allocation9 + $0x34] sm:$0xf]
        %v1649 = vld [vmem:[#allocation9 + $0x38] sm:$0xf]
        %v1650 = vld [vmem:[#allocation9 + $0x3c] sm:$0xf]
        %v1651 = vld [vmem:[%s6] sm:$0x1]
        %v1653 = vlaneseq
        %v1654 = vshrl.u32 %v1653, 7
        %v1655 = vsub.s32 0, %v1654
        %v1656 = vrot.slane %v1651, %v1655
        %vm1659 = vcmask 1043456
        %v1660 = vrot.slane %v1634, 4
        %v1661 = vrot.slane %v724, 4
        %v1662 = vsel %vm1659, %v1660, %v1661
        %v1663 = vrot.slane %v865, 4
        %v1664 = vsel %vm1659, %v1661, %v1663
        %v1684 = vunpack.c.l.b16 %v1635
        %v1685 = vunpack.c.l.b16 %v1636
        %v1686 = vunpack.c.l.b16 %v1637
        %v1687 = vunpack.c.l.b16 %v1638
        %v1688 = vunpack.c.l.b16 %v1639
        %v1689 = vunpack.c.l.b16 %v1640
        %v1690 = vunpack.c.l.b16 %v1641
        %v1691 = vunpack.c.l.b16 %v1642
        %v1692 = vunpack.c.l.b16 %v1643
        %v1693 = vunpack.c.l.b16 %v1644
        %v1694 = vunpack.c.l.b16 %v1645
        %v1695 = vunpack.c.l.b16 %v1646
        %v1696 = vunpack.c.l.b16 %v1647
        %v1697 = vunpack.c.l.b16 %v1648
        %v1698 = vunpack.c.l.b16 %v1649
        %v1699 = vunpack.c.l.b16 %v1650
        %v1700 = vpack.c.b16 %v1685, %v1684
        %v1701 = vpack.c.b16 %v1687, %v1686
        %v1702 = vpack.c.b16 %v1689, %v1688
        %v1703 = vpack.c.b16 %v1691, %v1690
        %v1704 = vpack.c.b16 %v1693, %v1692
        %v1705 = vpack.c.b16 %v1695, %v1694
        %v1706 = vpack.c.b16 %v1697, %v1696
        %v1707 = vpack.c.b16 %v1699, %v1698
        %1716 = vmatprep.subr.bf16.mxu0 0
        %1717 = vmatpush1.bf16.msra.mxu0 %v1700
        %1718 = vmatprep.subr.bf16.mxu0 0
        %1719 = vmatpush1.bf16.msra.mxu0 %v1701
        %1720 = vmatprep.subr.bf16.mxu0 0
        %1721 = vmatpush1.bf16.msra.mxu0 %v1702
        %1722 = vmatprep.subr.bf16.mxu0 0
        %1723 = vmatpush1.bf16.msra.mxu0 %v1703
        %1724 = vmatprep.subr.bf16.mxu0 0
        %1725 = vmatpush1.bf16.msra.mxu0 %v1704
        %1726 = vmatprep.subr.bf16.mxu0 0
        %1727 = vmatpush1.bf16.msra.mxu0 %v1705
        %1728 = vmatprep.subr.bf16.mxu0 0
        %1729 = vmatpush1.bf16.msra.mxu0 %v1706
        %1730 = vmatprep.subr.bf16.mxu0 0
        %1731 = vmatpush1.bf16.msra.mxu0 %v1707
        %1732 = vmatprep.subr.bf16.mxu0 0
        %1733 = vmatpush1.bf16.msra.mxu0 0
        %1734 = vmatprep.subr.bf16.mxu0 0
        %1735 = vmatpush1.bf16.msra.mxu0 0
        %1736 = vmatprep.subr.bf16.mxu0 0
        %1737 = vmatpush1.bf16.msra.mxu0 0
        %1738 = vmatprep.subr.bf16.mxu0 0
        %1739 = vmatpush1.bf16.msra.mxu0 0
        %1740 = vmatprep.subr.bf16.mxu0 0
        %1741 = vmatpush1.bf16.msra.mxu0 0
        %1742 = vmatprep.subr.bf16.mxu0 0
        %1743 = vmatpush1.bf16.msra.mxu0 0
        %1744 = vmatprep.subr.bf16.mxu0 0
        %1745 = vmatpush1.bf16.msra.mxu0 0
        %1746 = vmatprep.subr.bf16.mxu0 0
        %1747 = vmatpush1.bf16.msra.mxu0 0
        %1748 = vmatprep.mubr.bf16.mxu0 0
        %1749 = vmatmul.mubr.bf16.gmra.mrb[0].mxu0 %v1662
        %v1750 = vpop.f32.mrb[0].mxu0
        %v1751 = vadd.f32 %v1656, %v1750
        %v1752 = vpop.f32.mrb[0].mxu0
        %v1753 = vpop.f32.mrb[0].mxu0
        %v1754 = vadd.f32 %v1656, %v1753
        %v1755 = vpop.f32.mrb[0].mxu0
        %1756 = vmatprep.mubr.bf16.mxu0 0
        %1757 = vmatmul.mubr.bf16.gmra.mrb[0].mxu0 %v1664
        %v1758 = vpop.f32.mrb[0].mxu0
        %v1759 = vadd.f32 %v1656, %v1758
        %v1760 = vpop.f32.mrb[0].mxu0
        %v1761 = vpop.f32.mrb[0].mxu0
        %v1762 = vadd.f32 %v1656, %v1761
        %v1763 = vpop.f32.mrb[0].mxu0
        %1764 = vmatprep.mubr.bf16.mxu0 0
        %1765 = vmatmul.mubr.bf16.gmra.mrb[0].mxu0 %v1663
        %v1766 = vpop.f32.mrb[0].mxu0
        %v1767 = vadd.f32 %v1656, %v1766
        %v1768 = vpop.f32.mrb[0].mxu0
        %v1769 = vpop.f32.mrb[0].mxu0
        %v1770 = vpop.f32.mrb[0].mxu0
        %1771 = vdwg.mxu0
        %v1772 = vadd.f32 %v1629, %v1751
        %v1773 = vadd.f32 %v1630, %v1754
        %v1774 = vadd.f32 %v1631, %v1759
        %v1775 = vadd.f32 %v1632, %v1762
        %v1776 = vadd.f32 %v1633, %v1767
        %v1777 = vmax.f32 %v1772, 0.0
        %v1778 = vmax.f32 %v1773, 0.0
        %v1779 = vmax.f32 %v1774, 0.0
        %v1780 = vmax.f32 %v1775, 0.0
        %v1781 = vmax.f32 %v1776, 0.0
        %s1782 = ssub.s32 24, %s704
        %v1783 = vstv %s1782
        %vm1784 = vcmp.lt.s32.totalorder %v1172, %v1783
        %vm1785 = vcmp.lt.s32.totalorder %v1173, %v1783
        %vm1786 = vcmp.lt.s32.totalorder %v1174, %v1783
        %vm1787 = vcmp.lt.s32.totalorder %v1175, %v1783
        %vm1788 = vcmp.lt.s32.totalorder %v1176, %v1783
        %v1789 = vsel %vm1784, 1, 0
        %v1790 = vsel %vm1785, 1, 0
        %v1791 = vsel %vm1786, 1, 0
        %v1792 = vsel %vm1787, 1, 0
        %v1793 = vsel %vm1788, 1, 0
        %vm1794 = vcmp.eq.s32.totalorder %v1789, 1
        %vm1795 = vcmp.eq.s32.totalorder %v1790, 1
        %vm1796 = vcmp.eq.s32.totalorder %v1791, 1
        %vm1797 = vcmp.eq.s32.totalorder %v1792, 1
        %vm1798 = vcmp.eq.s32.totalorder %v1793, 1
        %v1799 = vsel %vm1794, 0.0, %v1777
        %v1800 = vsel %vm1795, 0.0, %v1778
        %v1801 = vsel %vm1796, 0.0, %v1779
        %v1802 = vsel %vm1797, 0.0, %v1780
        %v1803 = vsel %vm1798, 0.0, %v1781
        %v1804 = vpack.c.bf16 %v1800, %v1799
        %v1805 = vpack.c.bf16 %v1802, %v1801
        %v1806 = vpack.c.bf16 %v1803, %v1803
        %v1807 = vld [vmem:[%s8] sm:$0x1]
        %v1809 = vlaneseq
        %v1810 = vshrl.u32 %v1809, 7
        %v1811 = vsub.s32 0, %v1810
        %v1812 = vrot.slane %v1807, %v1811
        %v1814 = vld [vmem:[#allocation11] sm:$0xf]
        %v1815 = vld [vmem:[#allocation11 + $0x4] sm:$0xf]
        %v1816 = vld [vmem:[#allocation11 + $0x8] sm:$0xf]
        %v1817 = vld [vmem:[#allocation11 + $0xc] sm:$0xf]
        %v1818 = vld [vmem:[#allocation11 + $0x10] sm:$0xf]
        %v1819 = vld [vmem:[#allocation11 + $0x14] sm:$0xf]
        %v1820 = vld [vmem:[#allocation11 + $0x18] sm:$0xf]
        %v1821 = vld [vmem:[#allocation11 + $0x1c] sm:$0xf]
        %v1822 = vld [vmem:[#allocation11 + $0x20] sm:$0xf]
        %v1823 = vld [vmem:[#allocation11 + $0x24] sm:$0xf]
        %v1824 = vld [vmem:[#allocation11 + $0x28] sm:$0xf]
        %v1825 = vld [vmem:[#allocation11 + $0x2c] sm:$0xf]
        %v1826 = vld [vmem:[#allocation11 + $0x30] sm:$0xf]
        %v1827 = vld [vmem:[#allocation11 + $0x34] sm:$0xf]
        %v1828 = vld [vmem:[#allocation11 + $0x38] sm:$0xf]
        %v1829 = vld [vmem:[#allocation11 + $0x3c] sm:$0xf]
        %v1846 = vunpack.c.l.b16 %v1814
        %v1847 = vunpack.c.l.b16 %v1815
        %v1848 = vunpack.c.l.b16 %v1816
        %v1849 = vunpack.c.l.b16 %v1817
        %v1850 = vunpack.c.l.b16 %v1818
        %v1851 = vunpack.c.l.b16 %v1819
        %v1852 = vunpack.c.l.b16 %v1820
        %v1853 = vunpack.c.l.b16 %v1821
        %v1854 = vunpack.c.l.b16 %v1822
        %v1855 = vunpack.c.l.b16 %v1823
        %v1856 = vunpack.c.l.b16 %v1824
        %v1857 = vunpack.c.l.b16 %v1825
        %v1858 = vunpack.c.l.b16 %v1826
        %v1859 = vunpack.c.l.b16 %v1827
        %v1860 = vunpack.c.l.b16 %v1828
        %v1861 = vunpack.c.l.b16 %v1829
        %v1862 = vpack.c.b16 %v1847, %v1846
        %v1863 = vpack.c.b16 %v1849, %v1848
        %v1864 = vpack.c.b16 %v1851, %v1850
        %v1865 = vpack.c.b16 %v1853, %v1852
        %v1866 = vpack.c.b16 %v1855, %v1854
        %v1867 = vpack.c.b16 %v1857, %v1856
        %v1868 = vpack.c.b16 %v1859, %v1858
        %v1869 = vpack.c.b16 %v1861, %v1860
        %1878 = vmatprep.subr.bf16.mxu0 0
        %1879 = vmatpush1.bf16.msra.mxu0 %v1862
        %1880 = vmatprep.subr.bf16.mxu0 0
        %1881 = vmatpush1.bf16.msra.mxu0 %v1863
        %1882 = vmatprep.subr.bf16.mxu0 0
        %1883 = vmatpush1.bf16.msra.mxu0 %v1864
        %1884 = vmatprep.subr.bf16.mxu0 0
        %1885 = vmatpush1.bf16.msra.mxu0 %v1865
        %1886 = vmatprep.subr.bf16.mxu0 0
        %1887 = vmatpush1.bf16.msra.mxu0 %v1866
        %1888 = vmatprep.subr.bf16.mxu0 0
        %1889 = vmatpush1.bf16.msra.mxu0 %v1867
        %1890 = vmatprep.subr.bf16.mxu0 0
        %1891 = vmatpush1.bf16.msra.mxu0 %v1868
        %1892 = vmatprep.subr.bf16.mxu0 0
        %1893 = vmatpush1.bf16.msra.mxu0 %v1869
        %1894 = vmatprep.subr.bf16.mxu0 0
        %1895 = vmatpush1.bf16.msra.mxu0 0
        %1896 = vmatprep.subr.bf16.mxu0 0
        %1897 = vmatpush1.bf16.msra.mxu0 0
        %1898 = vmatprep.subr.bf16.mxu0 0
        %1899 = vmatpush1.bf16.msra.mxu0 0
        %1900 = vmatprep.subr.bf16.mxu0 0
        %1901 = vmatpush1.bf16.msra.mxu0 0
        %1902 = vmatprep.subr.bf16.mxu0 0
        %1903 = vmatpush1.bf16.msra.mxu0 0
        %1904 = vmatprep.subr.bf16.mxu0 0
        %1905 = vmatpush1.bf16.msra.mxu0 0
        %1906 = vmatprep.subr.bf16.mxu0 0
        %1907 = vmatpush1.bf16.msra.mxu0 0
        %1908 = vmatprep.subr.bf16.mxu0 0
        %1909 = vmatpush1.bf16.msra.mxu0 0
        %1910 = vmatprep.mubr.bf16.mxu0 0
        %1911 = vmatmul.mubr.bf16.gmra.mrb[0].mxu0 %v1804
        %v1912 = vpop.f32.mrb[0].mxu0
        %v1913 = vadd.f32 0.0, %v1912
        %v1914 = vpop.f32.mrb[0].mxu0
        %v1915 = vpop.f32.mrb[0].mxu0
        %v1916 = vadd.f32 0.0, %v1915
        %v1917 = vpop.f32.mrb[0].mxu0
        %1918 = vmatprep.mubr.bf16.mxu0 0
        %1919 = vmatmul.mubr.bf16.gmra.mrb[0].mxu0 %v1805
        %v1920 = vpop.f32.mrb[0].mxu0
        %v1921 = vadd.f32 0.0, %v1920
        %v1922 = vpop.f32.mrb[0].mxu0
        %v1923 = vpop.f32.mrb[0].mxu0
        %v1924 = vadd.f32 0.0, %v1923
        %v1925 = vpop.f32.mrb[0].mxu0
        %1926 = vmatprep.mubr.bf16.mxu0 0
        %1927 = vmatmul.mubr.bf16.gmra.mrb[0].mxu0 %v1806
        %v1928 = vpop.f32.mrb[0].mxu0
        %v1929 = vadd.f32 0.0, %v1928
        %v1930 = vpop.f32.mrb[0].mxu0
        %v1931 = vpop.f32.mrb[0].mxu0
        %v1932 = vpop.f32.mrb[0].mxu0
        %1933 = vdwg.mxu0
        %v1934 = vadd.f32 %v1812, %v1913
        %v1935 = vadd.f32 %v1812, %v1916
        %v1936 = vadd.f32 %v1812, %v1921
        %v1937 = vadd.f32 %v1812, %v1924
        %v1938 = vadd.f32 %v1812, %v1929
        %s1939 = scalar_lea.vmem [#allocation11], 64
        %v1940 = vld [vmem:[%s1939] sm:$0xf]
        %v1941 = vld [vmem:[%s1939 + $0x4] sm:$0xf]
        %v1942 = vld [vmem:[%s1939 + $0x8] sm:$0xf]
        %v1943 = vld [vmem:[%s1939 + $0xc] sm:$0xf]
        %v1944 = vld [vmem:[%s1939 + $0x10] sm:$0xf]
        %v1945 = vld [vmem:[%s1939 + $0x14] sm:$0xf]
        %v1946 = vld [vmem:[%s1939 + $0x18] sm:$0xf]
        %v1947 = vld [vmem:[%s1939 + $0x1c] sm:$0xf]
        %v1948 = vld [vmem:[%s1939 + $0x20] sm:$0xf]
        %v1949 = vld [vmem:[%s1939 + $0x24] sm:$0xf]
        %v1950 = vld [vmem:[%s1939 + $0x28] sm:$0xf]
        %v1951 = vld [vmem:[%s1939 + $0x2c] sm:$0xf]
        %v1952 = vld [vmem:[%s1939 + $0x30] sm:$0xf]
        %v1953 = vld [vmem:[%s1939 + $0x34] sm:$0xf]
        %v1954 = vld [vmem:[%s1939 + $0x38] sm:$0xf]
        %v1955 = vld [vmem:[%s1939 + $0x3c] sm:$0xf]
        %v1959 = vrot.slane %v1804, 1
        %v1960 = vrot.slane %v1805, 1
        %v1961 = vsel %vm1511, %v1959, %v1960
        %v1962 = vrot.slane %v1806, 1
        %v1963 = vsel %vm1511, %v1960, %v1962
        %v1983 = vunpack.c.l.b16 %v1940
        %v1984 = vunpack.c.l.b16 %v1941
        %v1985 = vunpack.c.l.b16 %v1942
        %v1986 = vunpack.c.l.b16 %v1943
        %v1987 = vunpack.c.l.b16 %v1944
        %v1988 = vunpack.c.l.b16 %v1945
        %v1989 = vunpack.c.l.b16 %v1946
        %v1990 = vunpack.c.l.b16 %v1947
        %v1991 = vunpack.c.l.b16 %v1948
        %v1992 = vunpack.c.l.b16 %v1949
        %v1993 = vunpack.c.l.b16 %v1950
        %v1994 = vunpack.c.l.b16 %v1951
        %v1995 = vunpack.c.l.b16 %v1952
        %v1996 = vunpack.c.l.b16 %v1953
        %v1997 = vunpack.c.l.b16 %v1954
        %v1998 = vunpack.c.l.b16 %v1955
        %v1999 = vpack.c.b16 %v1984, %v1983
        %v2000 = vpack.c.b16 %v1986, %v1985
        %v2001 = vpack.c.b16 %v1988, %v1987
        %v2002 = vpack.c.b16 %v1990, %v1989
        %v2003 = vpack.c.b16 %v1992, %v1991
        %v2004 = vpack.c.b16 %v1994, %v1993
        %v2005 = vpack.c.b16 %v1996, %v1995
        %v2006 = vpack.c.b16 %v1998, %v1997
        %2015 = vmatprep.subr.bf16.mxu0 0
        %2016 = vmatpush1.bf16.msra.mxu0 %v1999
        %2017 = vmatprep.subr.bf16.mxu0 0
        %2018 = vmatpush1.bf16.msra.mxu0 %v2000
        %2019 = vmatprep.subr.bf16.mxu0 0
        %2020 = vmatpush1.bf16.msra.mxu0 %v2001
        %2021 = vmatprep.subr.bf16.mxu0 0
        %2022 = vmatpush1.bf16.msra.mxu0 %v2002
        %2023 = vmatprep.subr.bf16.mxu0 0
        %2024 = vmatpush1.bf16.msra.mxu0 %v2003
        %2025 = vmatprep.subr.bf16.mxu0 0
        %2026 = vmatpush1.bf16.msra.mxu0 %v2004
        %2027 = vmatprep.subr.bf16.mxu0 0
        %2028 = vmatpush1.bf16.msra.mxu0 %v2005
        %2029 = vmatprep.subr.bf16.mxu0 0
        %2030 = vmatpush1.bf16.msra.mxu0 %v2006
        %2031 = vmatprep.subr.bf16.mxu0 0
        %2032 = vmatpush1.bf16.msra.mxu0 0
        %2033 = vmatprep.subr.bf16.mxu0 0
        %2034 = vmatpush1.bf16.msra.mxu0 0
        %2035 = vmatprep.subr.bf16.mxu0 0
        %2036 = vmatpush1.bf16.msra.mxu0 0
        %2037 = vmatprep.subr.bf16.mxu0 0
        %2038 = vmatpush1.bf16.msra.mxu0 0
        %2039 = vmatprep.subr.bf16.mxu0 0
        %2040 = vmatpush1.bf16.msra.mxu0 0
        %2041 = vmatprep.subr.bf16.mxu0 0
        %2042 = vmatpush1.bf16.msra.mxu0 0
        %2043 = vmatprep.subr.bf16.mxu0 0
        %2044 = vmatpush1.bf16.msra.mxu0 0
        %2045 = vmatprep.subr.bf16.mxu0 0
        %2046 = vmatpush1.bf16.msra.mxu0 0
        %2047 = vmatprep.mubr.bf16.mxu0 0
        %2048 = vmatmul.mubr.bf16.gmra.mrb[0].mxu0 %v1961
        %v2049 = vpop.f32.mrb[0].mxu0
        %v2050 = vadd.f32 0.0, %v2049
        %v2051 = vpop.f32.mrb[0].mxu0
        %v2052 = vpop.f32.mrb[0].mxu0
        %v2053 = vadd.f32 0.0, %v2052
        %v2054 = vpop.f32.mrb[0].mxu0
        %2055 = vmatprep.mubr.bf16.mxu0 0
        %2056 = vmatmul.mubr.bf16.gmra.mrb[0].mxu0 %v1963
        %v2057 = vpop.f32.mrb[0].mxu0
        %v2058 = vadd.f32 0.0, %v2057
        %v2059 = vpop.f32.mrb[0].mxu0
        %v2060 = vpop.f32.mrb[0].mxu0
        %v2061 = vadd.f32 0.0, %v2060
        %v2062 = vpop.f32.mrb[0].mxu0
        %2063 = vmatprep.mubr.bf16.mxu0 0
        %2064 = vmatmul.mubr.bf16.gmra.mrb[0].mxu0 %v1962
        %v2065 = vpop.f32.mrb[0].mxu0
        %v2066 = vadd.f32 0.0, %v2065
        %v2067 = vpop.f32.mrb[0].mxu0
        %v2068 = vpop.f32.mrb[0].mxu0
        %v2069 = vpop.f32.mrb[0].mxu0
        %2070 = vdwg.mxu0
        %v2071 = vadd.f32 %v1934, %v2050
        %v2072 = vadd.f32 %v1935, %v2053
        %v2073 = vadd.f32 %v1936, %v2058
        %v2074 = vadd.f32 %v1937, %v2061
        %v2075 = vadd.f32 %v1938, %v2066
        %s2076 = scalar_lea.vmem [#allocation11], 128
        %v2077 = vld [vmem:[%s2076] sm:$0xf]
        %v2078 = vld [vmem:[%s2076 + $0x4] sm:$0xf]
        %v2079 = vld [vmem:[%s2076 + $0x8] sm:$0xf]
        %v2080 = vld [vmem:[%s2076 + $0xc] sm:$0xf]
        %v2081 = vld [vmem:[%s2076 + $0x10] sm:$0xf]
        %v2082 = vld [vmem:[%s2076 + $0x14] sm:$0xf]
        %v2083 = vld [vmem:[%s2076 + $0x18] sm:$0xf]
        %v2084 = vld [vmem:[%s2076 + $0x1c] sm:$0xf]
        %v2085 = vld [vmem:[%s2076 + $0x20] sm:$0xf]
        %v2086 = vld [vmem:[%s2076 + $0x24] sm:$0xf]
        %v2087 = vld [vmem:[%s2076 + $0x28] sm:$0xf]
        %v2088 = vld [vmem:[%s2076 + $0x2c] sm:$0xf]
        %v2089 = vld [vmem:[%s2076 + $0x30] sm:$0xf]
        %v2090 = vld [vmem:[%s2076 + $0x34] sm:$0xf]
        %v2091 = vld [vmem:[%s2076 + $0x38] sm:$0xf]
        %v2092 = vld [vmem:[%s2076 + $0x3c] sm:$0xf]
        %v2093 = vrot.slane %v1804, 2
        %v2094 = vrot.slane %v1805, 2
        %v2095 = vsel %vm745, %v2093, %v2094
        %v2096 = vrot.slane %v1806, 2
        %v2097 = vsel %vm745, %v2094, %v2096
        %v2117 = vunpack.c.l.b16 %v2077
        %v2118 = vunpack.c.l.b16 %v2078
        %v2119 = vunpack.c.l.b16 %v2079
        %v2120 = vunpack.c.l.b16 %v2080
        %v2121 = vunpack.c.l.b16 %v2081
        %v2122 = vunpack.c.l.b16 %v2082
        %v2123 = vunpack.c.l.b16 %v2083
        %v2124 = vunpack.c.l.b16 %v2084
        %v2125 = vunpack.c.l.b16 %v2085
        %v2126 = vunpack.c.l.b16 %v2086
        %v2127 = vunpack.c.l.b16 %v2087
        %v2128 = vunpack.c.l.b16 %v2088
        %v2129 = vunpack.c.l.b16 %v2089
        %v2130 = vunpack.c.l.b16 %v2090
        %v2131 = vunpack.c.l.b16 %v2091
        %v2132 = vunpack.c.l.b16 %v2092
        %v2133 = vpack.c.b16 %v2118, %v2117
        %v2134 = vpack.c.b16 %v2120, %v2119
        %v2135 = vpack.c.b16 %v2122, %v2121
        %v2136 = vpack.c.b16 %v2124, %v2123
        %v2137 = vpack.c.b16 %v2126, %v2125
        %v2138 = vpack.c.b16 %v2128, %v2127
        %v2139 = vpack.c.b16 %v2130, %v2129
        %v2140 = vpack.c.b16 %v2132, %v2131
        %2149 = vmatprep.subr.bf16.mxu0 0
        %2150 = vmatpush1.bf16.msra.mxu0 %v2133
        %2151 = vmatprep.subr.bf16.mxu0 0
        %2152 = vmatpush1.bf16.msra.mxu0 %v2134
        %2153 = vmatprep.subr.bf16.mxu0 0
        %2154 = vmatpush1.bf16.msra.mxu0 %v2135
        %2155 = vmatprep.subr.bf16.mxu0 0
        %2156 = vmatpush1.bf16.msra.mxu0 %v2136
        %2157 = vmatprep.subr.bf16.mxu0 0
        %2158 = vmatpush1.bf16.msra.mxu0 %v2137
        %2159 = vmatprep.subr.bf16.mxu0 0
        %2160 = vmatpush1.bf16.msra.mxu0 %v2138
        %2161 = vmatprep.subr.bf16.mxu0 0
        %2162 = vmatpush1.bf16.msra.mxu0 %v2139
        %2163 = vmatprep.subr.bf16.mxu0 0
        %2164 = vmatpush1.bf16.msra.mxu0 %v2140
        %2165 = vmatprep.subr.bf16.mxu0 0
        %2166 = vmatpush1.bf16.msra.mxu0 0
        %2167 = vmatprep.subr.bf16.mxu0 0
        %2168 = vmatpush1.bf16.msra.mxu0 0
        %2169 = vmatprep.subr.bf16.mxu0 0
        %2170 = vmatpush1.bf16.msra.mxu0 0
        %2171 = vmatprep.subr.bf16.mxu0 0
        %2172 = vmatpush1.bf16.msra.mxu0 0
        %2173 = vmatprep.subr.bf16.mxu0 0
        %2174 = vmatpush1.bf16.msra.mxu0 0
        %2175 = vmatprep.subr.bf16.mxu0 0
        %2176 = vmatpush1.bf16.msra.mxu0 0
        %2177 = vmatprep.subr.bf16.mxu0 0
        %2178 = vmatpush1.bf16.msra.mxu0 0
        %2179 = vmatprep.subr.bf16.mxu0 0
        %2180 = vmatpush1.bf16.msra.mxu0 0
        %2181 = vmatprep.mubr.bf16.mxu0 0
        %2182 = vmatmul.mubr.bf16.gmra.mrb[0].mxu0 %v2095
        %v2183 = vpop.f32.mrb[0].mxu0
        %v2184 = vadd.f32 0.0, %v2183
        %v2185 = vpop.f32.mrb[0].mxu0
        %v2186 = vpop.f32.mrb[0].mxu0
        %v2187 = vadd.f32 0.0, %v2186
        %v2188 = vpop.f32.mrb[0].mxu0
        %2189 = vmatprep.mubr.bf16.mxu0 0
        %2190 = vmatmul.mubr.bf16.gmra.mrb[0].mxu0 %v2097
        %v2191 = vpop.f32.mrb[0].mxu0
        %v2192 = vadd.f32 0.0, %v2191
        %v2193 = vpop.f32.mrb[0].mxu0
        %v2194 = vpop.f32.mrb[0].mxu0
        %v2195 = vadd.f32 0.0, %v2194
        %v2196 = vpop.f32.mrb[0].mxu0
        %2197 = vmatprep.mubr.bf16.mxu0 0
        %2198 = vmatmul.mubr.bf16.gmra.mrb[0].mxu0 %v2096
        %v2199 = vpop.f32.mrb[0].mxu0
        %v2200 = vadd.f32 0.0, %v2199
        %v2201 = vpop.f32.mrb[0].mxu0
        %v2202 = vpop.f32.mrb[0].mxu0
        %v2203 = vpop.f32.mrb[0].mxu0
        %2204 = vdwg.mxu0
        %v2205 = vadd.f32 %v2071, %v2184
        %v2206 = vadd.f32 %v2072, %v2187
        %v2207 = vadd.f32 %v2073, %v2192
        %v2208 = vadd.f32 %v2074, %v2195
        %v2209 = vadd.f32 %v2075, %v2200
        %v2210 = vmax.f32 %v2205, 0.0
        %v2211 = vmax.f32 %v2206, 0.0
        %v2212 = vmax.f32 %v2207, 0.0
        %v2213 = vmax.f32 %v2208, 0.0
        %v2214 = vmax.f32 %v2209, 0.0
        %s2215 = ssub.s32 20, %s704
        %v2216 = vstv %s2215
        %vm2217 = vcmp.lt.s32.totalorder %v1172, %v2216
        %vm2218 = vcmp.lt.s32.totalorder %v1173, %v2216
        %vm2219 = vcmp.lt.s32.totalorder %v1174, %v2216
        %vm2220 = vcmp.lt.s32.totalorder %v1175, %v2216
        %vm2221 = vcmp.lt.s32.totalorder %v1176, %v2216
        %v2222 = vsel %vm2217, 1, 0
        %v2223 = vsel %vm2218, 1, 0
        %v2224 = vsel %vm2219, 1, 0
        %v2225 = vsel %vm2220, 1, 0
        %v2226 = vsel %vm2221, 1, 0
        %vm2227 = vcmp.eq.s32.totalorder %v2222, 1
        %vm2228 = vcmp.eq.s32.totalorder %v2223, 1
        %vm2229 = vcmp.eq.s32.totalorder %v2224, 1
        %vm2230 = vcmp.eq.s32.totalorder %v2225, 1
        %vm2231 = vcmp.eq.s32.totalorder %v2226, 1
        %v2232 = vsel %vm2227, 0.0, %v2210
        %v2233 = vsel %vm2228, 0.0, %v2211
        %v2234 = vsel %vm2229, 0.0, %v2212
        %v2235 = vsel %vm2230, 0.0, %v2213
        %v2236 = vsel %vm2231, 0.0, %v2214
        %v2237 = vpack.c.bf16 %v2233, %v2232
        %v2238 = vpack.c.bf16 %v2235, %v2234
        %v2239 = vpack.c.bf16 %v2236, %v2236
        %v2240 = vld [vmem:[%s10] sm:$0x1]
        %v2242 = vlaneseq
        %v2243 = vshrl.u32 %v2242, 7
        %v2244 = vsub.s32 0, %v2243
        %v2245 = vrot.slane %v2240, %v2244
        %v2247 = vld [vmem:[#allocation12] sm:$0xf]
        %v2248 = vld [vmem:[#allocation12 + $0x4] sm:$0xf]
        %v2249 = vld [vmem:[#allocation12 + $0x8] sm:$0xf]
        %v2250 = vld [vmem:[#allocation12 + $0xc] sm:$0xf]
        %v2251 = vld [vmem:[#allocation12 + $0x10] sm:$0xf]
        %v2252 = vld [vmem:[#allocation12 + $0x14] sm:$0xf]
        %v2253 = vld [vmem:[#allocation12 + $0x18] sm:$0xf]
        %v2254 = vld [vmem:[#allocation12 + $0x1c] sm:$0xf]
        %v2255 = vld [vmem:[#allocation12 + $0x20] sm:$0xf]
        %v2256 = vld [vmem:[#allocation12 + $0x24] sm:$0xf]
        %v2257 = vld [vmem:[#allocation12 + $0x28] sm:$0xf]
        %v2258 = vld [vmem:[#allocation12 + $0x2c] sm:$0xf]
        %v2259 = vld [vmem:[#allocation12 + $0x30] sm:$0xf]
        %v2260 = vld [vmem:[#allocation12 + $0x34] sm:$0xf]
        %v2261 = vld [vmem:[#allocation12 + $0x38] sm:$0xf]
        %v2262 = vld [vmem:[#allocation12 + $0x3c] sm:$0xf]
        %v2279 = vunpack.c.l.b16 %v2247
        %v2280 = vunpack.c.l.b16 %v2248
        %v2281 = vunpack.c.l.b16 %v2249
        %v2282 = vunpack.c.l.b16 %v2250
        %v2283 = vunpack.c.l.b16 %v2251
        %v2284 = vunpack.c.l.b16 %v2252
        %v2285 = vunpack.c.l.b16 %v2253
        %v2286 = vunpack.c.l.b16 %v2254
        %v2287 = vunpack.c.l.b16 %v2255
        %v2288 = vunpack.c.l.b16 %v2256
        %v2289 = vunpack.c.l.b16 %v2257
        %v2290 = vunpack.c.l.b16 %v2258
        %v2291 = vunpack.c.l.b16 %v2259
        %v2292 = vunpack.c.l.b16 %v2260
        %v2293 = vunpack.c.l.b16 %v2261
        %v2294 = vunpack.c.l.b16 %v2262
        %v2295 = vpack.c.b16 %v2280, %v2279
        %v2296 = vpack.c.b16 %v2282, %v2281
        %v2297 = vpack.c.b16 %v2284, %v2283
        %v2298 = vpack.c.b16 %v2286, %v2285
        %v2299 = vpack.c.b16 %v2288, %v2287
        %v2300 = vpack.c.b16 %v2290, %v2289
        %v2301 = vpack.c.b16 %v2292, %v2291
        %v2302 = vpack.c.b16 %v2294, %v2293
        %2311 = vmatprep.subr.bf16.mxu0 0
        %2312 = vmatpush1.bf16.msra.mxu0 %v2295
        %2313 = vmatprep.subr.bf16.mxu0 0
        %2314 = vmatpush1.bf16.msra.mxu0 %v2296
        %2315 = vmatprep.subr.bf16.mxu0 0
        %2316 = vmatpush1.bf16.msra.mxu0 %v2297
        %2317 = vmatprep.subr.bf16.mxu0 0
        %2318 = vmatpush1.bf16.msra.mxu0 %v2298
        %2319 = vmatprep.subr.bf16.mxu0 0
        %2320 = vmatpush1.bf16.msra.mxu0 %v2299
        %2321 = vmatprep.subr.bf16.mxu0 0
        %2322 = vmatpush1.bf16.msra.mxu0 %v2300
        %2323 = vmatprep.subr.bf16.mxu0 0
        %2324 = vmatpush1.bf16.msra.mxu0 %v2301
        %2325 = vmatprep.subr.bf16.mxu0 0
        %2326 = vmatpush1.bf16.msra.mxu0 %v2302
        %2327 = vmatprep.subr.bf16.mxu0 0
        %2328 = vmatpush1.bf16.msra.mxu0 0
        %2329 = vmatprep.subr.bf16.mxu0 0
        %2330 = vmatpush1.bf16.msra.mxu0 0
        %2331 = vmatprep.subr.bf16.mxu0 0
        %2332 = vmatpush1.bf16.msra.mxu0 0
        %2333 = vmatprep.subr.bf16.mxu0 0
        %2334 = vmatpush1.bf16.msra.mxu0 0
        %2335 = vmatprep.subr.bf16.mxu0 0
        %2336 = vmatpush1.bf16.msra.mxu0 0
        %2337 = vmatprep.subr.bf16.mxu0 0
        %2338 = vmatpush1.bf16.msra.mxu0 0
        %2339 = vmatprep.subr.bf16.mxu0 0
        %2340 = vmatpush1.bf16.msra.mxu0 0
        %2341 = vmatprep.subr.bf16.mxu0 0
        %2342 = vmatpush1.bf16.msra.mxu0 0
        %2343 = vmatprep.mubr.bf16.mxu0 0
        %2344 = vmatmul.mubr.bf16.gmra.mrb[0].mxu0 %v2237
        %v2345 = vpop.f32.mrb[0].mxu0
        %v2346 = vadd.f32 0.0, %v2345
        %v2347 = vpop.f32.mrb[0].mxu0
        %v2348 = vpop.f32.mrb[0].mxu0
        %v2349 = vadd.f32 0.0, %v2348
        %v2350 = vpop.f32.mrb[0].mxu0
        %2351 = vmatprep.mubr.bf16.mxu0 0
        %2352 = vmatmul.mubr.bf16.gmra.mrb[0].mxu0 %v2238
        %v2353 = vpop.f32.mrb[0].mxu0
        %v2354 = vadd.f32 0.0, %v2353
        %v2355 = vpop.f32.mrb[0].mxu0
        %v2356 = vpop.f32.mrb[0].mxu0
        %v2357 = vadd.f32 0.0, %v2356
        %v2358 = vpop.f32.mrb[0].mxu0
        %2359 = vdwg.mxu0
        %v2360 = vadd.f32 %v2245, %v2346
        %v2361 = vadd.f32 %v2245, %v2349
        %v2362 = vadd.f32 %v2245, %v2354
        %v2363 = vadd.f32 %v2245, %v2357
        %s2364 = scalar_lea.vmem [#allocation12], 64
        %v2365 = vld [vmem:[%s2364] sm:$0xf]
        %v2366 = vld [vmem:[%s2364 + $0x4] sm:$0xf]
        %v2367 = vld [vmem:[%s2364 + $0x8] sm:$0xf]
        %v2368 = vld [vmem:[%s2364 + $0xc] sm:$0xf]
        %v2369 = vld [vmem:[%s2364 + $0x10] sm:$0xf]
        %v2370 = vld [vmem:[%s2364 + $0x14] sm:$0xf]
        %v2371 = vld [vmem:[%s2364 + $0x18] sm:$0xf]
        %v2372 = vld [vmem:[%s2364 + $0x1c] sm:$0xf]
        %v2373 = vld [vmem:[%s2364 + $0x20] sm:$0xf]
        %v2374 = vld [vmem:[%s2364 + $0x24] sm:$0xf]
        %v2375 = vld [vmem:[%s2364 + $0x28] sm:$0xf]
        %v2376 = vld [vmem:[%s2364 + $0x2c] sm:$0xf]
        %v2377 = vld [vmem:[%s2364 + $0x30] sm:$0xf]
        %v2378 = vld [vmem:[%s2364 + $0x34] sm:$0xf]
        %v2379 = vld [vmem:[%s2364 + $0x38] sm:$0xf]
        %v2380 = vld [vmem:[%s2364 + $0x3c] sm:$0xf]
        %v2384 = vrot.slane %v2237, 1
        %v2385 = vrot.slane %v2238, 1
        %v2386 = vsel %vm1511, %v2384, %v2385
        %v2387 = vrot.slane %v2239, 1
        %v2388 = vsel %vm1511, %v2385, %v2387
        %v2407 = vunpack.c.l.b16 %v2365
        %v2408 = vunpack.c.l.b16 %v2366
        %v2409 = vunpack.c.l.b16 %v2367
        %v2410 = vunpack.c.l.b16 %v2368
        %v2411 = vunpack.c.l.b16 %v2369
        %v2412 = vunpack.c.l.b16 %v2370
        %v2413 = vunpack.c.l.b16 %v2371
        %v2414 = vunpack.c.l.b16 %v2372
        %v2415 = vunpack.c.l.b16 %v2373
        %v2416 = vunpack.c.l.b16 %v2374
        %v2417 = vunpack.c.l.b16 %v2375
        %v2418 = vunpack.c.l.b16 %v2376
        %v2419 = vunpack.c.l.b16 %v2377
        %v2420 = vunpack.c.l.b16 %v2378
        %v2421 = vunpack.c.l.b16 %v2379
        %v2422 = vunpack.c.l.b16 %v2380
        %v2423 = vpack.c.b16 %v2408, %v2407
        %v2424 = vpack.c.b16 %v2410, %v2409
        %v2425 = vpack.c.b16 %v2412, %v2411
        %v2426 = vpack.c.b16 %v2414, %v2413
        %v2427 = vpack.c.b16 %v2416, %v2415
        %v2428 = vpack.c.b16 %v2418, %v2417
        %v2429 = vpack.c.b16 %v2420, %v2419
        %v2430 = vpack.c.b16 %v2422, %v2421
        %2439 = vmatprep.subr.bf16.mxu0 0
        %2440 = vmatpush1.bf16.msra.mxu0 %v2423
        %2441 = vmatprep.subr.bf16.mxu0 0
        %2442 = vmatpush1.bf16.msra.mxu0 %v2424
        %2443 = vmatprep.subr.bf16.mxu0 0
        %2444 = vmatpush1.bf16.msra.mxu0 %v2425
        %2445 = vmatprep.subr.bf16.mxu0 0
        %2446 = vmatpush1.bf16.msra.mxu0 %v2426
        %2447 = vmatprep.subr.bf16.mxu0 0
        %2448 = vmatpush1.bf16.msra.mxu0 %v2427
        %2449 = vmatprep.subr.bf16.mxu0 0
        %2450 = vmatpush1.bf16.msra.mxu0 %v2428
        %2451 = vmatprep.subr.bf16.mxu0 0
        %2452 = vmatpush1.bf16.msra.mxu0 %v2429
        %2453 = vmatprep.subr.bf16.mxu0 0
        %2454 = vmatpush1.bf16.msra.mxu0 %v2430
        %2455 = vmatprep.subr.bf16.mxu0 0
        %2456 = vmatpush1.bf16.msra.mxu0 0
        %2457 = vmatprep.subr.bf16.mxu0 0
        %2458 = vmatpush1.bf16.msra.mxu0 0
        %2459 = vmatprep.subr.bf16.mxu0 0
        %2460 = vmatpush1.bf16.msra.mxu0 0
        %2461 = vmatprep.subr.bf16.mxu0 0
        %2462 = vmatpush1.bf16.msra.mxu0 0
        %2463 = vmatprep.subr.bf16.mxu0 0
        %2464 = vmatpush1.bf16.msra.mxu0 0
        %2465 = vmatprep.subr.bf16.mxu0 0
        %2466 = vmatpush1.bf16.msra.mxu0 0
        %2467 = vmatprep.subr.bf16.mxu0 0
        %2468 = vmatpush1.bf16.msra.mxu0 0
        %2469 = vmatprep.subr.bf16.mxu0 0
        %2470 = vmatpush1.bf16.msra.mxu0 0
        %2471 = vmatprep.mubr.bf16.mxu0 0
        %2472 = vmatmul.mubr.bf16.gmra.mrb[0].mxu0 %v2386
        %v2473 = vpop.f32.mrb[0].mxu0
        %v2474 = vadd.f32 0.0, %v2473
        %v2475 = vpop.f32.mrb[0].mxu0
        %v2476 = vpop.f32.mrb[0].mxu0
        %v2477 = vadd.f32 0.0, %v2476
        %v2478 = vpop.f32.mrb[0].mxu0
        %2479 = vmatprep.mubr.bf16.mxu0 0
        %2480 = vmatmul.mubr.bf16.gmra.mrb[0].mxu0 %v2388
        %v2481 = vpop.f32.mrb[0].mxu0
        %v2482 = vadd.f32 0.0, %v2481
        %v2483 = vpop.f32.mrb[0].mxu0
        %v2484 = vpop.f32.mrb[0].mxu0
        %v2485 = vadd.f32 0.0, %v2484
        %v2486 = vpop.f32.mrb[0].mxu0
        %2487 = vdwg.mxu0
        %v2488 = vadd.f32 %v2360, %v2474
        %v2489 = vadd.f32 %v2361, %v2477
        %v2490 = vadd.f32 %v2362, %v2482
        %v2491 = vadd.f32 %v2363, %v2485
        %s2492 = scalar_lea.vmem [#allocation12], 128
        %v2493 = vld [vmem:[%s2492] sm:$0xf]
        %v2494 = vld [vmem:[%s2492 + $0x4] sm:$0xf]
        %v2495 = vld [vmem:[%s2492 + $0x8] sm:$0xf]
        %v2496 = vld [vmem:[%s2492 + $0xc] sm:$0xf]
        %v2497 = vld [vmem:[%s2492 + $0x10] sm:$0xf]
        %v2498 = vld [vmem:[%s2492 + $0x14] sm:$0xf]
        %v2499 = vld [vmem:[%s2492 + $0x18] sm:$0xf]
        %v2500 = vld [vmem:[%s2492 + $0x1c] sm:$0xf]
        %v2501 = vld [vmem:[%s2492 + $0x20] sm:$0xf]
        %v2502 = vld [vmem:[%s2492 + $0x24] sm:$0xf]
        %v2503 = vld [vmem:[%s2492 + $0x28] sm:$0xf]
        %v2504 = vld [vmem:[%s2492 + $0x2c] sm:$0xf]
        %v2505 = vld [vmem:[%s2492 + $0x30] sm:$0xf]
        %v2506 = vld [vmem:[%s2492 + $0x34] sm:$0xf]
        %v2507 = vld [vmem:[%s2492 + $0x38] sm:$0xf]
        %v2508 = vld [vmem:[%s2492 + $0x3c] sm:$0xf]
        %v2509 = vrot.slane %v2237, 2
        %v2510 = vrot.slane %v2238, 2
        %v2511 = vsel %vm745, %v2509, %v2510
        %v2512 = vrot.slane %v2239, 2
        %v2513 = vsel %vm745, %v2510, %v2512
        %v2532 = vunpack.c.l.b16 %v2493
        %v2533 = vunpack.c.l.b16 %v2494
        %v2534 = vunpack.c.l.b16 %v2495
        %v2535 = vunpack.c.l.b16 %v2496
        %v2536 = vunpack.c.l.b16 %v2497
        %v2537 = vunpack.c.l.b16 %v2498
        %v2538 = vunpack.c.l.b16 %v2499
        %v2539 = vunpack.c.l.b16 %v2500
        %v2540 = vunpack.c.l.b16 %v2501
        %v2541 = vunpack.c.l.b16 %v2502
        %v2542 = vunpack.c.l.b16 %v2503
        %v2543 = vunpack.c.l.b16 %v2504
        %v2544 = vunpack.c.l.b16 %v2505
        %v2545 = vunpack.c.l.b16 %v2506
        %v2546 = vunpack.c.l.b16 %v2507
        %v2547 = vunpack.c.l.b16 %v2508
        %v2548 = vpack.c.b16 %v2533, %v2532
        %v2549 = vpack.c.b16 %v2535, %v2534
        %v2550 = vpack.c.b16 %v2537, %v2536
        %v2551 = vpack.c.b16 %v2539, %v2538
        %v2552 = vpack.c.b16 %v2541, %v2540
        %v2553 = vpack.c.b16 %v2543, %v2542
        %v2554 = vpack.c.b16 %v2545, %v2544
        %v2555 = vpack.c.b16 %v2547, %v2546
        %2564 = vmatprep.subr.bf16.mxu0 0
        %2565 = vmatpush1.bf16.msra.mxu0 %v2548
        %2566 = vmatprep.subr.bf16.mxu0 0
        %2567 = vmatpush1.bf16.msra.mxu0 %v2549
        %2568 = vmatprep.subr.bf16.mxu0 0
        %2569 = vmatpush1.bf16.msra.mxu0 %v2550
        %2570 = vmatprep.subr.bf16.mxu0 0
        %2571 = vmatpush1.bf16.msra.mxu0 %v2551
        %2572 = vmatprep.subr.bf16.mxu0 0
        %2573 = vmatpush1.bf16.msra.mxu0 %v2552
        %2574 = vmatprep.subr.bf16.mxu0 0
        %2575 = vmatpush1.bf16.msra.mxu0 %v2553
        %2576 = vmatprep.subr.bf16.mxu0 0
        %2577 = vmatpush1.bf16.msra.mxu0 %v2554
        %2578 = vmatprep.subr.bf16.mxu0 0
        %2579 = vmatpush1.bf16.msra.mxu0 %v2555
        %2580 = vmatprep.subr.bf16.mxu0 0
        %2581 = vmatpush1.bf16.msra.mxu0 0
        %2582 = vmatprep.subr.bf16.mxu0 0
        %2583 = vmatpush1.bf16.msra.mxu0 0
        %2584 = vmatprep.subr.bf16.mxu0 0
        %2585 = vmatpush1.bf16.msra.mxu0 0
        %2586 = vmatprep.subr.bf16.mxu0 0
        %2587 = vmatpush1.bf16.msra.mxu0 0
        %2588 = vmatprep.subr.bf16.mxu0 0
        %2589 = vmatpush1.bf16.msra.mxu0 0
        %2590 = vmatprep.subr.bf16.mxu0 0
        %2591 = vmatpush1.bf16.msra.mxu0 0
        %2592 = vmatprep.subr.bf16.mxu0 0
        %2593 = vmatpush1.bf16.msra.mxu0 0
        %2594 = vmatprep.subr.bf16.mxu0 0
        %2595 = vmatpush1.bf16.msra.mxu0 0
        %2596 = vmatprep.mubr.bf16.mxu0 0
        %2597 = vmatmul.mubr.bf16.gmra.mrb[0].mxu0 %v2511
        %v2598 = vpop.f32.mrb[0].mxu0
        %v2599 = vadd.f32 0.0, %v2598
        %v2600 = vpop.f32.mrb[0].mxu0
        %v2601 = vpop.f32.mrb[0].mxu0
        %v2602 = vadd.f32 0.0, %v2601
        %v2603 = vpop.f32.mrb[0].mxu0
        %2604 = vmatprep.mubr.bf16.mxu0 0
        %2605 = vmatmul.mubr.bf16.gmra.mrb[0].mxu0 %v2513
        %v2606 = vpop.f32.mrb[0].mxu0
        %v2607 = vadd.f32 0.0, %v2606
        %v2608 = vpop.f32.mrb[0].mxu0
        %v2609 = vpop.f32.mrb[0].mxu0
        %v2610 = vadd.f32 0.0, %v2609
        %v2611 = vpop.f32.mrb[0].mxu0
        %2612 = vdwg.mxu0
        %v2613 = vadd.f32 %v2488, %v2599
        %v2614 = vadd.f32 %v2489, %v2602
        %v2615 = vadd.f32 %v2490, %v2607
        %v2616 = vadd.f32 %v2491, %v2610
        %v2617 = vmax.f32 %v2613, 0.0
        %v2618 = vmax.f32 %v2614, 0.0
        %v2619 = vmax.f32 %v2615, 0.0
        %v2620 = vmax.f32 %v2616, 0.0
        %v2621 = vrot.slane %v1804, 4
        %v2622 = vrot.slane %v1805, 4
        %v2623 = vsel %vm1659, %v2621, %v2622
        %v2624 = vrot.slane %v1806, 4
        %v2625 = vsel %vm1659, %v2622, %v2624
        %v2628 = vunpack.c.l.bf16 %v2623
        %v2629 = vunpack.c.h.bf16 %v2623
        %v2630 = vunpack.c.l.bf16 %v2625
        %v2631 = vunpack.c.h.bf16 %v2625
        %v2632 = vadd.f32 %v2617, %v2628
        %v2633 = vadd.f32 %v2618, %v2629
        %v2634 = vadd.f32 %v2619, %v2630
        %v2635 = vadd.f32 %v2620, %v2631
        %v2636 = vmax.f32 %v2632, 0.0
        %v2637 = vmax.f32 %v2633, 0.0
        %v2638 = vmax.f32 %v2634, 0.0
        %v2639 = vmax.f32 %v2635, 0.0
        %s2640 = ssub.s32 16, %s704
        %v2641 = vstv %s2640
        %vm2642 = vcmp.lt.s32.totalorder %v1172, %v2641
        %vm2643 = vcmp.lt.s32.totalorder %v1173, %v2641
        %vm2644 = vcmp.lt.s32.totalorder %v1174, %v2641
        %vm2645 = vcmp.lt.s32.totalorder %v1175, %v2641
        %v2646 = vsel %vm2642, 1, 0
        %v2647 = vsel %vm2643, 1, 0
        %v2648 = vsel %vm2644, 1, 0
        %v2649 = vsel %vm2645, 1, 0
        %vm2650 = vcmp.eq.s32.totalorder %v2646, 1
        %vm2651 = vcmp.eq.s32.totalorder %v2647, 1
        %vm2652 = vcmp.eq.s32.totalorder %v2648, 1
        %vm2653 = vcmp.eq.s32.totalorder %v2649, 1
        %v2654 = vsel %vm2650, 0.0, %v2636
        %v2655 = vsel %vm2651, 0.0, %v2637
        %v2656 = vsel %vm2652, 0.0, %v2638
        %v2657 = vsel %vm2653, 0.0, %v2639
        %v2658 = vpack.c.bf16 %v2655, %v2654
        %v2659 = vpack.c.bf16 %v2657, %v2656
        %v2660 = vld [vmem:[%s12] sm:$0x1]
        %v2662 = vlaneseq
        %v2663 = vshrl.u32 %v2662, 7
        %v2664 = vsub.s32 0, %v2663
        %v2665 = vrot.slane %v2660, %v2664
        %v2667 = vld [vmem:[#allocation14] sm:$0xf]
        %v2668 = vld [vmem:[#allocation14 + $0x4] sm:$0xf]
        %v2669 = vld [vmem:[#allocation14 + $0x8] sm:$0xf]
        %v2670 = vld [vmem:[#allocation14 + $0xc] sm:$0xf]
        %v2671 = vld [vmem:[#allocation14 + $0x10] sm:$0xf]
        %v2672 = vld [vmem:[#allocation14 + $0x14] sm:$0xf]
        %v2673 = vld [vmem:[#allocation14 + $0x18] sm:$0xf]
        %v2674 = vld [vmem:[#allocation14 + $0x1c] sm:$0xf]
        %v2675 = vld [vmem:[#allocation14 + $0x20] sm:$0xf]
        %v2676 = vld [vmem:[#allocation14 + $0x24] sm:$0xf]
        %v2677 = vld [vmem:[#allocation14 + $0x28] sm:$0xf]
        %v2678 = vld [vmem:[#allocation14 + $0x2c] sm:$0xf]
        %v2679 = vld [vmem:[#allocation14 + $0x30] sm:$0xf]
        %v2680 = vld [vmem:[#allocation14 + $0x34] sm:$0xf]
        %v2681 = vld [vmem:[#allocation14 + $0x38] sm:$0xf]
        %v2682 = vld [vmem:[#allocation14 + $0x3c] sm:$0xf]
        %v2699 = vunpack.c.l.b16 %v2667
        %v2700 = vunpack.c.l.b16 %v2668
        %v2701 = vunpack.c.l.b16 %v2669
        %v2702 = vunpack.c.l.b16 %v2670
        %v2703 = vunpack.c.l.b16 %v2671
        %v2704 = vunpack.c.l.b16 %v2672
        %v2705 = vunpack.c.l.b16 %v2673
        %v2706 = vunpack.c.l.b16 %v2674
        %v2707 = vunpack.c.l.b16 %v2675
        %v2708 = vunpack.c.l.b16 %v2676
        %v2709 = vunpack.c.l.b16 %v2677
        %v2710 = vunpack.c.l.b16 %v2678
        %v2711 = vunpack.c.l.b16 %v2679
        %v2712 = vunpack.c.l.b16 %v2680
        %v2713 = vunpack.c.l.b16 %v2681
        %v2714 = vunpack.c.l.b16 %v2682
        %v2715 = vpack.c.b16 %v2700, %v2699
        %v2716 = vpack.c.b16 %v2702, %v2701
        %v2717 = vpack.c.b16 %v2704, %v2703
        %v2718 = vpack.c.b16 %v2706, %v2705
        %v2719 = vpack.c.b16 %v2708, %v2707
        %v2720 = vpack.c.b16 %v2710, %v2709
        %v2721 = vpack.c.b16 %v2712, %v2711
        %v2722 = vpack.c.b16 %v2714, %v2713
        %2731 = vmatprep.subr.bf16.mxu0 0
        %2732 = vmatpush1.bf16.msra.mxu0 %v2715
        %2733 = vmatprep.subr.bf16.mxu0 0
        %2734 = vmatpush1.bf16.msra.mxu0 %v2716
        %2735 = vmatprep.subr.bf16.mxu0 0
        %2736 = vmatpush1.bf16.msra.mxu0 %v2717
        %2737 = vmatprep.subr.bf16.mxu0 0
        %2738 = vmatpush1.bf16.msra.mxu0 %v2718
        %2739 = vmatprep.subr.bf16.mxu0 0
        %2740 = vmatpush1.bf16.msra.mxu0 %v2719
        %2741 = vmatprep.subr.bf16.mxu0 0
        %2742 = vmatpush1.bf16.msra.mxu0 %v2720
        %2743 = vmatprep.subr.bf16.mxu0 0
        %2744 = vmatpush1.bf16.msra.mxu0 %v2721
        %2745 = vmatprep.subr.bf16.mxu0 0
        %2746 = vmatpush1.bf16.msra.mxu0 %v2722
        %2747 = vmatprep.subr.bf16.mxu0 0
        %2748 = vmatpush1.bf16.msra.mxu0 0
        %2749 = vmatprep.subr.bf16.mxu0 0
        %2750 = vmatpush1.bf16.msra.mxu0 0
        %2751 = vmatprep.subr.bf16.mxu0 0
        %2752 = vmatpush1.bf16.msra.mxu0 0
        %2753 = vmatprep.subr.bf16.mxu0 0
        %2754 = vmatpush1.bf16.msra.mxu0 0
        %2755 = vmatprep.subr.bf16.mxu0 0
        %2756 = vmatpush1.bf16.msra.mxu0 0
        %2757 = vmatprep.subr.bf16.mxu0 0
        %2758 = vmatpush1.bf16.msra.mxu0 0
        %2759 = vmatprep.subr.bf16.mxu0 0
        %2760 = vmatpush1.bf16.msra.mxu0 0
        %2761 = vmatprep.subr.bf16.mxu0 0
        %2762 = vmatpush1.bf16.msra.mxu0 0
        %2763 = vmatprep.mubr.bf16.mxu0 0
        %2764 = vmatmul.mubr.bf16.gmra.mrb[0].mxu0 %v2658
        %v2765 = vpop.f32.mrb[0].mxu0
        %v2766 = vadd.f32 0.0, %v2765
        %v2767 = vpop.f32.mrb[0].mxu0
        %v2768 = vpop.f32.mrb[0].mxu0
        %v2769 = vadd.f32 0.0, %v2768
        %v2770 = vpop.f32.mrb[0].mxu0
        %2771 = vmatprep.mubr.bf16.mxu0 0
        %2772 = vmatmul.mubr.bf16.gmra.mrb[0].mxu0 %v2659
        %v2773 = vpop.f32.mrb[0].mxu0
        %v2774 = vadd.f32 0.0, %v2773
        %v2775 = vpop.f32.mrb[0].mxu0
        %v2776 = vpop.f32.mrb[0].mxu0
        %v2777 = vpop.f32.mrb[0].mxu0
        %2778 = vdwg.mxu0
        %v2779 = vadd.f32 %v2665, %v2766
        %v2780 = vadd.f32 %v2665, %v2769
        %v2781 = vadd.f32 %v2665, %v2774
        %s2782 = scalar_lea.vmem [#allocation14], 64
        %v2783 = vld [vmem:[%s2782] sm:$0xf]
        %v2784 = vld [vmem:[%s2782 + $0x4] sm:$0xf]
        %v2785 = vld [vmem:[%s2782 + $0x8] sm:$0xf]
        %v2786 = vld [vmem:[%s2782 + $0xc] sm:$0xf]
        %v2787 = vld [vmem:[%s2782 + $0x10] sm:$0xf]
        %v2788 = vld [vmem:[%s2782 + $0x14] sm:$0xf]
        %v2789 = vld [vmem:[%s2782 + $0x18] sm:$0xf]
        %v2790 = vld [vmem:[%s2782 + $0x1c] sm:$0xf]
        %v2791 = vld [vmem:[%s2782 + $0x20] sm:$0xf]
        %v2792 = vld [vmem:[%s2782 + $0x24] sm:$0xf]
        %v2793 = vld [vmem:[%s2782 + $0x28] sm:$0xf]
        %v2794 = vld [vmem:[%s2782 + $0x2c] sm:$0xf]
        %v2795 = vld [vmem:[%s2782 + $0x30] sm:$0xf]
        %v2796 = vld [vmem:[%s2782 + $0x34] sm:$0xf]
        %v2797 = vld [vmem:[%s2782 + $0x38] sm:$0xf]
        %v2798 = vld [vmem:[%s2782 + $0x3c] sm:$0xf]
        %v2801 = vrot.slane %v2658, 2
        %v2802 = vrot.slane %v2659, 2
        %v2803 = vsel %vm745, %v2801, %v2802
        %v2822 = vunpack.c.l.b16 %v2783
        %v2823 = vunpack.c.l.b16 %v2784
        %v2824 = vunpack.c.l.b16 %v2785
        %v2825 = vunpack.c.l.b16 %v2786
        %v2826 = vunpack.c.l.b16 %v2787
        %v2827 = vunpack.c.l.b16 %v2788
        %v2828 = vunpack.c.l.b16 %v2789
        %v2829 = vunpack.c.l.b16 %v2790
        %v2830 = vunpack.c.l.b16 %v2791
        %v2831 = vunpack.c.l.b16 %v2792
        %v2832 = vunpack.c.l.b16 %v2793
        %v2833 = vunpack.c.l.b16 %v2794
        %v2834 = vunpack.c.l.b16 %v2795
        %v2835 = vunpack.c.l.b16 %v2796
        %v2836 = vunpack.c.l.b16 %v2797
        %v2837 = vunpack.c.l.b16 %v2798
        %v2838 = vpack.c.b16 %v2823, %v2822
        %v2839 = vpack.c.b16 %v2825, %v2824
        %v2840 = vpack.c.b16 %v2827, %v2826
        %v2841 = vpack.c.b16 %v2829, %v2828
        %v2842 = vpack.c.b16 %v2831, %v2830
        %v2843 = vpack.c.b16 %v2833, %v2832
        %v2844 = vpack.c.b16 %v2835, %v2834
        %v2845 = vpack.c.b16 %v2837, %v2836
        %2854 = vmatprep.subr.bf16.mxu0 0
        %2855 = vmatpush1.bf16.msra.mxu0 %v2838
        %2856 = vmatprep.subr.bf16.mxu0 0
        %2857 = vmatpush1.bf16.msra.mxu0 %v2839
        %2858 = vmatprep.subr.bf16.mxu0 0
        %2859 = vmatpush1.bf16.msra.mxu0 %v2840
        %2860 = vmatprep.subr.bf16.mxu0 0
        %2861 = vmatpush1.bf16.msra.mxu0 %v2841
        %2862 = vmatprep.subr.bf16.mxu0 0
        %2863 = vmatpush1.bf16.msra.mxu0 %v2842
        %2864 = vmatprep.subr.bf16.mxu0 0
        %2865 = vmatpush1.bf16.msra.mxu0 %v2843
        %2866 = vmatprep.subr.bf16.mxu0 0
        %2867 = vmatpush1.bf16.msra.mxu0 %v2844
        %2868 = vmatprep.subr.bf16.mxu0 0
        %2869 = vmatpush1.bf16.msra.mxu0 %v2845
        %2870 = vmatprep.subr.bf16.mxu0 0
        %2871 = vmatpush1.bf16.msra.mxu0 0
        %2872 = vmatprep.subr.bf16.mxu0 0
        %2873 = vmatpush1.bf16.msra.mxu0 0
        %2874 = vmatprep.subr.bf16.mxu0 0
        %2875 = vmatpush1.bf16.msra.mxu0 0
        %2876 = vmatprep.subr.bf16.mxu0 0
        %2877 = vmatpush1.bf16.msra.mxu0 0
        %2878 = vmatprep.subr.bf16.mxu0 0
        %2879 = vmatpush1.bf16.msra.mxu0 0
        %2880 = vmatprep.subr.bf16.mxu0 0
        %2881 = vmatpush1.bf16.msra.mxu0 0
        %2882 = vmatprep.subr.bf16.mxu0 0
        %2883 = vmatpush1.bf16.msra.mxu0 0
        %2884 = vmatprep.subr.bf16.mxu0 0
        %2885 = vmatpush1.bf16.msra.mxu0 0
        %2886 = vmatprep.mubr.bf16.mxu0 0
        %2887 = vmatmul.mubr.bf16.gmra.mrb[0].mxu0 %v2803
        %v2888 = vpop.f32.mrb[0].mxu0
        %v2889 = vadd.f32 0.0, %v2888
        %v2890 = vpop.f32.mrb[0].mxu0
        %v2891 = vpop.f32.mrb[0].mxu0
        %v2892 = vadd.f32 0.0, %v2891
        %v2893 = vpop.f32.mrb[0].mxu0
        %2894 = vmatprep.mubr.bf16.mxu0 0
        %2895 = vmatmul.mubr.bf16.gmra.mrb[0].mxu0 %v2802
        %v2896 = vpop.f32.mrb[0].mxu0
        %v2897 = vadd.f32 0.0, %v2896
        %v2898 = vpop.f32.mrb[0].mxu0
        %v2899 = vpop.f32.mrb[0].mxu0
        %v2900 = vpop.f32.mrb[0].mxu0
        %2901 = vdwg.mxu0
        %v2902 = vadd.f32 %v2779, %v2889
        %v2903 = vadd.f32 %v2780, %v2892
        %v2904 = vadd.f32 %v2781, %v2897
        %s2905 = scalar_lea.vmem [#allocation14], 128
        %v2906 = vld [vmem:[%s2905] sm:$0xf]
        %v2907 = vld [vmem:[%s2905 + $0x4] sm:$0xf]
        %v2908 = vld [vmem:[%s2905 + $0x8] sm:$0xf]
        %v2909 = vld [vmem:[%s2905 + $0xc] sm:$0xf]
        %v2910 = vld [vmem:[%s2905 + $0x10] sm:$0xf]
        %v2911 = vld [vmem:[%s2905 + $0x14] sm:$0xf]
        %v2912 = vld [vmem:[%s2905 + $0x18] sm:$0xf]
        %v2913 = vld [vmem:[%s2905 + $0x1c] sm:$0xf]
        %v2914 = vld [vmem:[%s2905 + $0x20] sm:$0xf]
        %v2915 = vld [vmem:[%s2905 + $0x24] sm:$0xf]
        %v2916 = vld [vmem:[%s2905 + $0x28] sm:$0xf]
        %v2917 = vld [vmem:[%s2905 + $0x2c] sm:$0xf]
        %v2918 = vld [vmem:[%s2905 + $0x30] sm:$0xf]
        %v2919 = vld [vmem:[%s2905 + $0x34] sm:$0xf]
        %v2920 = vld [vmem:[%s2905 + $0x38] sm:$0xf]
        %v2921 = vld [vmem:[%s2905 + $0x3c] sm:$0xf]
        %v2922 = vrot.slane %v2658, 4
        %v2923 = vrot.slane %v2659, 4
        %v2924 = vsel %vm1659, %v2922, %v2923
        %v2943 = vunpack.c.l.b16 %v2906
        %v2944 = vunpack.c.l.b16 %v2907
        %v2945 = vunpack.c.l.b16 %v2908
        %v2946 = vunpack.c.l.b16 %v2909
        %v2947 = vunpack.c.l.b16 %v2910
        %v2948 = vunpack.c.l.b16 %v2911
        %v2949 = vunpack.c.l.b16 %v2912
        %v2950 = vunpack.c.l.b16 %v2913
        %v2951 = vunpack.c.l.b16 %v2914
        %v2952 = vunpack.c.l.b16 %v2915
        %v2953 = vunpack.c.l.b16 %v2916
        %v2954 = vunpack.c.l.b16 %v2917
        %v2955 = vunpack.c.l.b16 %v2918
        %v2956 = vunpack.c.l.b16 %v2919
        %v2957 = vunpack.c.l.b16 %v2920
        %v2958 = vunpack.c.l.b16 %v2921
        %v2959 = vpack.c.b16 %v2944, %v2943
        %v2960 = vpack.c.b16 %v2946, %v2945
        %v2961 = vpack.c.b16 %v2948, %v2947
        %v2962 = vpack.c.b16 %v2950, %v2949
        %v2963 = vpack.c.b16 %v2952, %v2951
        %v2964 = vpack.c.b16 %v2954, %v2953
        %v2965 = vpack.c.b16 %v2956, %v2955
        %v2966 = vpack.c.b16 %v2958, %v2957
        %2975 = vmatprep.subr.bf16.mxu0 0
        %2976 = vmatpush1.bf16.msra.mxu0 %v2959
        %2977 = vmatprep.subr.bf16.mxu0 0
        %2978 = vmatpush1.bf16.msra.mxu0 %v2960
        %2979 = vmatprep.subr.bf16.mxu0 0
        %2980 = vmatpush1.bf16.msra.mxu0 %v2961
        %2981 = vmatprep.subr.bf16.mxu0 0
        %2982 = vmatpush1.bf16.msra.mxu0 %v2962
        %2983 = vmatprep.subr.bf16.mxu0 0
        %2984 = vmatpush1.bf16.msra.mxu0 %v2963
        %2985 = vmatprep.subr.bf16.mxu0 0
        %2986 = vmatpush1.bf16.msra.mxu0 %v2964
        %2987 = vmatprep.subr.bf16.mxu0 0
        %2988 = vmatpush1.bf16.msra.mxu0 %v2965
        %2989 = vmatprep.subr.bf16.mxu0 0
        %2990 = vmatpush1.bf16.msra.mxu0 %v2966
        %2991 = vmatprep.subr.bf16.mxu0 0
        %2992 = vmatpush1.bf16.msra.mxu0 0
        %2993 = vmatprep.subr.bf16.mxu0 0
        %2994 = vmatpush1.bf16.msra.mxu0 0
        %2995 = vmatprep.subr.bf16.mxu0 0
        %2996 = vmatpush1.bf16.msra.mxu0 0
        %2997 = vmatprep.subr.bf16.mxu0 0
        %2998 = vmatpush1.bf16.msra.mxu0 0
        %2999 = vmatprep.subr.bf16.mxu0 0
        %3000 = vmatpush1.bf16.msra.mxu0 0
        %3001 = vmatprep.subr.bf16.mxu0 0
        %3002 = vmatpush1.bf16.msra.mxu0 0
        %3003 = vmatprep.subr.bf16.mxu0 0
        %3004 = vmatpush1.bf16.msra.mxu0 0
        %3005 = vmatprep.subr.bf16.mxu0 0
        %3006 = vmatpush1.bf16.msra.mxu0 0
        %3007 = vmatprep.mubr.bf16.mxu0 0
        %3008 = vmatmul.mubr.bf16.gmra.mrb[0].mxu0 %v2924
        %v3009 = vpop.f32.mrb[0].mxu0
        %v3010 = vadd.f32 0.0, %v3009
        %v3011 = vpop.f32.mrb[0].mxu0
        %v3012 = vpop.f32.mrb[0].mxu0
        %v3013 = vadd.f32 0.0, %v3012
        %v3014 = vpop.f32.mrb[0].mxu0
        %3015 = vmatprep.mubr.bf16.mxu0 0
        %3016 = vmatmul.mubr.bf16.gmra.mrb[0].mxu0 %v2923
        %v3017 = vpop.f32.mrb[0].mxu0
        %v3018 = vadd.f32 0.0, %v3017
        %v3019 = vpop.f32.mrb[0].mxu0
        %v3020 = vpop.f32.mrb[0].mxu0
        %v3021 = vpop.f32.mrb[0].mxu0
        %3022 = vdwg.mxu0
        %v3023 = vadd.f32 %v2902, %v3010
        %v3024 = vadd.f32 %v2903, %v3013
        %v3025 = vadd.f32 %v2904, %v3018
        %v3026 = vmax.f32 %v3023, 0.0
        %v3027 = vmax.f32 %v3024, 0.0
        %v3028 = vmax.f32 %v3025, 0.0
        %s3029 = ssub.s32 8, %s704
        %v3030 = vstv %s3029
        %vm3031 = vcmp.lt.s32.totalorder %v1172, %v3030
        %vm3032 = vcmp.lt.s32.totalorder %v1173, %v3030
        %vm3033 = vcmp.lt.s32.totalorder %v1174, %v3030
        %v3034 = vsel %vm3031, 1, 0
        %v3035 = vsel %vm3032, 1, 0
        %v3036 = vsel %vm3033, 1, 0
        %vm3037 = vcmp.eq.s32.totalorder %v3034, 1
        %vm3038 = vcmp.eq.s32.totalorder %v3035, 1
        %vm3039 = vcmp.eq.s32.totalorder %v3036, 1
        %v3040 = vsel %vm3037, 0.0, %v3026
        %v3041 = vsel %vm3038, 0.0, %v3027
        %v3042 = vsel %vm3039, 0.0, %v3028
        %v3043 = vpack.c.bf16 %v3041, %v3040
        %v3044 = vpack.c.bf16 %v3042, %v3042
        %v3045 = vld [vmem:[%s14] sm:$0x1]
        %v3047 = vlaneseq
        %v3048 = vshrl.u32 %v3047, 7
        %v3049 = vsub.s32 0, %v3048
        %v3050 = vrot.slane %v3045, %v3049
        %v3052 = vld [vmem:[#allocation15] sm:$0xf]
        %v3053 = vld [vmem:[#allocation15 + $0x4] sm:$0xf]
        %v3054 = vld [vmem:[#allocation15 + $0x8] sm:$0xf]
        %v3055 = vld [vmem:[#allocation15 + $0xc] sm:$0xf]
        %v3056 = vld [vmem:[#allocation15 + $0x10] sm:$0xf]
        %v3057 = vld [vmem:[#allocation15 + $0x14] sm:$0xf]
        %v3058 = vld [vmem:[#allocation15 + $0x18] sm:$0xf]
        %v3059 = vld [vmem:[#allocation15 + $0x1c] sm:$0xf]
        %v3060 = vld [vmem:[#allocation15 + $0x20] sm:$0xf]
        %v3061 = vld [vmem:[#allocation15 + $0x24] sm:$0xf]
        %v3062 = vld [vmem:[#allocation15 + $0x28] sm:$0xf]
        %v3063 = vld [vmem:[#allocation15 + $0x2c] sm:$0xf]
        %v3064 = vld [vmem:[#allocation15 + $0x30] sm:$0xf]
        %v3065 = vld [vmem:[#allocation15 + $0x34] sm:$0xf]
        %v3066 = vld [vmem:[#allocation15 + $0x38] sm:$0xf]
        %v3067 = vld [vmem:[#allocation15 + $0x3c] sm:$0xf]
        %v3084 = vunpack.c.l.b16 %v3052
        %v3085 = vunpack.c.l.b16 %v3053
        %v3086 = vunpack.c.l.b16 %v3054
        %v3087 = vunpack.c.l.b16 %v3055
        %v3088 = vunpack.c.l.b16 %v3056
        %v3089 = vunpack.c.l.b16 %v3057
        %v3090 = vunpack.c.l.b16 %v3058
        %v3091 = vunpack.c.l.b16 %v3059
        %v3092 = vunpack.c.l.b16 %v3060
        %v3093 = vunpack.c.l.b16 %v3061
        %v3094 = vunpack.c.l.b16 %v3062
        %v3095 = vunpack.c.l.b16 %v3063
        %v3096 = vunpack.c.l.b16 %v3064
        %v3097 = vunpack.c.l.b16 %v3065
        %v3098 = vunpack.c.l.b16 %v3066
        %v3099 = vunpack.c.l.b16 %v3067
        %v3100 = vpack.c.b16 %v3085, %v3084
        %v3101 = vpack.c.b16 %v3087, %v3086
        %v3102 = vpack.c.b16 %v3089, %v3088
        %v3103 = vpack.c.b16 %v3091, %v3090
        %v3104 = vpack.c.b16 %v3093, %v3092
        %v3105 = vpack.c.b16 %v3095, %v3094
        %v3106 = vpack.c.b16 %v3097, %v3096
        %v3107 = vpack.c.b16 %v3099, %v3098
        %3116 = vmatprep.subr.bf16.mxu0 0
        %3117 = vmatpush1.bf16.msra.mxu0 %v3100
        %3118 = vmatprep.subr.bf16.mxu0 0
        %3119 = vmatpush1.bf16.msra.mxu0 %v3101
        %3120 = vmatprep.subr.bf16.mxu0 0
        %3121 = vmatpush1.bf16.msra.mxu0 %v3102
        %3122 = vmatprep.subr.bf16.mxu0 0
        %3123 = vmatpush1.bf16.msra.mxu0 %v3103
        %3124 = vmatprep.subr.bf16.mxu0 0
        %3125 = vmatpush1.bf16.msra.mxu0 %v3104
        %3126 = vmatprep.subr.bf16.mxu0 0
        %3127 = vmatpush1.bf16.msra.mxu0 %v3105
        %3128 = vmatprep.subr.bf16.mxu0 0
        %3129 = vmatpush1.bf16.msra.mxu0 %v3106
        %3130 = vmatprep.subr.bf16.mxu0 0
        %3131 = vmatpush1.bf16.msra.mxu0 %v3107
        %3132 = vmatprep.subr.bf16.mxu0 0
        %3133 = vmatpush1.bf16.msra.mxu0 0
        %3134 = vmatprep.subr.bf16.mxu0 0
        %3135 = vmatpush1.bf16.msra.mxu0 0
        %3136 = vmatprep.subr.bf16.mxu0 0
        %3137 = vmatpush1.bf16.msra.mxu0 0
        %3138 = vmatprep.subr.bf16.mxu0 0
        %3139 = vmatpush1.bf16.msra.mxu0 0
        %3140 = vmatprep.subr.bf16.mxu0 0
        %3141 = vmatpush1.bf16.msra.mxu0 0
        %3142 = vmatprep.subr.bf16.mxu0 0
        %3143 = vmatpush1.bf16.msra.mxu0 0
        %3144 = vmatprep.subr.bf16.mxu0 0
        %3145 = vmatpush1.bf16.msra.mxu0 0
        %3146 = vmatprep.subr.bf16.mxu0 0
        %3147 = vmatpush1.bf16.msra.mxu0 0
        %3148 = vmatprep.mubr.bf16.mxu0 0
        %3149 = vmatmul.mubr.bf16.gmra.mrb[0].mxu0 %v3043
        %v3150 = vpop.f32.mrb[0].mxu0
        %v3151 = vadd.f32 0.0, %v3150
        %v3152 = vpop.f32.mrb[0].mxu0
        %v3153 = vpop.f32.mrb[0].mxu0
        %v3154 = vadd.f32 0.0, %v3153
        %v3155 = vpop.f32.mrb[0].mxu0
        %3156 = vdwg.mxu0
        %v3157 = vadd.f32 %v3050, %v3151
        %v3158 = vadd.f32 %v3050, %v3154
        %s3159 = scalar_lea.vmem [#allocation15], 64
        %v3160 = vld [vmem:[%s3159] sm:$0xf]
        %v3161 = vld [vmem:[%s3159 + $0x4] sm:$0xf]
        %v3162 = vld [vmem:[%s3159 + $0x8] sm:$0xf]
        %v3163 = vld [vmem:[%s3159 + $0xc] sm:$0xf]
        %v3164 = vld [vmem:[%s3159 + $0x10] sm:$0xf]
        %v3165 = vld [vmem:[%s3159 + $0x14] sm:$0xf]
        %v3166 = vld [vmem:[%s3159 + $0x18] sm:$0xf]
        %v3167 = vld [vmem:[%s3159 + $0x1c] sm:$0xf]
        %v3168 = vld [vmem:[%s3159 + $0x20] sm:$0xf]
        %v3169 = vld [vmem:[%s3159 + $0x24] sm:$0xf]
        %v3170 = vld [vmem:[%s3159 + $0x28] sm:$0xf]
        %v3171 = vld [vmem:[%s3159 + $0x2c] sm:$0xf]
        %v3172 = vld [vmem:[%s3159 + $0x30] sm:$0xf]
        %v3173 = vld [vmem:[%s3159 + $0x34] sm:$0xf]
        %v3174 = vld [vmem:[%s3159 + $0x38] sm:$0xf]
        %v3175 = vld [vmem:[%s3159 + $0x3c] sm:$0xf]
        %v3178 = vrot.slane %v3043, 2
        %v3179 = vrot.slane %v3044, 2
        %v3180 = vsel %vm745, %v3178, %v3179
        %v3198 = vunpack.c.l.b16 %v3160
        %v3199 = vunpack.c.l.b16 %v3161
        %v3200 = vunpack.c.l.b16 %v3162
        %v3201 = vunpack.c.l.b16 %v3163
        %v3202 = vunpack.c.l.b16 %v3164
        %v3203 = vunpack.c.l.b16 %v3165
        %v3204 = vunpack.c.l.b16 %v3166
        %v3205 = vunpack.c.l.b16 %v3167
        %v3206 = vunpack.c.l.b16 %v3168
        %v3207 = vunpack.c.l.b16 %v3169
        %v3208 = vunpack.c.l.b16 %v3170
        %v3209 = vunpack.c.l.b16 %v3171
        %v3210 = vunpack.c.l.b16 %v3172
        %v3211 = vunpack.c.l.b16 %v3173
        %v3212 = vunpack.c.l.b16 %v3174
        %v3213 = vunpack.c.l.b16 %v3175
        %v3214 = vpack.c.b16 %v3199, %v3198
        %v3215 = vpack.c.b16 %v3201, %v3200
        %v3216 = vpack.c.b16 %v3203, %v3202
        %v3217 = vpack.c.b16 %v3205, %v3204
        %v3218 = vpack.c.b16 %v3207, %v3206
        %v3219 = vpack.c.b16 %v3209, %v3208
        %v3220 = vpack.c.b16 %v3211, %v3210
        %v3221 = vpack.c.b16 %v3213, %v3212
        %3230 = vmatprep.subr.bf16.mxu0 0
        %3231 = vmatpush1.bf16.msra.mxu0 %v3214
        %3232 = vmatprep.subr.bf16.mxu0 0
        %3233 = vmatpush1.bf16.msra.mxu0 %v3215
        %3234 = vmatprep.subr.bf16.mxu0 0
        %3235 = vmatpush1.bf16.msra.mxu0 %v3216
        %3236 = vmatprep.subr.bf16.mxu0 0
        %3237 = vmatpush1.bf16.msra.mxu0 %v3217
        %3238 = vmatprep.subr.bf16.mxu0 0
        %3239 = vmatpush1.bf16.msra.mxu0 %v3218
        %3240 = vmatprep.subr.bf16.mxu0 0
        %3241 = vmatpush1.bf16.msra.mxu0 %v3219
        %3242 = vmatprep.subr.bf16.mxu0 0
        %3243 = vmatpush1.bf16.msra.mxu0 %v3220
        %3244 = vmatprep.subr.bf16.mxu0 0
        %3245 = vmatpush1.bf16.msra.mxu0 %v3221
        %3246 = vmatprep.subr.bf16.mxu0 0
        %3247 = vmatpush1.bf16.msra.mxu0 0
        %3248 = vmatprep.subr.bf16.mxu0 0
        %3249 = vmatpush1.bf16.msra.mxu0 0
        %3250 = vmatprep.subr.bf16.mxu0 0
        %3251 = vmatpush1.bf16.msra.mxu0 0
        %3252 = vmatprep.subr.bf16.mxu0 0
        %3253 = vmatpush1.bf16.msra.mxu0 0
        %3254 = vmatprep.subr.bf16.mxu0 0
        %3255 = vmatpush1.bf16.msra.mxu0 0
        %3256 = vmatprep.subr.bf16.mxu0 0
        %3257 = vmatpush1.bf16.msra.mxu0 0
        %3258 = vmatprep.subr.bf16.mxu0 0
        %3259 = vmatpush1.bf16.msra.mxu0 0
        %3260 = vmatprep.subr.bf16.mxu0 0
        %3261 = vmatpush1.bf16.msra.mxu0 0
        %3262 = vmatprep.mubr.bf16.mxu0 0
        %3263 = vmatmul.mubr.bf16.gmra.mrb[0].mxu0 %v3180
        %v3264 = vpop.f32.mrb[0].mxu0
        %v3265 = vadd.f32 0.0, %v3264
        %v3266 = vpop.f32.mrb[0].mxu0
        %v3267 = vpop.f32.mrb[0].mxu0
        %v3268 = vadd.f32 0.0, %v3267
        %v3269 = vpop.f32.mrb[0].mxu0
        %3270 = vdwg.mxu0
        %v3271 = vadd.f32 %v3157, %v3265
        %v3272 = vadd.f32 %v3158, %v3268
        %s3273 = scalar_lea.vmem [#allocation15], 128
        %v3274 = vld [vmem:[%s3273] sm:$0xf]
        %v3275 = vld [vmem:[%s3273 + $0x4] sm:$0xf]
        %v3276 = vld [vmem:[%s3273 + $0x8] sm:$0xf]
        %v3277 = vld [vmem:[%s3273 + $0xc] sm:$0xf]
        %v3278 = vld [vmem:[%s3273 + $0x10] sm:$0xf]
        %v3279 = vld [vmem:[%s3273 + $0x14] sm:$0xf]
        %v3280 = vld [vmem:[%s3273 + $0x18] sm:$0xf]
        %v3281 = vld [vmem:[%s3273 + $0x1c] sm:$0xf]
        %v3282 = vld [vmem:[%s3273 + $0x20] sm:$0xf]
        %v3283 = vld [vmem:[%s3273 + $0x24] sm:$0xf]
        %v3284 = vld [vmem:[%s3273 + $0x28] sm:$0xf]
        %v3285 = vld [vmem:[%s3273 + $0x2c] sm:$0xf]
        %v3286 = vld [vmem:[%s3273 + $0x30] sm:$0xf]
        %v3287 = vld [vmem:[%s3273 + $0x34] sm:$0xf]
        %v3288 = vld [vmem:[%s3273 + $0x38] sm:$0xf]
        %v3289 = vld [vmem:[%s3273 + $0x3c] sm:$0xf]
        %v3290 = vrot.slane %v3043, 4
        %v3291 = vrot.slane %v3044, 4
        %v3292 = vsel %vm1659, %v3290, %v3291
        %v3310 = vunpack.c.l.b16 %v3274
        %v3311 = vunpack.c.l.b16 %v3275
        %v3312 = vunpack.c.l.b16 %v3276
        %v3313 = vunpack.c.l.b16 %v3277
        %v3314 = vunpack.c.l.b16 %v3278
        %v3315 = vunpack.c.l.b16 %v3279
        %v3316 = vunpack.c.l.b16 %v3280
        %v3317 = vunpack.c.l.b16 %v3281
        %v3318 = vunpack.c.l.b16 %v3282
        %v3319 = vunpack.c.l.b16 %v3283
        %v3320 = vunpack.c.l.b16 %v3284
        %v3321 = vunpack.c.l.b16 %v3285
        %v3322 = vunpack.c.l.b16 %v3286
        %v3323 = vunpack.c.l.b16 %v3287
        %v3324 = vunpack.c.l.b16 %v3288
        %v3325 = vunpack.c.l.b16 %v3289
        %v3326 = vpack.c.b16 %v3311, %v3310
        %v3327 = vpack.c.b16 %v3313, %v3312
        %v3328 = vpack.c.b16 %v3315, %v3314
        %v3329 = vpack.c.b16 %v3317, %v3316
        %v3330 = vpack.c.b16 %v3319, %v3318
        %v3331 = vpack.c.b16 %v3321, %v3320
        %v3332 = vpack.c.b16 %v3323, %v3322
        %v3333 = vpack.c.b16 %v3325, %v3324
        %3342 = vmatprep.subr.bf16.mxu0 0
        %3343 = vmatpush1.bf16.msra.mxu0 %v3326
        %3344 = vmatprep.subr.bf16.mxu0 0
        %3345 = vmatpush1.bf16.msra.mxu0 %v3327
        %3346 = vmatprep.subr.bf16.mxu0 0
        %3347 = vmatpush1.bf16.msra.mxu0 %v3328
        %3348 = vmatprep.subr.bf16.mxu0 0
        %3349 = vmatpush1.bf16.msra.mxu0 %v3329
        %3350 = vmatprep.subr.bf16.mxu0 0
        %3351 = vmatpush1.bf16.msra.mxu0 %v3330
        %3352 = vmatprep.subr.bf16.mxu0 0
        %3353 = vmatpush1.bf16.msra.mxu0 %v3331
        %3354 = vmatprep.subr.bf16.mxu0 0
        %3355 = vmatpush1.bf16.msra.mxu0 %v3332
        %3356 = vmatprep.subr.bf16.mxu0 0
        %3357 = vmatpush1.bf16.msra.mxu0 %v3333
        %3358 = vmatprep.subr.bf16.mxu0 0
        %3359 = vmatpush1.bf16.msra.mxu0 0
        %3360 = vmatprep.subr.bf16.mxu0 0
        %3361 = vmatpush1.bf16.msra.mxu0 0
        %3362 = vmatprep.subr.bf16.mxu0 0
        %3363 = vmatpush1.bf16.msra.mxu0 0
        %3364 = vmatprep.subr.bf16.mxu0 0
        %3365 = vmatpush1.bf16.msra.mxu0 0
        %3366 = vmatprep.subr.bf16.mxu0 0
        %3367 = vmatpush1.bf16.msra.mxu0 0
        %3368 = vmatprep.subr.bf16.mxu0 0
        %3369 = vmatpush1.bf16.msra.mxu0 0
        %3370 = vmatprep.subr.bf16.mxu0 0
        %3371 = vmatpush1.bf16.msra.mxu0 0
        %3372 = vmatprep.subr.bf16.mxu0 0
        %3373 = vmatpush1.bf16.msra.mxu0 0
        %3374 = vmatprep.mubr.bf16.mxu0 0
        %3375 = vmatmul.mubr.bf16.gmra.mrb[0].mxu0 %v3292
        %v3376 = vpop.f32.mrb[0].mxu0
        %v3377 = vadd.f32 0.0, %v3376
        %v3378 = vpop.f32.mrb[0].mxu0
        %v3379 = vpop.f32.mrb[0].mxu0
        %v3380 = vadd.f32 0.0, %v3379
        %v3381 = vpop.f32.mrb[0].mxu0
        %3382 = vdwg.mxu0
        %v3383 = vadd.f32 %v3271, %v3377
        %v3384 = vadd.f32 %v3272, %v3380
        %v3385 = vmax.f32 %v3383, 0.0
        %v3386 = vmax.f32 %v3384, 0.0
        %v3387 = vld [vmem:[#allocation17] sm:$0xf]
        %v3388 = vld [vmem:[#allocation17 + $0x4] sm:$0xf]
        %v3389 = vld [vmem:[#allocation17 + $0x8] sm:$0xf]
        %v3390 = vld [vmem:[#allocation17 + $0xc] sm:$0xf]
        %v3391 = vld [vmem:[#allocation17 + $0x10] sm:$0xf]
        %v3392 = vld [vmem:[#allocation17 + $0x14] sm:$0xf]
        %v3393 = vld [vmem:[#allocation17 + $0x18] sm:$0xf]
        %v3394 = vld [vmem:[#allocation17 + $0x1c] sm:$0xf]
        %v3395 = vld [vmem:[#allocation17 + $0x20] sm:$0xf]
        %v3396 = vld [vmem:[#allocation17 + $0x24] sm:$0xf]
        %v3397 = vld [vmem:[#allocation17 + $0x28] sm:$0xf]
        %v3398 = vld [vmem:[#allocation17 + $0x2c] sm:$0xf]
        %v3399 = vld [vmem:[#allocation17 + $0x30] sm:$0xf]
        %v3400 = vld [vmem:[#allocation17 + $0x34] sm:$0xf]
        %v3401 = vld [vmem:[#allocation17 + $0x38] sm:$0xf]
        %v3402 = vld [vmem:[#allocation17 + $0x3c] sm:$0xf]
        %v3403 = vld [vmem:[%s16] sm:$0x1]
        %v3405 = vlaneseq
        %v3406 = vshrl.u32 %v3405, 7
        %v3407 = vsub.s32 0, %v3406
        %v3408 = vrot.slane %v3403, %v3407
        %v3426 = vunpack.c.l.b16 %v3387
        %v3427 = vunpack.c.l.b16 %v3388
        %v3428 = vunpack.c.l.b16 %v3389
        %v3429 = vunpack.c.l.b16 %v3390
        %v3430 = vunpack.c.l.b16 %v3391
        %v3431 = vunpack.c.l.b16 %v3392
        %v3432 = vunpack.c.l.b16 %v3393
        %v3433 = vunpack.c.l.b16 %v3394
        %v3434 = vunpack.c.l.b16 %v3395
        %v3435 = vunpack.c.l.b16 %v3396
        %v3436 = vunpack.c.l.b16 %v3397
        %v3437 = vunpack.c.l.b16 %v3398
        %v3438 = vunpack.c.l.b16 %v3399
        %v3439 = vunpack.c.l.b16 %v3400
        %v3440 = vunpack.c.l.b16 %v3401
        %v3441 = vunpack.c.l.b16 %v3402
        %v3442 = vpack.c.b16 %v3427, %v3426
        %v3443 = vpack.c.b16 %v3429, %v3428
        %v3444 = vpack.c.b16 %v3431, %v3430
        %v3445 = vpack.c.b16 %v3433, %v3432
        %v3446 = vpack.c.b16 %v3435, %v3434
        %v3447 = vpack.c.b16 %v3437, %v3436
        %v3448 = vpack.c.b16 %v3439, %v3438
        %v3449 = vpack.c.b16 %v3441, %v3440
        %3458 = vmatprep.subr.bf16.mxu0 0
        %3459 = vmatpush1.bf16.msra.mxu0 %v3442
        %3460 = vmatprep.subr.bf16.mxu0 0
        %3461 = vmatpush1.bf16.msra.mxu0 %v3443
        %3462 = vmatprep.subr.bf16.mxu0 0
        %3463 = vmatpush1.bf16.msra.mxu0 %v3444
        %3464 = vmatprep.subr.bf16.mxu0 0
        %3465 = vmatpush1.bf16.msra.mxu0 %v3445
        %3466 = vmatprep.subr.bf16.mxu0 0
        %3467 = vmatpush1.bf16.msra.mxu0 %v3446
        %3468 = vmatprep.subr.bf16.mxu0 0
        %3469 = vmatpush1.bf16.msra.mxu0 %v3447
        %3470 = vmatprep.subr.bf16.mxu0 0
        %3471 = vmatpush1.bf16.msra.mxu0 %v3448
        %3472 = vmatprep.subr.bf16.mxu0 0
        %3473 = vmatpush1.bf16.msra.mxu0 %v3449
        %3474 = vmatprep.subr.bf16.mxu0 0
        %3475 = vmatpush1.bf16.msra.mxu0 0
        %3476 = vmatprep.subr.bf16.mxu0 0
        %3477 = vmatpush1.bf16.msra.mxu0 0
        %3478 = vmatprep.subr.bf16.mxu0 0
        %3479 = vmatpush1.bf16.msra.mxu0 0
        %3480 = vmatprep.subr.bf16.mxu0 0
        %3481 = vmatpush1.bf16.msra.mxu0 0
        %3482 = vmatprep.subr.bf16.mxu0 0
        %3483 = vmatpush1.bf16.msra.mxu0 0
        %3484 = vmatprep.subr.bf16.mxu0 0
        %3485 = vmatpush1.bf16.msra.mxu0 0
        %3486 = vmatprep.subr.bf16.mxu0 0
        %3487 = vmatpush1.bf16.msra.mxu0 0
        %3488 = vmatprep.subr.bf16.mxu0 0
        %3489 = vmatpush1.bf16.msra.mxu0 0
        %3490 = vmatprep.mubr.bf16.mxu0 0
        %3491 = vmatmul.mubr.bf16.gmra.mrb[0].mxu0 %v2659
        %v3492 = vpop.f32.mrb[0].mxu0
        %v3493 = vadd.f32 %v3408, %v3492
        %v3494 = vpop.f32.mrb[0].mxu0
        %v3495 = vpop.f32.mrb[0].mxu0
        %v3496 = vadd.f32 %v3408, %v3495
        %v3497 = vpop.f32.mrb[0].mxu0
        %3498 = vdwg.mxu0
        %v3499 = vadd.f32 %v3385, %v3493
        %v3500 = vadd.f32 %v3386, %v3496
        %v3501 = vmax.f32 %v3499, 0.0
        %v3502 = vmax.f32 %v3500, 0.0
        %v3503 = vpack.c.bf16 %v3502, %v3501
        %v3505 = vunpack.c.l.b16 %v3503
        %v3506 = vunpack.c.h.b16 %v3503
        %v3507 = vpack.c.b16 %v3505, %v3505
        %v3508 = vpack.c.b16 %v3506, %v3506
        %3511 = vst [vmem:[%s700] sm:$0xf] %v3507
        %3512 = vst [vmem:[%s700 + $0x4] sm:$0xf] %v3508
        %s3513 = sand.u32 %s424, 1
        %s3514 = scalar_lea.sflag [#allocation5], %s3513
        %s3515 = sand.u32 %s424, 1
        %s3516 = smul.addr %s3515, 8
        %s3517 = scalar_lea.vmem [#allocation18], %s3516
        // Predicated region
        $region125: #{tpu_custom_call.1} parent=87 // pred_check
          %p3518 = pneg %p434
        $region126: #{tpu_custom_call.1} parent=87 // pred_check_branch
          %3520 = sbr.rel (%p3518) target = $region128
        $region127: #{tpu_custom_call.1} parent=87 // pred_region
          %s3521 = smul.u32 2, %s43
          %s3523 = ssub.s32 128, 128
          %3524 = vsyncadd %s3514, %s3523
          %s3525 = smul.addr %s42, 2
          %s3526 = sadd.s32 %s3521, %s3525
          %s3527 = smul.addr %s3526, 64
          %s3528 = scalar_lea.hbm %s17, %s3527
          %s3529 = sshll.u32 %s3517, 4
          %s3530 = int_to_ptr.vmem [resolvable:$true] %s3529
          %3535 = dma.vmem_to_hbm [thread:$0]  %s3530, 128, %s3528, %s3514, 64, 64, 4
        $region128: #{tpu_custom_call.1} parent=87 // pred_fallthru
          _
      $region88: #{tpu_custom_call.1} parent=5 // pred_fallthru
        _
      %p3536 = scmp.le.s32.totalorder 2, %s33
      // Predicated region
      $region129: #{tpu_custom_call.1} parent=5 // pred_check
        %p3537 = pneg %p3536
      $region130: #{tpu_custom_call.1} parent=5 // pred_check_branch
        %3539 = sbr.rel (%p3537) target = $region132
      $region131: #{tpu_custom_call.1} parent=5 // pred_region
        %s3540 = ssub.s32 %s33, 2
        // Predicated region
        $region133: #{tpu_custom_call.1} parent=131 // pred_check
          %p3541 = pneg %p440
        $region134: #{tpu_custom_call.1} parent=131 // pred_check_branch
          %3543 = sbr.rel (%p3541) target = $region136
        $region135: #{tpu_custom_call.1} parent=131 // pred_region
          %s3544 = sand.u32 %s425, 1
          %s3545 = scalar_lea.sflag [#allocation5], %s3544
          %s3546 = sand.u32 %s425, 1
          %s3547 = smul.addr %s3546, 8
          %s3548 = scalar_lea.vmem [#allocation18], %s3547
          %3549 = dma.done %s3545, 128
        $region136: #{tpu_custom_call.1} parent=131 // pred_fallthru
          _
      $region132: #{tpu_custom_call.1} parent=5 // pred_fallthru
        _
    $region6: #{tpu_custom_call.1} parent=1 // loop_footer
      %s37 = sadd.s32 1, %s33
    $region7: #{tpu_custom_call.1} parent=1 // loop_footer_branch
      %32 = sbr.rel target = $region3
    $region8: #{tpu_custom_call.1} parent=1 // loop_exit
      _
    %3550 = vsyncpa [#allocation4], 1
    %s3551 = scalar_lea.sflag [#allocation4], 1
    %3552 = vsyncpa %s3551, 1
    %3553 = vsyncpa [#allocation7], 1
    %3554 = vsyncpa [#allocation10], 1
    %3555 = vsyncpa [#allocation13], 1
    %3556 = vsyncpa [#allocation16], 1
    %3557 = vsyncpa [#allocation5], 1
    %s3558 = scalar_lea.sflag [#allocation5], 1
    %3559 = vsyncpa %s3558, 1

</llo_original>
